<compile_context>
chip_gen: v5e
topology: v5e:2x2
jax: 0.10.0
libtpu: 0.0.40
codegen_flags: <defaults>
</compile_context>

<pallas_src>
import jax
import jax.numpy as jnp
from jax.experimental import pallas as pl
from jax.experimental.pallas import tpu as pltpu

Q_GRU_OUT = 512     # QRNN output dim (fixed by the module)
HIDDEN = 1024       # build_mlp hidden dim (fixed by the module)
NCLS = 128          # number of classes (module ctor arg; example value)
REG_PAD = 128       # regression head padded to a full lane width
LANE = 128


def _round_up(x, m):
    return ((x + m - 1) // m) * m


def qmodel_kernel(x_ref, w1_ref, b1_ref, w2c_ref, b2c_ref, w2r_ref, b2r_ref,
                  out_ref):
    """Fused first layer for both heads + lane-dense second layers."""
    ncls_pad = w2c_ref.shape[1]
    x = x_ref[...]                                                # [tm, 512] bf16

    # Layer 1 of BOTH heads: a single (512, 2*HIDDEN) bf16 weight stream.
    h = jnp.dot(x, w1_ref[...], preferred_element_type=jnp.float32)
    h = jnp.maximum(h + b1_ref[...], 0.0)                         # [tm, 2048] f32
    h = h.astype(jnp.bfloat16)
    h_c = h[:, :HIDDEN]                                           # classification branch
    h_r = h[:, HIDDEN:]                                           # regression branch

    # Classification head: Linear(1024, Ncls) (padded to a lane multiple).
    cls = jnp.dot(h_c, w2c_ref[...], preferred_element_type=jnp.float32)
    out_ref[:, :ncls_pad] = (cls + b2c_ref[...]).astype(out_ref.dtype)

    # Regression head: Linear(1024, 1) padded to 128 lanes (cols 1.. are zero).
    reg = jnp.dot(h_r, w2r_ref[...], preferred_element_type=jnp.float32)
    out_ref[:, ncls_pad:] = (reg + b2r_ref[...]).astype(out_ref.dtype)


def pack_params(params):
    """Concatenate layer-1 weights of both heads; lane-pad the second layers.

    Weight streams go to bf16 (MXU-native); biases stay f32 (added post-accum).
    """
    (w1c, b1c, w2c, b2c, w1r, b1r, w2r, b2r) = params
    ncls = w2c.shape[1]
    ncls_pad = _round_up(ncls, LANE)

    w1 = jnp.concatenate([w1c, w1r], axis=1).astype(jnp.bfloat16)         # (512, 2048)
    b1 = jnp.concatenate([b1c, b1r], axis=1).astype(jnp.float32)          # (1, 2048)

    w2c_p = (jnp.zeros((HIDDEN, ncls_pad), jnp.float32)
             .at[:, :ncls].set(w2c)).astype(jnp.bfloat16)                 # (1024, ncls_pad)
    b2c_p = jnp.zeros((1, ncls_pad), jnp.float32).at[:, :ncls].set(b2c)   # (1, ncls_pad)

    w2r_p = (jnp.zeros((HIDDEN, REG_PAD), jnp.float32)
             .at[:, :1].set(w2r)).astype(jnp.bfloat16)                    # (1024, 128)
    b2r_p = jnp.zeros((1, REG_PAD), jnp.float32).at[:, :1].set(b2r)       # (1, 128)
    return w1, b1, w2c_p, b2c_p, w2r_p, b2r_p, ncls


def qmodel_forward(q_rnn, params, *, tm=128):
    """q_rnn: [B, 512] float32.  Returns (cls_scores [B, Ncls], reg_scores [B])."""
    B, D = q_rnn.shape
    assert D == Q_GRU_OUT
    w1, b1, w2c, b2c, w2r, b2r, ncls = pack_params(params)
    ncls_pad = w2c.shape[1]
    out_w = ncls_pad + REG_PAD

    # Adaptive batch tile: small B rounds up to a sublane multiple (8),
    # large B uses full 128-row MXU tiles with a batch-parallel grid.
    tm = min(tm, max(8, _round_up(B, 8)))
    n_tiles = pl.cdiv(B, tm)
    Bp = n_tiles * tm

    x = q_rnn.astype(jnp.bfloat16)
    if Bp != B:
        x = jnp.pad(x, ((0, Bp - B), (0, 0)))

    out_full = pl.pallas_call(
        qmodel_kernel,
        out_shape=jax.ShapeDtypeStruct((Bp, out_w), jnp.float32),
        grid_spec=pltpu.PrefetchScalarGridSpec(
            num_scalar_prefetch=0,
            grid=(n_tiles,),
            in_specs=[
                pl.BlockSpec((tm, D), lambda i: (i, 0)),             # x tile over batch
                pl.BlockSpec((D, 2 * HIDDEN), lambda i: (0, 0)),     # fused layer-1 W
                pl.BlockSpec((1, 2 * HIDDEN), lambda i: (0, 0)),     # fused layer-1 b
                pl.BlockSpec((HIDDEN, ncls_pad), lambda i: (0, 0)),  # cls layer-2 W (padded)
                pl.BlockSpec((1, ncls_pad), lambda i: (0, 0)),       # cls layer-2 b (padded)
                pl.BlockSpec((HIDDEN, REG_PAD), lambda i: (0, 0)),   # reg layer-2 W (padded)
                pl.BlockSpec((1, REG_PAD), lambda i: (0, 0)),        # reg layer-2 b (padded)
            ],
            out_specs=pl.BlockSpec((tm, out_w), lambda i: (i, 0)),   # fused [cls | reg] slab
        ),
        compiler_params=pltpu.CompilerParams(
            dimension_semantics=("parallel",),
            vmem_limit_bytes=32 << 20,
        ),
    )(x, w1, b1, w2c, b2c, w2r, b2r)

    cls_scores = out_full[:B, :ncls]
    reg_scores = out_full[:B, ncls_pad]   # column 0 of reg block; matches .view(-1)
    return cls_scores, reg_scores


def init_params(key, ncls=NCLS):
    """Deterministic parameter init.  Shapes follow build_mlp(512, [1024], out)."""
    ks = jax.random.split(key, 8)

    def lin(kw, kb, fan_in, fan_out):
        # torch nn.Linear default: U(-1/sqrt(fan_in), 1/sqrt(fan_in))
        bound = 1.0 / jnp.sqrt(fan_in)
        w = jax.random.uniform(kw, (fan_in, fan_out), jnp.float32, -bound, bound)
        b = jax.random.uniform(kb, (1, fan_out), jnp.float32, -bound, bound)
        return w, b

    w1c, b1c = lin(ks[0], ks[1], Q_GRU_OUT, HIDDEN)
    w2c, b2c = lin(ks[2], ks[3], HIDDEN, ncls)
    w1r, b1r = lin(ks[4], ks[5], Q_GRU_OUT, HIDDEN)
    w2r, b2r = lin(ks[6], ks[7], HIDDEN, 1)
    return (w1c, b1c, w2c, b2c, w1r, b1r, w2r, b2r)


def reference_forward(q_rnn, params):
    (w1c, b1c, w2c, b2c, w1r, b1r, w2r, b2r) = params
    h_c = jnp.maximum(q_rnn @ w1c + b1c, 0.0)
    cls = h_c @ w2c + b2c
    h_r = jnp.maximum(q_rnn @ w1r + b1r, 0.0)
    reg = (h_r @ w2r + b2r).reshape(-1)
    return cls, reg


if __name__ == "__main__":
    key = jax.random.PRNGKey(0)
    kx, kp = jax.random.split(key)

    B = 8  # small batch
    q_rnn = jax.random.normal(kx, (B, Q_GRU_OUT), jnp.float32)
    params = init_params(kp, ncls=NCLS)

    cls_scores, reg_scores = qmodel_forward(q_rnn, params)
    jax.block_until_ready((cls_scores, reg_scores))

    cls_ref, reg_ref = reference_forward(q_rnn, params)
    assert cls_scores.shape == (B, NCLS)
    assert reg_scores.shape == (B,)
    # Weight/activation streams are bf16 (f32 accumulation) -> loosened tolerance
    # vs. the pure-f32 reference.
    assert jnp.allclose(cls_scores, cls_ref, atol=5e-2, rtol=5e-2)
    assert jnp.allclose(reg_scores, reg_ref, atol=5e-2, rtol=5e-2)

    print("KERNEL_OK")
</pallas_src>

<mosaic_0001>
module attributes {stable_mosaic.version = 11 : i64} {
  func.func @qmodel_kernel(%arg0: i32, %arg1: memref<8x512xbf16, #tpu.memory_space<vmem>>, %arg2: memref<512x2048xbf16, #tpu.memory_space<vmem>>, %arg3: memref<1x2048xf32, #tpu.memory_space<vmem>>, %arg4: memref<1024x128xbf16, #tpu.memory_space<vmem>>, %arg5: memref<1x128xf32, #tpu.memory_space<vmem>>, %arg6: memref<1024x128xbf16, #tpu.memory_space<vmem>>, %arg7: memref<1x128xf32, #tpu.memory_space<vmem>>, %arg8: memref<8x256xf32, #tpu.memory_space<vmem>>) attributes {dimension_semantics = [#tpu.dimension_semantics<parallel>], iteration_bounds = array<i64: 1>, scalar_prefetch = 0 : i64, scratch_operands = 0 : i64, tpu.core_type = #tpu.core_type<tc>, window_params = [{transform_indices = @transform_0, window_bounds = array<i64: 8, 512>}, {pipeline_mode = #tpu.pipeline_mode<synchronous>, transform_indices = @transform_1, window_bounds = array<i64: 512, 2048>}, {pipeline_mode = #tpu.pipeline_mode<synchronous>, transform_indices = @transform_2, window_bounds = array<i64: 1, 2048>}, {pipeline_mode = #tpu.pipeline_mode<synchronous>, transform_indices = @transform_3, window_bounds = array<i64: 1024, 128>}, {pipeline_mode = #tpu.pipeline_mode<synchronous>, transform_indices = @transform_4, window_bounds = array<i64: 1, 128>}, {pipeline_mode = #tpu.pipeline_mode<synchronous>, transform_indices = @transform_5, window_bounds = array<i64: 1024, 128>}, {pipeline_mode = #tpu.pipeline_mode<synchronous>, transform_indices = @transform_6, window_bounds = array<i64: 1, 128>}, {transform_indices = @transform_7, window_bounds = array<i64: 8, 256>}]} {
    %c0 = arith.constant 0 : index
    %c0_0 = arith.constant 0 : index
    %0 = vector.load %arg1[%c0, %c0_0] : memref<8x512xbf16, #tpu.memory_space<vmem>>, vector<8x512xbf16>
    %c0_1 = arith.constant 0 : index
    %c0_2 = arith.constant 0 : index
    %1 = vector.load %arg2[%c0_1, %c0_2] : memref<512x2048xbf16, #tpu.memory_space<vmem>>, vector<512x2048xbf16>
    %cst = arith.constant dense<0.000000e+00> : vector<8x2048xf32>
    %2 = tpu.matmul %0, %1, %cst {dimension_numbers = #tpu.dot_dimension_numbers<[1], [0], [0], [1], [0, 0, 1, 1], [], []>} : vector<8x512xbf16>, vector<512x2048xbf16>, vector<8x2048xf32> -> vector<8x2048xf32>
    %c0_3 = arith.constant 0 : index
    %c0_4 = arith.constant 0 : index
    %3 = vector.load %arg3[%c0_3, %c0_4] : memref<1x2048xf32, #tpu.memory_space<vmem>>, vector<1x2048xf32>
    %4 = vector.broadcast %3 : vector<1x2048xf32> to vector<8x2048xf32>
    %5 = arith.addf %2, %4 : vector<8x2048xf32>
    %cst_5 = arith.constant 0.000000e+00 : f32
    %6 = vector.broadcast %cst_5 : f32 to vector<8x2048xf32>
    %7 = arith.maximumf %5, %6 : vector<8x2048xf32>
    %8 = arith.truncf %7 : vector<8x2048xf32> to vector<8x2048xbf16>
    %9 = vector.extract_strided_slice %8 {offsets = [0, 0], sizes = [8, 1024], strides = [1, 1]} : vector<8x2048xbf16> to vector<8x1024xbf16>
    %10 = vector.extract_strided_slice %8 {offsets = [0, 1024], sizes = [8, 1024], strides = [1, 1]} : vector<8x2048xbf16> to vector<8x1024xbf16>
    %c0_6 = arith.constant 0 : index
    %c0_7 = arith.constant 0 : index
    %11 = vector.load %arg4[%c0_6, %c0_7] : memref<1024x128xbf16, #tpu.memory_space<vmem>>, vector<1024x128xbf16>
    %cst_8 = arith.constant dense<0.000000e+00> : vector<8x128xf32>
    %12 = tpu.matmul %9, %11, %cst_8 {dimension_numbers = #tpu.dot_dimension_numbers<[1], [0], [0], [1], [0, 0, 1, 1], [], []>} : vector<8x1024xbf16>, vector<1024x128xbf16>, vector<8x128xf32> -> vector<8x128xf32>
    %c0_9 = arith.constant 0 : index
    %c0_10 = arith.constant 0 : index
    %13 = vector.load %arg5[%c0_9, %c0_10] : memref<1x128xf32, #tpu.memory_space<vmem>>, vector<1x128xf32>
    %14 = vector.broadcast %13 : vector<1x128xf32> to vector<8x128xf32>
    %15 = arith.addf %12, %14 : vector<8x128xf32>
    %c0_11 = arith.constant 0 : index
    %c0_12 = arith.constant 0 : index
    %16 = vector.load %arg8[%c0_11, %c0_12] : memref<8x256xf32, #tpu.memory_space<vmem>>, vector<8x128xf32>
    tpu.vector_store %arg8[%c0_11, %c0_12], %15 {strides = array<i32>} : memref<8x256xf32, #tpu.memory_space<vmem>>, vector<8x128xf32>,
    %c0_13 = arith.constant 0 : index
    %c0_14 = arith.constant 0 : index
    %17 = vector.load %arg6[%c0_13, %c0_14] : memref<1024x128xbf16, #tpu.memory_space<vmem>>, vector<1024x128xbf16>
    %cst_15 = arith.constant dense<0.000000e+00> : vector<8x128xf32>
    %18 = tpu.matmul %10, %17, %cst_15 {dimension_numbers = #tpu.dot_dimension_numbers<[1], [0], [0], [1], [0, 0, 1, 1], [], []>} : vector<8x1024xbf16>, vector<1024x128xbf16>, vector<8x128xf32> -> vector<8x128xf32>
    %c0_16 = arith.constant 0 : index
    %c0_17 = arith.constant 0 : index
    %19 = vector.load %arg7[%c0_16, %c0_17] : memref<1x128xf32, #tpu.memory_space<vmem>>, vector<1x128xf32>
    %20 = vector.broadcast %19 : vector<1x128xf32> to vector<8x128xf32>
    %21 = arith.addf %18, %20 : vector<8x128xf32>
    %c0_18 = arith.constant 0 : index
    %c128 = arith.constant 128 : index
    %22 = vector.load %arg8[%c0_18, %c128] : memref<8x256xf32, #tpu.memory_space<vmem>>, vector<8x128xf32>
    tpu.vector_store %arg8[%c0_18, %c128], %21 {strides = array<i32>} : memref<8x256xf32, #tpu.memory_space<vmem>>, vector<8x128xf32>,
    return
  }
  func.func @transform_0(%arg0: i32) -> (i32, i32) {
    %c0_i32 = arith.constant 0 : i32
    %c0_i32_0 = arith.constant 0 : i32
    return %arg0, %c0_i32 : i32, i32
  }
  func.func @transform_1(%arg0: i32) -> (i32, i32) {
    %c0_i32 = arith.constant 0 : i32
    %c0_i32_0 = arith.constant 0 : i32
    %c0_i32_1 = arith.constant 0 : i32
    return %c0_i32, %c0_i32_0 : i32, i32
  }
  func.func @transform_2(%arg0: i32) -> (i32, i32) {
    %c0_i32 = arith.constant 0 : i32
    %c0_i32_0 = arith.constant 0 : i32
    %c0_i32_1 = arith.constant 0 : i32
    return %c0_i32, %c0_i32_0 : i32, i32
  }
  func.func @transform_3(%arg0: i32) -> (i32, i32) {
    %c0_i32 = arith.constant 0 : i32
    %c0_i32_0 = arith.constant 0 : i32
    %c0_i32_1 = arith.constant 0 : i32
    return %c0_i32, %c0_i32_0 : i32, i32
  }
  func.func @transform_4(%arg0: i32) -> (i32, i32) {
    %c0_i32 = arith.constant 0 : i32
    %c0_i32_0 = arith.constant 0 : i32
    %c0_i32_1 = arith.constant 0 : i32
    return %c0_i32, %c0_i32_0 : i32, i32
  }
  func.func @transform_5(%arg0: i32) -> (i32, i32) {
    %c0_i32 = arith.constant 0 : i32
    %c0_i32_0 = arith.constant 0 : i32
    %c0_i32_1 = arith.constant 0 : i32
    return %c0_i32, %c0_i32_0 : i32, i32
  }
  func.func @transform_6(%arg0: i32) -> (i32, i32) {
    %c0_i32 = arith.constant 0 : i32
    %c0_i32_0 = arith.constant 0 : i32
    %c0_i32_1 = arith.constant 0 : i32
    return %c0_i32, %c0_i32_0 : i32, i32
  }
  func.func @transform_7(%arg0: i32) -> (i32, i32) {
    %c0_i32 = arith.constant 0 : i32
    %c0_i32_0 = arith.constant 0 : i32
    return %arg0, %c0_i32 : i32, i32
  }
}

</mosaic_0001>

<llo_original>
// kernel: tpu_custom_call.1
$region0: #{tpu_custom_call.1}
  #allocation0 [shape = 'u32[]', space=smem, size = 0x4, offset = 0x4, fixed_abs, tag = 'smem constant byte address 0x4 - core index']
  #allocation1 [shape = 'u32[72,128]{1,0:T(1,128)}', space=vmem, size = 0x9000, scoped, tag = 'internal scratch']
  %s0 = inlined_call_operand.hbm [shape: bf16[8,512], index: 0, kind: input, shape index: {}]
  %s1 = inlined_call_operand.hbm [shape: bf16[512,2048], index: 1, kind: input, shape index: {}]
  %s2 = inlined_call_operand.hbm [shape: f32[1,2048], index: 2, kind: input, shape index: {}]
  %s3 = inlined_call_operand.hbm [shape: bf16[1024,128], index: 3, kind: input, shape index: {}]
  %s4 = inlined_call_operand.hbm [shape: f32[1,128], index: 4, kind: input, shape index: {}]
  %s5 = inlined_call_operand.hbm [shape: bf16[1024,128], index: 5, kind: input, shape index: {}]
  %s6 = inlined_call_operand.hbm [shape: f32[1,128], index: 6, kind: input, shape index: {}]
  %s7 = inlined_call_operand.hbm [shape: f32[8,256], index: 7, kind: output, shape index: {}]
  %s8 = sld [smem:[#allocation0]]
  $region66: #{tpu_custom_call.1} parent=0
    _
  %s10 = ssub.s32 1, %s8
  %s11 = scalar_select 0, %s10, %s8
  $region1: #{tpu_custom_call.1} parent=0
    #allocation2 [shape = 'u8[8192]{0}', space=vmem, size = 0x2000, scoped, tag = 'input window, operand 0, single buffered']
    #allocation3 [shape = 's32[1]{0}', space=sflag, size = 0x4, scoped, tag = 'scoped memory for tpu_custom_call.1']
    #allocation4 [shape = 's32[1]{0}', space=sflag, size = 0x4, scoped, tag = 'scoped memory for tpu_custom_call.1']
    #allocation5 [shape = 'u8[2097152]{0}', space=vmem, size = 0x200000, scoped, tag = 'input window, operand 1, single buffered']
    #allocation6 [shape = 's32[1]{0}', space=sflag, size = 0x4, scoped, tag = 'scoped memory for tpu_custom_call.1']
    #allocation7 [shape = 'u8[8192]{0}', space=vmem, size = 0x2000, scoped, tag = 'input window, operand 2, single buffered']
    #allocation8 [shape = 'u8[262144]{0}', space=vmem, size = 0x40000, scoped, tag = 'input window, operand 3, single buffered']
    #allocation9 [shape = 's32[1]{0}', space=sflag, size = 0x4, scoped, tag = 'scoped memory for tpu_custom_call.1']
    #allocation10 [shape = 'u8[512]{0}', space=vmem, size = 0x400, scoped, tag = 'input window, operand 4, single buffered']
    #allocation11 [shape = 'u8[262144]{0}', space=vmem, size = 0x40000, scoped, tag = 'input window, operand 5, single buffered']
    #allocation12 [shape = 's32[1]{0}', space=sflag, size = 0x4, scoped, tag = 'scoped memory for tpu_custom_call.1']
    #allocation13 [shape = 'u8[512]{0}', space=vmem, size = 0x400, scoped, tag = 'input window, operand 6, single buffered']
    #allocation14 [shape = 'u8[8192]{0}', space=vmem, size = 0x2000, scoped, tag = 'output window, operand 0, single buffered']
    %12 = vsyncpa [#allocation3], 0
    %13 = vsyncpa [#allocation6], 0
    %14 = vsyncpa [#allocation9], 0
    %15 = vsyncpa [#allocation12], 0
    %16 = vsyncpa [#allocation4], 0
    // Predicated region
    $region2: #{tpu_custom_call.1} parent=1 // pred_check
      _
    $region3: #{tpu_custom_call.1} parent=1 // pred_check_branch
      %18 = sbr.rel (0) target = $region5
    $region4: #{tpu_custom_call.1} parent=1 // pred_region
      %20 = vsyncadd [#allocation3], 0
      %s22 = sshll.u32 %s0, 4
      %s23 = int_to_ptr.hbm [resolvable:$true] %s22
      %s24 = sshll.u32 [#allocation2], 4
      %s25 = int_to_ptr.vmem [resolvable:$true] %s24
      %27 = dma.hbm_to_vmem [thread:$0]  %s23, 256, %s25, [#allocation3]
    $region5: #{tpu_custom_call.1} parent=1 // pred_fallthru
      _
    // Predicated region
    $region6: #{tpu_custom_call.1} parent=1 // pred_check
      _
    $region7: #{tpu_custom_call.1} parent=1 // pred_check_branch
      %29 = sbr.rel (0) target = $region9
    $region8: #{tpu_custom_call.1} parent=1 // pred_region
      %31 = vsyncadd [#allocation6], 0
      %s32 = sshll.u32 %s1, 4
      %s33 = int_to_ptr.hbm [resolvable:$true] %s32
      %s34 = sshll.u32 [#allocation5], 4
      %s35 = int_to_ptr.vmem [resolvable:$true] %s34
      %40 = dma.hbm_to_vmem [thread:$0]  %s33, 65536, %s35, [#allocation6], 1024, 1024, 64
    $region9: #{tpu_custom_call.1} parent=1 // pred_fallthru
      _
    // Predicated region
    $region10: #{tpu_custom_call.1} parent=1 // pred_check
      _
    $region11: #{tpu_custom_call.1} parent=1 // pred_check_branch
      %42 = sbr.rel (0) target = $region13
    $region12: #{tpu_custom_call.1} parent=1 // pred_region
      %44 = vsyncadd [#allocation6], 0
      %s46 = sshll.u32 %s2, 4
      %s47 = int_to_ptr.hbm [resolvable:$true] %s46
      %s48 = sshll.u32 [#allocation7], 4
      %s49 = int_to_ptr.vmem [resolvable:$true] %s48
      %51 = dma.hbm_to_vmem [thread:$0]  %s47, 256, %s49, [#allocation6]
    $region13: #{tpu_custom_call.1} parent=1 // pred_fallthru
      _
    // Predicated region
    $region14: #{tpu_custom_call.1} parent=1 // pred_check
      _
    $region15: #{tpu_custom_call.1} parent=1 // pred_check_branch
      %53 = sbr.rel (0) target = $region17
    $region16: #{tpu_custom_call.1} parent=1 // pred_region
      %55 = vsyncadd [#allocation9], 0
      %s56 = sshll.u32 %s3, 4
      %s57 = int_to_ptr.hbm [resolvable:$true] %s56
      %s58 = sshll.u32 [#allocation8], 4
      %s59 = int_to_ptr.vmem [resolvable:$true] %s58
      %64 = dma.hbm_to_vmem [thread:$0]  %s57, 8192, %s59, [#allocation9], 64, 64, 4
    $region17: #{tpu_custom_call.1} parent=1 // pred_fallthru
      _
    // Predicated region
    $region18: #{tpu_custom_call.1} parent=1 // pred_check
      _
    $region19: #{tpu_custom_call.1} parent=1 // pred_check_branch
      %66 = sbr.rel (0) target = $region21
    $region20: #{tpu_custom_call.1} parent=1 // pred_region
      %68 = vsyncadd [#allocation9], 0
      %s70 = sshll.u32 %s4, 4
      %s71 = int_to_ptr.hbm [resolvable:$true] %s70
      %s72 = sshll.u32 [#allocation10], 4
      %s73 = int_to_ptr.vmem [resolvable:$true] %s72
      %75 = dma.hbm_to_vmem [thread:$0]  %s71, 16, %s73, [#allocation9]
    $region21: #{tpu_custom_call.1} parent=1 // pred_fallthru
      _
    // Predicated region
    $region22: #{tpu_custom_call.1} parent=1 // pred_check
      _
    $region23: #{tpu_custom_call.1} parent=1 // pred_check_branch
      %77 = sbr.rel (0) target = $region25
    $region24: #{tpu_custom_call.1} parent=1 // pred_region
      %79 = vsyncadd [#allocation12], 0
      %s80 = sshll.u32 %s5, 4
      %s81 = int_to_ptr.hbm [resolvable:$true] %s80
      %s82 = sshll.u32 [#allocation11], 4
      %s83 = int_to_ptr.vmem [resolvable:$true] %s82
      %88 = dma.hbm_to_vmem [thread:$0]  %s81, 8192, %s83, [#allocation12], 64, 64, 4
    $region25: #{tpu_custom_call.1} parent=1 // pred_fallthru
      _
    // Predicated region
    $region26: #{tpu_custom_call.1} parent=1 // pred_check
      _
    $region27: #{tpu_custom_call.1} parent=1 // pred_check_branch
      %90 = sbr.rel (0) target = $region29
    $region28: #{tpu_custom_call.1} parent=1 // pred_region
      %92 = vsyncadd [#allocation12], 0
      %s94 = sshll.u32 %s6, 4
      %s95 = int_to_ptr.hbm [resolvable:$true] %s94
      %s96 = sshll.u32 [#allocation13], 4
      %s97 = int_to_ptr.vmem [resolvable:$true] %s96
      %99 = dma.hbm_to_vmem [thread:$0]  %s95, 16, %s97, [#allocation12]
    $region29: #{tpu_custom_call.1} parent=1 // pred_fallthru
      _
    // Predicated region
    $region30: #{tpu_custom_call.1} parent=1 // pred_check
      _
    $region31: #{tpu_custom_call.1} parent=1 // pred_check_branch
      %101 = sbr.rel (0) target = $region33
    $region32: #{tpu_custom_call.1} parent=1 // pred_region
      %103 = dma.done [#allocation3], 256
    $region33: #{tpu_custom_call.1} parent=1 // pred_fallthru
      _
    // Predicated region
    $region34: #{tpu_custom_call.1} parent=1 // pred_check
      _
    $region35: #{tpu_custom_call.1} parent=1 // pred_check_branch
      %105 = sbr.rel (0) target = $region37
    $region36: #{tpu_custom_call.1} parent=1 // pred_region
      %107 = dma.done [#allocation6], 65536
    $region37: #{tpu_custom_call.1} parent=1 // pred_fallthru
      _
    // Predicated region
    $region38: #{tpu_custom_call.1} parent=1 // pred_check
      _
    $region39: #{tpu_custom_call.1} parent=1 // pred_check_branch
      %109 = sbr.rel (0) target = $region41
    $region40: #{tpu_custom_call.1} parent=1 // pred_region
      %111 = dma.done [#allocation6], 256
    $region41: #{tpu_custom_call.1} parent=1 // pred_fallthru
      _
    // Predicated region
    $region42: #{tpu_custom_call.1} parent=1 // pred_check
      _
    $region43: #{tpu_custom_call.1} parent=1 // pred_check_branch
      %113 = sbr.rel (0) target = $region45
    $region44: #{tpu_custom_call.1} parent=1 // pred_region
      %115 = dma.done [#allocation9], 8192
    $region45: #{tpu_custom_call.1} parent=1 // pred_fallthru
      _
    // Predicated region
    $region46: #{tpu_custom_call.1} parent=1 // pred_check
      _
    $region47: #{tpu_custom_call.1} parent=1 // pred_check_branch
      %117 = sbr.rel (0) target = $region49
    $region48: #{tpu_custom_call.1} parent=1 // pred_region
      %119 = dma.done [#allocation9], 16
    $region49: #{tpu_custom_call.1} parent=1 // pred_fallthru
      _
    // Predicated region
    $region50: #{tpu_custom_call.1} parent=1 // pred_check
      _
    $region51: #{tpu_custom_call.1} parent=1 // pred_check_branch
      %121 = sbr.rel (0) target = $region53
    $region52: #{tpu_custom_call.1} parent=1 // pred_region
      %123 = dma.done [#allocation12], 8192
    $region53: #{tpu_custom_call.1} parent=1 // pred_fallthru
      _
    // Predicated region
    $region54: #{tpu_custom_call.1} parent=1 // pred_check
      _
    $region55: #{tpu_custom_call.1} parent=1 // pred_check_branch
      %125 = sbr.rel (0) target = $region57
    $region56: #{tpu_custom_call.1} parent=1 // pred_region
      %127 = dma.done [#allocation12], 16
    $region57: #{tpu_custom_call.1} parent=1 // pred_fallthru
      _
    %v128 = vld [vmem:[#allocation2] sm:$0xff]
    %v129 = vld [vmem:[#allocation2 + $0x8] sm:$0xff]
    %v130 = vld [vmem:[#allocation5] sm:$0xff]
    %v131 = vld [vmem:[#allocation5 + $0x8] sm:$0xff]
    %v132 = vld [vmem:[#allocation5 + $0x10] sm:$0xff]
    %v133 = vld [vmem:[#allocation5 + $0x18] sm:$0xff]
    %v134 = vld [vmem:[#allocation5 + $0x20] sm:$0xff]
    %v135 = vld [vmem:[#allocation5 + $0x28] sm:$0xff]
    %v136 = vld [vmem:[#allocation5 + $0x30] sm:$0xff]
    %v137 = vld [vmem:[#allocation5 + $0x38] sm:$0xff]
    %v138 = vld [vmem:[#allocation5 + $0x40] sm:$0xff]
    %v139 = vld [vmem:[#allocation5 + $0x48] sm:$0xff]
    %v140 = vld [vmem:[#allocation5 + $0x50] sm:$0xff]
    %v141 = vld [vmem:[#allocation5 + $0x58] sm:$0xff]
    %v142 = vld [vmem:[#allocation5 + $0x60] sm:$0xff]
    %v143 = vld [vmem:[#allocation5 + $0x68] sm:$0xff]
    %v144 = vld [vmem:[#allocation5 + $0x70] sm:$0xff]
    %v145 = vld [vmem:[#allocation5 + $0x78] sm:$0xff]
    %v146 = vld [vmem:[#allocation5 + $0x80] sm:$0xff]
    %v147 = vld [vmem:[#allocation5 + $0x88] sm:$0xff]
    %v148 = vld [vmem:[#allocation5 + $0x90] sm:$0xff]
    %v149 = vld [vmem:[#allocation5 + $0x98] sm:$0xff]
    %v150 = vld [vmem:[#allocation5 + $0xa0] sm:$0xff]
    %v151 = vld [vmem:[#allocation5 + $0xa8] sm:$0xff]
    %v152 = vld [vmem:[#allocation5 + $0xb0] sm:$0xff]
    %v153 = vld [vmem:[#allocation5 + $0xb8] sm:$0xff]
    %v154 = vld [vmem:[#allocation5 + $0xc0] sm:$0xff]
    %v155 = vld [vmem:[#allocation5 + $0xc8] sm:$0xff]
    %v156 = vld [vmem:[#allocation5 + $0xd0] sm:$0xff]
    %v157 = vld [vmem:[#allocation5 + $0xd8] sm:$0xff]
    %v158 = vld [vmem:[#allocation5 + $0xe0] sm:$0xff]
    %v159 = vld [vmem:[#allocation5 + $0xe8] sm:$0xff]
    %v160 = vld [vmem:[#allocation5 + $0xf0] sm:$0xff]
    %v161 = vld [vmem:[#allocation5 + $0xf8] sm:$0xff]
    %v162 = vld [vmem:[#allocation5 + $0x100] sm:$0xff]
    %v163 = vld [vmem:[#allocation5 + $0x108] sm:$0xff]
    %v164 = vld [vmem:[#allocation5 + $0x110] sm:$0xff]
    %v165 = vld [vmem:[#allocation5 + $0x118] sm:$0xff]
    %v166 = vld [vmem:[#allocation5 + $0x120] sm:$0xff]
    %v167 = vld [vmem:[#allocation5 + $0x128] sm:$0xff]
    %v168 = vld [vmem:[#allocation5 + $0x130] sm:$0xff]
    %v169 = vld [vmem:[#allocation5 + $0x138] sm:$0xff]
    %v170 = vld [vmem:[#allocation5 + $0x140] sm:$0xff]
    %v171 = vld [vmem:[#allocation5 + $0x148] sm:$0xff]
    %v172 = vld [vmem:[#allocation5 + $0x150] sm:$0xff]
    %v173 = vld [vmem:[#allocation5 + $0x158] sm:$0xff]
    %v174 = vld [vmem:[#allocation5 + $0x160] sm:$0xff]
    %v175 = vld [vmem:[#allocation5 + $0x168] sm:$0xff]
    %v176 = vld [vmem:[#allocation5 + $0x170] sm:$0xff]
    %v177 = vld [vmem:[#allocation5 + $0x178] sm:$0xff]
    %v178 = vld [vmem:[#allocation5 + $0x180] sm:$0xff]
    %v179 = vld [vmem:[#allocation5 + $0x188] sm:$0xff]
    %v180 = vld [vmem:[#allocation5 + $0x190] sm:$0xff]
    %v181 = vld [vmem:[#allocation5 + $0x198] sm:$0xff]
    %v182 = vld [vmem:[#allocation5 + $0x1a0] sm:$0xff]
    %v183 = vld [vmem:[#allocation5 + $0x1a8] sm:$0xff]
    %v184 = vld [vmem:[#allocation5 + $0x1b0] sm:$0xff]
    %v185 = vld [vmem:[#allocation5 + $0x1b8] sm:$0xff]
    %v186 = vld [vmem:[#allocation5 + $0x1c0] sm:$0xff]
    %v187 = vld [vmem:[#allocation5 + $0x1c8] sm:$0xff]
    %v188 = vld [vmem:[#allocation5 + $0x1d0] sm:$0xff]
    %v189 = vld [vmem:[#allocation5 + $0x1d8] sm:$0xff]
    %v190 = vld [vmem:[#allocation5 + $0x1e0] sm:$0xff]
    %v191 = vld [vmem:[#allocation5 + $0x1e8] sm:$0xff]
    %v192 = vld [vmem:[#allocation5 + $0x1f0] sm:$0xff]
    %v193 = vld [vmem:[#allocation5 + $0x1f8] sm:$0xff]
    %v194 = vld [vmem:[#allocation5 + $0x200] sm:$0xff]
    %v195 = vld [vmem:[#allocation5 + $0x208] sm:$0xff]
    %v196 = vld [vmem:[#allocation5 + $0x210] sm:$0xff]
    %v197 = vld [vmem:[#allocation5 + $0x218] sm:$0xff]
    %v198 = vld [vmem:[#allocation5 + $0x220] sm:$0xff]
    %v199 = vld [vmem:[#allocation5 + $0x228] sm:$0xff]
    %v200 = vld [vmem:[#allocation5 + $0x230] sm:$0xff]
    %v201 = vld [vmem:[#allocation5 + $0x238] sm:$0xff]
    %v202 = vld [vmem:[#allocation5 + $0x240] sm:$0xff]
    %v203 = vld [vmem:[#allocation5 + $0x248] sm:$0xff]
    %v204 = vld [vmem:[#allocation5 + $0x250] sm:$0xff]
    %v205 = vld [vmem:[#allocation5 + $0x258] sm:$0xff]
    %v206 = vld [vmem:[#allocation5 + $0x260] sm:$0xff]
    %v207 = vld [vmem:[#allocation5 + $0x268] sm:$0xff]
    %v208 = vld [vmem:[#allocation5 + $0x270] sm:$0xff]
    %v209 = vld [vmem:[#allocation5 + $0x278] sm:$0xff]
    %v210 = vld [vmem:[#allocation5 + $0x280] sm:$0xff]
    %v211 = vld [vmem:[#allocation5 + $0x288] sm:$0xff]
    %v212 = vld [vmem:[#allocation5 + $0x290] sm:$0xff]
    %v213 = vld [vmem:[#allocation5 + $0x298] sm:$0xff]
    %v214 = vld [vmem:[#allocation5 + $0x2a0] sm:$0xff]
    %v215 = vld [vmem:[#allocation5 + $0x2a8] sm:$0xff]
    %v216 = vld [vmem:[#allocation5 + $0x2b0] sm:$0xff]
    %v217 = vld [vmem:[#allocation5 + $0x2b8] sm:$0xff]
    %v218 = vld [vmem:[#allocation5 + $0x2c0] sm:$0xff]
    %v219 = vld [vmem:[#allocation5 + $0x2c8] sm:$0xff]
    %v220 = vld [vmem:[#allocation5 + $0x2d0] sm:$0xff]
    %v221 = vld [vmem:[#allocation5 + $0x2d8] sm:$0xff]
    %v222 = vld [vmem:[#allocation5 + $0x2e0] sm:$0xff]
    %v223 = vld [vmem:[#allocation5 + $0x2e8] sm:$0xff]
    %v224 = vld [vmem:[#allocation5 + $0x2f0] sm:$0xff]
    %v225 = vld [vmem:[#allocation5 + $0x2f8] sm:$0xff]
    %v226 = vld [vmem:[#allocation5 + $0x300] sm:$0xff]
    %v227 = vld [vmem:[#allocation5 + $0x308] sm:$0xff]
    %v228 = vld [vmem:[#allocation5 + $0x310] sm:$0xff]
    %v229 = vld [vmem:[#allocation5 + $0x318] sm:$0xff]
    %v230 = vld [vmem:[#allocation5 + $0x320] sm:$0xff]
    %v231 = vld [vmem:[#allocation5 + $0x328] sm:$0xff]
    %v232 = vld [vmem:[#allocation5 + $0x330] sm:$0xff]
    %v233 = vld [vmem:[#allocation5 + $0x338] sm:$0xff]
    %v234 = vld [vmem:[#allocation5 + $0x340] sm:$0xff]
    %v235 = vld [vmem:[#allocation5 + $0x348] sm:$0xff]
    %v236 = vld [vmem:[#allocation5 + $0x350] sm:$0xff]
    %v237 = vld [vmem:[#allocation5 + $0x358] sm:$0xff]
    %v238 = vld [vmem:[#allocation5 + $0x360] sm:$0xff]
    %v239 = vld [vmem:[#allocation5 + $0x368] sm:$0xff]
    %v240 = vld [vmem:[#allocation5 + $0x370] sm:$0xff]
    %v241 = vld [vmem:[#allocation5 + $0x378] sm:$0xff]
    %v242 = vld [vmem:[#allocation5 + $0x380] sm:$0xff]
    %v243 = vld [vmem:[#allocation5 + $0x388] sm:$0xff]
    %v244 = vld [vmem:[#allocation5 + $0x390] sm:$0xff]
    %v245 = vld [vmem:[#allocation5 + $0x398] sm:$0xff]
    %v246 = vld [vmem:[#allocation5 + $0x3a0] sm:$0xff]
    %v247 = vld [vmem:[#allocation5 + $0x3a8] sm:$0xff]
    %v248 = vld [vmem:[#allocation5 + $0x3b0] sm:$0xff]
    %v249 = vld [vmem:[#allocation5 + $0x3b8] sm:$0xff]
    %v250 = vld [vmem:[#allocation5 + $0x3c0] sm:$0xff]
    %v251 = vld [vmem:[#allocation5 + $0x3c8] sm:$0xff]
    %v252 = vld [vmem:[#allocation5 + $0x3d0] sm:$0xff]
    %v253 = vld [vmem:[#allocation5 + $0x3d8] sm:$0xff]
    %v254 = vld [vmem:[#allocation5 + $0x3e0] sm:$0xff]
    %v255 = vld [vmem:[#allocation5 + $0x3e8] sm:$0xff]
    %v256 = vld [vmem:[#allocation5 + $0x3f0] sm:$0xff]
    %v257 = vld [vmem:[#allocation5 + $0x3f8] sm:$0xff]
    %v258 = vld [vmem:[#allocation5 + $0x400] sm:$0xff]
    %v259 = vld [vmem:[#allocation5 + $0x408] sm:$0xff]
    %v260 = vld [vmem:[#allocation5 + $0x410] sm:$0xff]
    %v261 = vld [vmem:[#allocation5 + $0x418] sm:$0xff]
    %v262 = vld [vmem:[#allocation5 + $0x420] sm:$0xff]
    %v263 = vld [vmem:[#allocation5 + $0x428] sm:$0xff]
    %v264 = vld [vmem:[#allocation5 + $0x430] sm:$0xff]
    %v265 = vld [vmem:[#allocation5 + $0x438] sm:$0xff]
    %v266 = vld [vmem:[#allocation5 + $0x440] sm:$0xff]
    %v267 = vld [vmem:[#allocation5 + $0x448] sm:$0xff]
    %v268 = vld [vmem:[#allocation5 + $0x450] sm:$0xff]
    %v269 = vld [vmem:[#allocation5 + $0x458] sm:$0xff]
    %v270 = vld [vmem:[#allocation5 + $0x460] sm:$0xff]
    %v271 = vld [vmem:[#allocation5 + $0x468] sm:$0xff]
    %v272 = vld [vmem:[#allocation5 + $0x470] sm:$0xff]
    %v273 = vld [vmem:[#allocation5 + $0x478] sm:$0xff]
    %v274 = vld [vmem:[#allocation5 + $0x480] sm:$0xff]
    %v275 = vld [vmem:[#allocation5 + $0x488] sm:$0xff]
    %v276 = vld [vmem:[#allocation5 + $0x490] sm:$0xff]
    %v277 = vld [vmem:[#allocation5 + $0x498] sm:$0xff]
    %v278 = vld [vmem:[#allocation5 + $0x4a0] sm:$0xff]
    %v279 = vld [vmem:[#allocation5 + $0x4a8] sm:$0xff]
    %v280 = vld [vmem:[#allocation5 + $0x4b0] sm:$0xff]
    %v281 = vld [vmem:[#allocation5 + $0x4b8] sm:$0xff]
    %v282 = vld [vmem:[#allocation5 + $0x4c0] sm:$0xff]
    %v283 = vld [vmem:[#allocation5 + $0x4c8] sm:$0xff]
    %v284 = vld [vmem:[#allocation5 + $0x4d0] sm:$0xff]
    %v285 = vld [vmem:[#allocation5 + $0x4d8] sm:$0xff]
    %v286 = vld [vmem:[#allocation5 + $0x4e0] sm:$0xff]
    %v287 = vld [vmem:[#allocation5 + $0x4e8] sm:$0xff]
    %v288 = vld [vmem:[#allocation5 + $0x4f0] sm:$0xff]
    %v289 = vld [vmem:[#allocation5 + $0x4f8] sm:$0xff]
    %v290 = vld [vmem:[#allocation5 + $0x500] sm:$0xff]
    %v291 = vld [vmem:[#allocation5 + $0x508] sm:$0xff]
    %v292 = vld [vmem:[#allocation5 + $0x510] sm:$0xff]
    %v293 = vld [vmem:[#allocation5 + $0x518] sm:$0xff]
    %v294 = vld [vmem:[#allocation5 + $0x520] sm:$0xff]
    %v295 = vld [vmem:[#allocation5 + $0x528] sm:$0xff]
    %v296 = vld [vmem:[#allocation5 + $0x530] sm:$0xff]
    %v297 = vld [vmem:[#allocation5 + $0x538] sm:$0xff]
    %v298 = vld [vmem:[#allocation5 + $0x540] sm:$0xff]
    %v299 = vld [vmem:[#allocation5 + $0x548] sm:$0xff]
    %v300 = vld [vmem:[#allocation5 + $0x550] sm:$0xff]
    %v301 = vld [vmem:[#allocation5 + $0x558] sm:$0xff]
    %v302 = vld [vmem:[#allocation5 + $0x560] sm:$0xff]
    %v303 = vld [vmem:[#allocation5 + $0x568] sm:$0xff]
    %v304 = vld [vmem:[#allocation5 + $0x570] sm:$0xff]
    %v305 = vld [vmem:[#allocation5 + $0x578] sm:$0xff]
    %v306 = vld [vmem:[#allocation5 + $0x580] sm:$0xff]
    %v307 = vld [vmem:[#allocation5 + $0x588] sm:$0xff]
    %v308 = vld [vmem:[#allocation5 + $0x590] sm:$0xff]
    %v309 = vld [vmem:[#allocation5 + $0x598] sm:$0xff]
    %v310 = vld [vmem:[#allocation5 + $0x5a0] sm:$0xff]
    %v311 = vld [vmem:[#allocation5 + $0x5a8] sm:$0xff]
    %v312 = vld [vmem:[#allocation5 + $0x5b0] sm:$0xff]
    %v313 = vld [vmem:[#allocation5 + $0x5b8] sm:$0xff]
    %v314 = vld [vmem:[#allocation5 + $0x5c0] sm:$0xff]
    %v315 = vld [vmem:[#allocation5 + $0x5c8] sm:$0xff]
    %v316 = vld [vmem:[#allocation5 + $0x5d0] sm:$0xff]
    %v317 = vld [vmem:[#allocation5 + $0x5d8] sm:$0xff]
    %v318 = vld [vmem:[#allocation5 + $0x5e0] sm:$0xff]
    %v319 = vld [vmem:[#allocation5 + $0x5e8] sm:$0xff]
    %v320 = vld [vmem:[#allocation5 + $0x5f0] sm:$0xff]
    %v321 = vld [vmem:[#allocation5 + $0x5f8] sm:$0xff]
    %v322 = vld [vmem:[#allocation5 + $0x600] sm:$0xff]
    %v323 = vld [vmem:[#allocation5 + $0x608] sm:$0xff]
    %v324 = vld [vmem:[#allocation5 + $0x610] sm:$0xff]
    %v325 = vld [vmem:[#allocation5 + $0x618] sm:$0xff]
    %v326 = vld [vmem:[#allocation5 + $0x620] sm:$0xff]
    %v327 = vld [vmem:[#allocation5 + $0x628] sm:$0xff]
    %v328 = vld [vmem:[#allocation5 + $0x630] sm:$0xff]
    %v329 = vld [vmem:[#allocation5 + $0x638] sm:$0xff]
    %v330 = vld [vmem:[#allocation5 + $0x640] sm:$0xff]
    %v331 = vld [vmem:[#allocation5 + $0x648] sm:$0xff]
    %v332 = vld [vmem:[#allocation5 + $0x650] sm:$0xff]
    %v333 = vld [vmem:[#allocation5 + $0x658] sm:$0xff]
    %v334 = vld [vmem:[#allocation5 + $0x660] sm:$0xff]
    %v335 = vld [vmem:[#allocation5 + $0x668] sm:$0xff]
    %v336 = vld [vmem:[#allocation5 + $0x670] sm:$0xff]
    %v337 = vld [vmem:[#allocation5 + $0x678] sm:$0xff]
    %v338 = vld [vmem:[#allocation5 + $0x680] sm:$0xff]
    %v339 = vld [vmem:[#allocation5 + $0x688] sm:$0xff]
    %v340 = vld [vmem:[#allocation5 + $0x690] sm:$0xff]
    %v341 = vld [vmem:[#allocation5 + $0x698] sm:$0xff]
    %v342 = vld [vmem:[#allocation5 + $0x6a0] sm:$0xff]
    %v343 = vld [vmem:[#allocation5 + $0x6a8] sm:$0xff]
    %v344 = vld [vmem:[#allocation5 + $0x6b0] sm:$0xff]
    %v345 = vld [vmem:[#allocation5 + $0x6b8] sm:$0xff]
    %v346 = vld [vmem:[#allocation5 + $0x6c0] sm:$0xff]
    %v347 = vld [vmem:[#allocation5 + $0x6c8] sm:$0xff]
    %v348 = vld [vmem:[#allocation5 + $0x6d0] sm:$0xff]
    %v349 = vld [vmem:[#allocation5 + $0x6d8] sm:$0xff]
    %v350 = vld [vmem:[#allocation5 + $0x6e0] sm:$0xff]
    %v351 = vld [vmem:[#allocation5 + $0x6e8] sm:$0xff]
    %v352 = vld [vmem:[#allocation5 + $0x6f0] sm:$0xff]
    %v353 = vld [vmem:[#allocation5 + $0x6f8] sm:$0xff]
    %v354 = vld [vmem:[#allocation5 + $0x700] sm:$0xff]
    %v355 = vld [vmem:[#allocation5 + $0x708] sm:$0xff]
    %v356 = vld [vmem:[#allocation5 + $0x710] sm:$0xff]
    %v357 = vld [vmem:[#allocation5 + $0x718] sm:$0xff]
    %v358 = vld [vmem:[#allocation5 + $0x720] sm:$0xff]
    %v359 = vld [vmem:[#allocation5 + $0x728] sm:$0xff]
    %v360 = vld [vmem:[#allocation5 + $0x730] sm:$0xff]
    %v361 = vld [vmem:[#allocation5 + $0x738] sm:$0xff]
    %v362 = vld [vmem:[#allocation5 + $0x740] sm:$0xff]
    %v363 = vld [vmem:[#allocation5 + $0x748] sm:$0xff]
    %v364 = vld [vmem:[#allocation5 + $0x750] sm:$0xff]
    %v365 = vld [vmem:[#allocation5 + $0x758] sm:$0xff]
    %v366 = vld [vmem:[#allocation5 + $0x760] sm:$0xff]
    %v367 = vld [vmem:[#allocation5 + $0x768] sm:$0xff]
    %v368 = vld [vmem:[#allocation5 + $0x770] sm:$0xff]
    %v369 = vld [vmem:[#allocation5 + $0x778] sm:$0xff]
    %v370 = vld [vmem:[#allocation5 + $0x780] sm:$0xff]
    %v371 = vld [vmem:[#allocation5 + $0x788] sm:$0xff]
    %v372 = vld [vmem:[#allocation5 + $0x790] sm:$0xff]
    %v373 = vld [vmem:[#allocation5 + $0x798] sm:$0xff]
    %v374 = vld [vmem:[#allocation5 + $0x7a0] sm:$0xff]
    %v375 = vld [vmem:[#allocation5 + $0x7a8] sm:$0xff]
    %v376 = vld [vmem:[#allocation5 + $0x7b0] sm:$0xff]
    %v377 = vld [vmem:[#allocation5 + $0x7b8] sm:$0xff]
    %v378 = vld [vmem:[#allocation5 + $0x7c0] sm:$0xff]
    %v379 = vld [vmem:[#allocation5 + $0x7c8] sm:$0xff]
    %v380 = vld [vmem:[#allocation5 + $0x7d0] sm:$0xff]
    %v381 = vld [vmem:[#allocation5 + $0x7d8] sm:$0xff]
    %v382 = vld [vmem:[#allocation5 + $0x7e0] sm:$0xff]
    %v383 = vld [vmem:[#allocation5 + $0x7e8] sm:$0xff]
    %v384 = vld [vmem:[#allocation5 + $0x7f0] sm:$0xff]
    %v385 = vld [vmem:[#allocation5 + $0x7f8] sm:$0xff]
    %v386 = vld [vmem:[#allocation5 + $0x800] sm:$0xff]
    %v387 = vld [vmem:[#allocation5 + $0x808] sm:$0xff]
    %v388 = vld [vmem:[#allocation5 + $0x810] sm:$0xff]
    %v389 = vld [vmem:[#allocation5 + $0x818] sm:$0xff]
    %v390 = vld [vmem:[#allocation5 + $0x820] sm:$0xff]
    %v391 = vld [vmem:[#allocation5 + $0x828] sm:$0xff]
    %v392 = vld [vmem:[#allocation5 + $0x830] sm:$0xff]
    %v393 = vld [vmem:[#allocation5 + $0x838] sm:$0xff]
    %v394 = vld [vmem:[#allocation5 + $0x840] sm:$0xff]
    %v395 = vld [vmem:[#allocation5 + $0x848] sm:$0xff]
    %v396 = vld [vmem:[#allocation5 + $0x850] sm:$0xff]
    %v397 = vld [vmem:[#allocation5 + $0x858] sm:$0xff]
    %v398 = vld [vmem:[#allocation5 + $0x860] sm:$0xff]
    %v399 = vld [vmem:[#allocation5 + $0x868] sm:$0xff]
    %v400 = vld [vmem:[#allocation5 + $0x870] sm:$0xff]
    %v401 = vld [vmem:[#allocation5 + $0x878] sm:$0xff]
    %v402 = vld [vmem:[#allocation5 + $0x880] sm:$0xff]
    %v403 = vld [vmem:[#allocation5 + $0x888] sm:$0xff]
    %v404 = vld [vmem:[#allocation5 + $0x890] sm:$0xff]
    %v405 = vld [vmem:[#allocation5 + $0x898] sm:$0xff]
    %v406 = vld [vmem:[#allocation5 + $0x8a0] sm:$0xff]
    %v407 = vld [vmem:[#allocation5 + $0x8a8] sm:$0xff]
    %v408 = vld [vmem:[#allocation5 + $0x8b0] sm:$0xff]
    %v409 = vld [vmem:[#allocation5 + $0x8b8] sm:$0xff]
    %v410 = vld [vmem:[#allocation5 + $0x8c0] sm:$0xff]
    %v411 = vld [vmem:[#allocation5 + $0x8c8] sm:$0xff]
    %v412 = vld [vmem:[#allocation5 + $0x8d0] sm:$0xff]
    %v413 = vld [vmem:[#allocation5 + $0x8d8] sm:$0xff]
    %v414 = vld [vmem:[#allocation5 + $0x8e0] sm:$0xff]
    %v415 = vld [vmem:[#allocation5 + $0x8e8] sm:$0xff]
    %v416 = vld [vmem:[#allocation5 + $0x8f0] sm:$0xff]
    %v417 = vld [vmem:[#allocation5 + $0x8f8] sm:$0xff]
    %v418 = vld [vmem:[#allocation5 + $0x900] sm:$0xff]
    %v419 = vld [vmem:[#allocation5 + $0x908] sm:$0xff]
    %v420 = vld [vmem:[#allocation5 + $0x910] sm:$0xff]
    %v421 = vld [vmem:[#allocation5 + $0x918] sm:$0xff]
    %v422 = vld [vmem:[#allocation5 + $0x920] sm:$0xff]
    %v423 = vld [vmem:[#allocation5 + $0x928] sm:$0xff]
    %v424 = vld [vmem:[#allocation5 + $0x930] sm:$0xff]
    %v425 = vld [vmem:[#allocation5 + $0x938] sm:$0xff]
    %v426 = vld [vmem:[#allocation5 + $0x940] sm:$0xff]
    %v427 = vld [vmem:[#allocation5 + $0x948] sm:$0xff]
    %v428 = vld [vmem:[#allocation5 + $0x950] sm:$0xff]
    %v429 = vld [vmem:[#allocation5 + $0x958] sm:$0xff]
    %v430 = vld [vmem:[#allocation5 + $0x960] sm:$0xff]
    %v431 = vld [vmem:[#allocation5 + $0x968] sm:$0xff]
    %v432 = vld [vmem:[#allocation5 + $0x970] sm:$0xff]
    %v433 = vld [vmem:[#allocation5 + $0x978] sm:$0xff]
    %v434 = vld [vmem:[#allocation5 + $0x980] sm:$0xff]
    %v435 = vld [vmem:[#allocation5 + $0x988] sm:$0xff]
    %v436 = vld [vmem:[#allocation5 + $0x990] sm:$0xff]
    %v437 = vld [vmem:[#allocation5 + $0x998] sm:$0xff]
    %v438 = vld [vmem:[#allocation5 + $0x9a0] sm:$0xff]
    %v439 = vld [vmem:[#allocation5 + $0x9a8] sm:$0xff]
    %v440 = vld [vmem:[#allocation5 + $0x9b0] sm:$0xff]
    %v441 = vld [vmem:[#allocation5 + $0x9b8] sm:$0xff]
    %v442 = vld [vmem:[#allocation5 + $0x9c0] sm:$0xff]
    %v443 = vld [vmem:[#allocation5 + $0x9c8] sm:$0xff]
    %v444 = vld [vmem:[#allocation5 + $0x9d0] sm:$0xff]
    %v445 = vld [vmem:[#allocation5 + $0x9d8] sm:$0xff]
    %v446 = vld [vmem:[#allocation5 + $0x9e0] sm:$0xff]
    %v447 = vld [vmem:[#allocation5 + $0x9e8] sm:$0xff]
    %v448 = vld [vmem:[#allocation5 + $0x9f0] sm:$0xff]
    %v449 = vld [vmem:[#allocation5 + $0x9f8] sm:$0xff]
    %v450 = vld [vmem:[#allocation5 + $0xa00] sm:$0xff]
    %v451 = vld [vmem:[#allocation5 + $0xa08] sm:$0xff]
    %v452 = vld [vmem:[#allocation5 + $0xa10] sm:$0xff]
    %v453 = vld [vmem:[#allocation5 + $0xa18] sm:$0xff]
    %v454 = vld [vmem:[#allocation5 + $0xa20] sm:$0xff]
    %v455 = vld [vmem:[#allocation5 + $0xa28] sm:$0xff]
    %v456 = vld [vmem:[#allocation5 + $0xa30] sm:$0xff]
    %v457 = vld [vmem:[#allocation5 + $0xa38] sm:$0xff]
    %v458 = vld [vmem:[#allocation5 + $0xa40] sm:$0xff]
    %v459 = vld [vmem:[#allocation5 + $0xa48] sm:$0xff]
    %v460 = vld [vmem:[#allocation5 + $0xa50] sm:$0xff]
    %v461 = vld [vmem:[#allocation5 + $0xa58] sm:$0xff]
    %v462 = vld [vmem:[#allocation5 + $0xa60] sm:$0xff]
    %v463 = vld [vmem:[#allocation5 + $0xa68] sm:$0xff]
    %v464 = vld [vmem:[#allocation5 + $0xa70] sm:$0xff]
    %v465 = vld [vmem:[#allocation5 + $0xa78] sm:$0xff]
    %v466 = vld [vmem:[#allocation5 + $0xa80] sm:$0xff]
    %v467 = vld [vmem:[#allocation5 + $0xa88] sm:$0xff]
    %v468 = vld [vmem:[#allocation5 + $0xa90] sm:$0xff]
    %v469 = vld [vmem:[#allocation5 + $0xa98] sm:$0xff]
    %v470 = vld [vmem:[#allocation5 + $0xaa0] sm:$0xff]
    %v471 = vld [vmem:[#allocation5 + $0xaa8] sm:$0xff]
    %v472 = vld [vmem:[#allocation5 + $0xab0] sm:$0xff]
    %v473 = vld [vmem:[#allocation5 + $0xab8] sm:$0xff]
    %v474 = vld [vmem:[#allocation5 + $0xac0] sm:$0xff]
    %v475 = vld [vmem:[#allocation5 + $0xac8] sm:$0xff]
    %v476 = vld [vmem:[#allocation5 + $0xad0] sm:$0xff]
    %v477 = vld [vmem:[#allocation5 + $0xad8] sm:$0xff]
    %v478 = vld [vmem:[#allocation5 + $0xae0] sm:$0xff]
    %v479 = vld [vmem:[#allocation5 + $0xae8] sm:$0xff]
    %v480 = vld [vmem:[#allocation5 + $0xaf0] sm:$0xff]
    %v481 = vld [vmem:[#allocation5 + $0xaf8] sm:$0xff]
    %v482 = vld [vmem:[#allocation5 + $0xb00] sm:$0xff]
    %v483 = vld [vmem:[#allocation5 + $0xb08] sm:$0xff]
    %v484 = vld [vmem:[#allocation5 + $0xb10] sm:$0xff]
    %v485 = vld [vmem:[#allocation5 + $0xb18] sm:$0xff]
    %v486 = vld [vmem:[#allocation5 + $0xb20] sm:$0xff]
    %v487 = vld [vmem:[#allocation5 + $0xb28] sm:$0xff]
    %v488 = vld [vmem:[#allocation5 + $0xb30] sm:$0xff]
    %v489 = vld [vmem:[#allocation5 + $0xb38] sm:$0xff]
    %v490 = vld [vmem:[#allocation5 + $0xb40] sm:$0xff]
    %v491 = vld [vmem:[#allocation5 + $0xb48] sm:$0xff]
    %v492 = vld [vmem:[#allocation5 + $0xb50] sm:$0xff]
    %v493 = vld [vmem:[#allocation5 + $0xb58] sm:$0xff]
    %v494 = vld [vmem:[#allocation5 + $0xb60] sm:$0xff]
    %v495 = vld [vmem:[#allocation5 + $0xb68] sm:$0xff]
    %v496 = vld [vmem:[#allocation5 + $0xb70] sm:$0xff]
    %v497 = vld [vmem:[#allocation5 + $0xb78] sm:$0xff]
    %v498 = vld [vmem:[#allocation5 + $0xb80] sm:$0xff]
    %v499 = vld [vmem:[#allocation5 + $0xb88] sm:$0xff]
    %v500 = vld [vmem:[#allocation5 + $0xb90] sm:$0xff]
    %v501 = vld [vmem:[#allocation5 + $0xb98] sm:$0xff]
    %v502 = vld [vmem:[#allocation5 + $0xba0] sm:$0xff]
    %v503 = vld [vmem:[#allocation5 + $0xba8] sm:$0xff]
    %v504 = vld [vmem:[#allocation5 + $0xbb0] sm:$0xff]
    %v505 = vld [vmem:[#allocation5 + $0xbb8] sm:$0xff]
    %v506 = vld [vmem:[#allocation5 + $0xbc0] sm:$0xff]
    %v507 = vld [vmem:[#allocation5 + $0xbc8] sm:$0xff]
    %v508 = vld [vmem:[#allocation5 + $0xbd0] sm:$0xff]
    %v509 = vld [vmem:[#allocation5 + $0xbd8] sm:$0xff]
    %v510 = vld [vmem:[#allocation5 + $0xbe0] sm:$0xff]
    %v511 = vld [vmem:[#allocation5 + $0xbe8] sm:$0xff]
    %v512 = vld [vmem:[#allocation5 + $0xbf0] sm:$0xff]
    %v513 = vld [vmem:[#allocation5 + $0xbf8] sm:$0xff]
    %v514 = vld [vmem:[#allocation5 + $0xc00] sm:$0xff]
    %v515 = vld [vmem:[#allocation5 + $0xc08] sm:$0xff]
    %v516 = vld [vmem:[#allocation5 + $0xc10] sm:$0xff]
    %v517 = vld [vmem:[#allocation5 + $0xc18] sm:$0xff]
    %v518 = vld [vmem:[#allocation5 + $0xc20] sm:$0xff]
    %v519 = vld [vmem:[#allocation5 + $0xc28] sm:$0xff]
    %v520 = vld [vmem:[#allocation5 + $0xc30] sm:$0xff]
    %v521 = vld [vmem:[#allocation5 + $0xc38] sm:$0xff]
    %v522 = vld [vmem:[#allocation5 + $0xc40] sm:$0xff]
    %v523 = vld [vmem:[#allocation5 + $0xc48] sm:$0xff]
    %v524 = vld [vmem:[#allocation5 + $0xc50] sm:$0xff]
    %v525 = vld [vmem:[#allocation5 + $0xc58] sm:$0xff]
    %v526 = vld [vmem:[#allocation5 + $0xc60] sm:$0xff]
    %v527 = vld [vmem:[#allocation5 + $0xc68] sm:$0xff]
    %v528 = vld [vmem:[#allocation5 + $0xc70] sm:$0xff]
    %v529 = vld [vmem:[#allocation5 + $0xc78] sm:$0xff]
    %v530 = vld [vmem:[#allocation5 + $0xc80] sm:$0xff]
    %v531 = vld [vmem:[#allocation5 + $0xc88] sm:$0xff]
    %v532 = vld [vmem:[#allocation5 + $0xc90] sm:$0xff]
    %v533 = vld [vmem:[#allocation5 + $0xc98] sm:$0xff]
    %v534 = vld [vmem:[#allocation5 + $0xca0] sm:$0xff]
    %v535 = vld [vmem:[#allocation5 + $0xca8] sm:$0xff]
    %v536 = vld [vmem:[#allocation5 + $0xcb0] sm:$0xff]
    %v537 = vld [vmem:[#allocation5 + $0xcb8] sm:$0xff]
    %v538 = vld [vmem:[#allocation5 + $0xcc0] sm:$0xff]
    %v539 = vld [vmem:[#allocation5 + $0xcc8] sm:$0xff]
    %v540 = vld [vmem:[#allocation5 + $0xcd0] sm:$0xff]
    %v541 = vld [vmem:[#allocation5 + $0xcd8] sm:$0xff]
    %v542 = vld [vmem:[#allocation5 + $0xce0] sm:$0xff]
    %v543 = vld [vmem:[#allocation5 + $0xce8] sm:$0xff]
    %v544 = vld [vmem:[#allocation5 + $0xcf0] sm:$0xff]
    %v545 = vld [vmem:[#allocation5 + $0xcf8] sm:$0xff]
    %v546 = vld [vmem:[#allocation5 + $0xd00] sm:$0xff]
    %v547 = vld [vmem:[#allocation5 + $0xd08] sm:$0xff]
    %v548 = vld [vmem:[#allocation5 + $0xd10] sm:$0xff]
    %v549 = vld [vmem:[#allocation5 + $0xd18] sm:$0xff]
    %v550 = vld [vmem:[#allocation5 + $0xd20] sm:$0xff]
    %v551 = vld [vmem:[#allocation5 + $0xd28] sm:$0xff]
    %v552 = vld [vmem:[#allocation5 + $0xd30] sm:$0xff]
    %v553 = vld [vmem:[#allocation5 + $0xd38] sm:$0xff]
    %v554 = vld [vmem:[#allocation5 + $0xd40] sm:$0xff]
    %v555 = vld [vmem:[#allocation5 + $0xd48] sm:$0xff]
    %v556 = vld [vmem:[#allocation5 + $0xd50] sm:$0xff]
    %v557 = vld [vmem:[#allocation5 + $0xd58] sm:$0xff]
    %v558 = vld [vmem:[#allocation5 + $0xd60] sm:$0xff]
    %v559 = vld [vmem:[#allocation5 + $0xd68] sm:$0xff]
    %v560 = vld [vmem:[#allocation5 + $0xd70] sm:$0xff]
    %v561 = vld [vmem:[#allocation5 + $0xd78] sm:$0xff]
    %v562 = vld [vmem:[#allocation5 + $0xd80] sm:$0xff]
    %v563 = vld [vmem:[#allocation5 + $0xd88] sm:$0xff]
    %v564 = vld [vmem:[#allocation5 + $0xd90] sm:$0xff]
    %v565 = vld [vmem:[#allocation5 + $0xd98] sm:$0xff]
    %v566 = vld [vmem:[#allocation5 + $0xda0] sm:$0xff]
    %v567 = vld [vmem:[#allocation5 + $0xda8] sm:$0xff]
    %v568 = vld [vmem:[#allocation5 + $0xdb0] sm:$0xff]
    %v569 = vld [vmem:[#allocation5 + $0xdb8] sm:$0xff]
    %v570 = vld [vmem:[#allocation5 + $0xdc0] sm:$0xff]
    %v571 = vld [vmem:[#allocation5 + $0xdc8] sm:$0xff]
    %v572 = vld [vmem:[#allocation5 + $0xdd0] sm:$0xff]
    %v573 = vld [vmem:[#allocation5 + $0xdd8] sm:$0xff]
    %v574 = vld [vmem:[#allocation5 + $0xde0] sm:$0xff]
    %v575 = vld [vmem:[#allocation5 + $0xde8] sm:$0xff]
    %v576 = vld [vmem:[#allocation5 + $0xdf0] sm:$0xff]
    %v577 = vld [vmem:[#allocation5 + $0xdf8] sm:$0xff]
    %v578 = vld [vmem:[#allocation5 + $0xe00] sm:$0xff]
    %v579 = vld [vmem:[#allocation5 + $0xe08] sm:$0xff]
    %v580 = vld [vmem:[#allocation5 + $0xe10] sm:$0xff]
    %v581 = vld [vmem:[#allocation5 + $0xe18] sm:$0xff]
    %v582 = vld [vmem:[#allocation5 + $0xe20] sm:$0xff]
    %v583 = vld [vmem:[#allocation5 + $0xe28] sm:$0xff]
    %v584 = vld [vmem:[#allocation5 + $0xe30] sm:$0xff]
    %v585 = vld [vmem:[#allocation5 + $0xe38] sm:$0xff]
    %v586 = vld [vmem:[#allocation5 + $0xe40] sm:$0xff]
    %v587 = vld [vmem:[#allocation5 + $0xe48] sm:$0xff]
    %v588 = vld [vmem:[#allocation5 + $0xe50] sm:$0xff]
    %v589 = vld [vmem:[#allocation5 + $0xe58] sm:$0xff]
    %v590 = vld [vmem:[#allocation5 + $0xe60] sm:$0xff]
    %v591 = vld [vmem:[#allocation5 + $0xe68] sm:$0xff]
    %v592 = vld [vmem:[#allocation5 + $0xe70] sm:$0xff]
    %v593 = vld [vmem:[#allocation5 + $0xe78] sm:$0xff]
    %v594 = vld [vmem:[#allocation5 + $0xe80] sm:$0xff]
    %v595 = vld [vmem:[#allocation5 + $0xe88] sm:$0xff]
    %v596 = vld [vmem:[#allocation5 + $0xe90] sm:$0xff]
    %v597 = vld [vmem:[#allocation5 + $0xe98] sm:$0xff]
    %v598 = vld [vmem:[#allocation5 + $0xea0] sm:$0xff]
    %v599 = vld [vmem:[#allocation5 + $0xea8] sm:$0xff]
    %v600 = vld [vmem:[#allocation5 + $0xeb0] sm:$0xff]
    %v601 = vld [vmem:[#allocation5 + $0xeb8] sm:$0xff]
    %v602 = vld [vmem:[#allocation5 + $0xec0] sm:$0xff]
    %v603 = vld [vmem:[#allocation5 + $0xec8] sm:$0xff]
    %v604 = vld [vmem:[#allocation5 + $0xed0] sm:$0xff]
    %v605 = vld [vmem:[#allocation5 + $0xed8] sm:$0xff]
    %v606 = vld [vmem:[#allocation5 + $0xee0] sm:$0xff]
    %v607 = vld [vmem:[#allocation5 + $0xee8] sm:$0xff]
    %v608 = vld [vmem:[#allocation5 + $0xef0] sm:$0xff]
    %v609 = vld [vmem:[#allocation5 + $0xef8] sm:$0xff]
    %v610 = vld [vmem:[#allocation5 + $0xf00] sm:$0xff]
    %v611 = vld [vmem:[#allocation5 + $0xf08] sm:$0xff]
    %v612 = vld [vmem:[#allocation5 + $0xf10] sm:$0xff]
    %v613 = vld [vmem:[#allocation5 + $0xf18] sm:$0xff]
    %v614 = vld [vmem:[#allocation5 + $0xf20] sm:$0xff]
    %v615 = vld [vmem:[#allocation5 + $0xf28] sm:$0xff]
    %v616 = vld [vmem:[#allocation5 + $0xf30] sm:$0xff]
    %v617 = vld [vmem:[#allocation5 + $0xf38] sm:$0xff]
    %v618 = vld [vmem:[#allocation5 + $0xf40] sm:$0xff]
    %v619 = vld [vmem:[#allocation5 + $0xf48] sm:$0xff]
    %v620 = vld [vmem:[#allocation5 + $0xf50] sm:$0xff]
    %v621 = vld [vmem:[#allocation5 + $0xf58] sm:$0xff]
    %v622 = vld [vmem:[#allocation5 + $0xf60] sm:$0xff]
    %v623 = vld [vmem:[#allocation5 + $0xf68] sm:$0xff]
    %v624 = vld [vmem:[#allocation5 + $0xf70] sm:$0xff]
    %v625 = vld [vmem:[#allocation5 + $0xf78] sm:$0xff]
    %v626 = vld [vmem:[#allocation5 + $0xf80] sm:$0xff]
    %v627 = vld [vmem:[#allocation5 + $0xf88] sm:$0xff]
    %v628 = vld [vmem:[#allocation5 + $0xf90] sm:$0xff]
    %v629 = vld [vmem:[#allocation5 + $0xf98] sm:$0xff]
    %v630 = vld [vmem:[#allocation5 + $0xfa0] sm:$0xff]
    %v631 = vld [vmem:[#allocation5 + $0xfa8] sm:$0xff]
    %v632 = vld [vmem:[#allocation5 + $0xfb0] sm:$0xff]
    %v633 = vld [vmem:[#allocation5 + $0xfb8] sm:$0xff]
    %v634 = vld [vmem:[#allocation5 + $0xfc0] sm:$0xff]
    %v635 = vld [vmem:[#allocation5 + $0xfc8] sm:$0xff]
    %v636 = vld [vmem:[#allocation5 + $0xfd0] sm:$0xff]
    %v637 = vld [vmem:[#allocation5 + $0xfd8] sm:$0xff]
    %v638 = vld [vmem:[#allocation5 + $0xfe0] sm:$0xff]
    %v639 = vld [vmem:[#allocation5 + $0xfe8] sm:$0xff]
    %v640 = vld [vmem:[#allocation5 + $0xff0] sm:$0xff]
    %v641 = vld [vmem:[#allocation5 + $0xff8] sm:$0xff]
    %v642 = vld [vmem:[#allocation7] sm:$0xff]
    %v643 = vld [vmem:[#allocation7 + $0x8] sm:$0xff]
    %v646 = vperm.slane %v642, 0
    %v647 = vperm.slane %v642, 1
    %v648 = vperm.slane %v642, 2
    %v649 = vperm.slane %v642, 3
    %v650 = vperm.slane %v642, 4
    %v651 = vperm.slane %v642, 5
    %v652 = vperm.slane %v642, 6
    %v653 = vperm.slane %v642, 7
    %v654 = vperm.slane %v643, 0
    %v655 = vperm.slane %v643, 1
    %v656 = vperm.slane %v643, 2
    %v657 = vperm.slane %v643, 3
    %v658 = vperm.slane %v643, 4
    %v659 = vperm.slane %v643, 5
    %v660 = vperm.slane %v643, 6
    %v661 = vperm.slane %v643, 7
    %v680 = vunpack.c.l.b16 %v128
    %v681 = vunpack.c.h.b16 %v128
    %v682 = vunpack.c.l.b16 %v129
    %v683 = vunpack.c.h.b16 %v129
    %v684 = vpack.c.b16 %v680, %v680
    %v685 = vpack.c.b16 %v681, %v681
    %v686 = vpack.c.b16 %v682, %v682
    %v687 = vpack.c.b16 %v683, %v683
    %v1204 = vunpack.c.l.b16 %v130
    %v1205 = vunpack.c.h.b16 %v130
    %v1206 = vunpack.c.l.b16 %v131
    %v1207 = vunpack.c.h.b16 %v131
    %v1208 = vunpack.c.l.b16 %v132
    %v1209 = vunpack.c.h.b16 %v132
    %v1210 = vunpack.c.l.b16 %v133
    %v1211 = vunpack.c.h.b16 %v133
    %v1212 = vunpack.c.l.b16 %v134
    %v1213 = vunpack.c.h.b16 %v134
    %v1214 = vunpack.c.l.b16 %v135
    %v1215 = vunpack.c.h.b16 %v135
    %v1216 = vunpack.c.l.b16 %v136
    %v1217 = vunpack.c.h.b16 %v136
    %v1218 = vunpack.c.l.b16 %v137
    %v1219 = vunpack.c.h.b16 %v137
    %v1220 = vunpack.c.l.b16 %v138
    %v1221 = vunpack.c.h.b16 %v138
    %v1222 = vunpack.c.l.b16 %v139
    %v1223 = vunpack.c.h.b16 %v139
    %v1224 = vunpack.c.l.b16 %v140
    %v1225 = vunpack.c.h.b16 %v140
    %v1226 = vunpack.c.l.b16 %v141
    %v1227 = vunpack.c.h.b16 %v141
    %v1228 = vunpack.c.l.b16 %v142
    %v1229 = vunpack.c.h.b16 %v142
    %v1230 = vunpack.c.l.b16 %v143
    %v1231 = vunpack.c.h.b16 %v143
    %v1232 = vunpack.c.l.b16 %v144
    %v1233 = vunpack.c.h.b16 %v144
    %v1234 = vunpack.c.l.b16 %v145
    %v1235 = vunpack.c.h.b16 %v145
    %v1236 = vunpack.c.l.b16 %v146
    %v1237 = vunpack.c.h.b16 %v146
    %v1238 = vunpack.c.l.b16 %v147
    %v1239 = vunpack.c.h.b16 %v147
    %v1240 = vunpack.c.l.b16 %v148
    %v1241 = vunpack.c.h.b16 %v148
    %v1242 = vunpack.c.l.b16 %v149
    %v1243 = vunpack.c.h.b16 %v149
    %v1244 = vunpack.c.l.b16 %v150
    %v1245 = vunpack.c.h.b16 %v150
    %v1246 = vunpack.c.l.b16 %v151
    %v1247 = vunpack.c.h.b16 %v151
    %v1248 = vunpack.c.l.b16 %v152
    %v1249 = vunpack.c.h.b16 %v152
    %v1250 = vunpack.c.l.b16 %v153
    %v1251 = vunpack.c.h.b16 %v153
    %v1252 = vunpack.c.l.b16 %v154
    %v1253 = vunpack.c.h.b16 %v154
    %v1254 = vunpack.c.l.b16 %v155
    %v1255 = vunpack.c.h.b16 %v155
    %v1256 = vunpack.c.l.b16 %v156
    %v1257 = vunpack.c.h.b16 %v156
    %v1258 = vunpack.c.l.b16 %v157
    %v1259 = vunpack.c.h.b16 %v157
    %v1260 = vunpack.c.l.b16 %v158
    %v1261 = vunpack.c.h.b16 %v158
    %v1262 = vunpack.c.l.b16 %v159
    %v1263 = vunpack.c.h.b16 %v159
    %v1264 = vunpack.c.l.b16 %v160
    %v1265 = vunpack.c.h.b16 %v160
    %v1266 = vunpack.c.l.b16 %v161
    %v1267 = vunpack.c.h.b16 %v161
    %v1268 = vunpack.c.l.b16 %v162
    %v1269 = vunpack.c.h.b16 %v162
    %v1270 = vunpack.c.l.b16 %v163
    %v1271 = vunpack.c.h.b16 %v163
    %v1272 = vunpack.c.l.b16 %v164
    %v1273 = vunpack.c.h.b16 %v164
    %v1274 = vunpack.c.l.b16 %v165
    %v1275 = vunpack.c.h.b16 %v165
    %v1276 = vunpack.c.l.b16 %v166
    %v1277 = vunpack.c.h.b16 %v166
    %v1278 = vunpack.c.l.b16 %v167
    %v1279 = vunpack.c.h.b16 %v167
    %v1280 = vunpack.c.l.b16 %v168
    %v1281 = vunpack.c.h.b16 %v168
    %v1282 = vunpack.c.l.b16 %v169
    %v1283 = vunpack.c.h.b16 %v169
    %v1284 = vunpack.c.l.b16 %v170
    %v1285 = vunpack.c.h.b16 %v170
    %v1286 = vunpack.c.l.b16 %v171
    %v1287 = vunpack.c.h.b16 %v171
    %v1288 = vunpack.c.l.b16 %v172
    %v1289 = vunpack.c.h.b16 %v172
    %v1290 = vunpack.c.l.b16 %v173
    %v1291 = vunpack.c.h.b16 %v173
    %v1292 = vunpack.c.l.b16 %v174
    %v1293 = vunpack.c.h.b16 %v174
    %v1294 = vunpack.c.l.b16 %v175
    %v1295 = vunpack.c.h.b16 %v175
    %v1296 = vunpack.c.l.b16 %v176
    %v1297 = vunpack.c.h.b16 %v176
    %v1298 = vunpack.c.l.b16 %v177
    %v1299 = vunpack.c.h.b16 %v177
    %v1300 = vunpack.c.l.b16 %v178
    %v1301 = vunpack.c.h.b16 %v178
    %v1302 = vunpack.c.l.b16 %v179
    %v1303 = vunpack.c.h.b16 %v179
    %v1304 = vunpack.c.l.b16 %v180
    %v1305 = vunpack.c.h.b16 %v180
    %v1306 = vunpack.c.l.b16 %v181
    %v1307 = vunpack.c.h.b16 %v181
    %v1308 = vunpack.c.l.b16 %v182
    %v1309 = vunpack.c.h.b16 %v182
    %v1310 = vunpack.c.l.b16 %v183
    %v1311 = vunpack.c.h.b16 %v183
    %v1312 = vunpack.c.l.b16 %v184
    %v1313 = vunpack.c.h.b16 %v184
    %v1314 = vunpack.c.l.b16 %v185
    %v1315 = vunpack.c.h.b16 %v185
    %v1316 = vunpack.c.l.b16 %v186
    %v1317 = vunpack.c.h.b16 %v186
    %v1318 = vunpack.c.l.b16 %v187
    %v1319 = vunpack.c.h.b16 %v187
    %v1320 = vunpack.c.l.b16 %v188
    %v1321 = vunpack.c.h.b16 %v188
    %v1322 = vunpack.c.l.b16 %v189
    %v1323 = vunpack.c.h.b16 %v189
    %v1324 = vunpack.c.l.b16 %v190
    %v1325 = vunpack.c.h.b16 %v190
    %v1326 = vunpack.c.l.b16 %v191
    %v1327 = vunpack.c.h.b16 %v191
    %v1328 = vunpack.c.l.b16 %v192
    %v1329 = vunpack.c.h.b16 %v192
    %v1330 = vunpack.c.l.b16 %v193
    %v1331 = vunpack.c.h.b16 %v193
    %v1332 = vunpack.c.l.b16 %v194
    %v1333 = vunpack.c.h.b16 %v194
    %v1334 = vunpack.c.l.b16 %v195
    %v1335 = vunpack.c.h.b16 %v195
    %v1336 = vunpack.c.l.b16 %v196
    %v1337 = vunpack.c.h.b16 %v196
    %v1338 = vunpack.c.l.b16 %v197
    %v1339 = vunpack.c.h.b16 %v197
    %v1340 = vunpack.c.l.b16 %v198
    %v1341 = vunpack.c.h.b16 %v198
    %v1342 = vunpack.c.l.b16 %v199
    %v1343 = vunpack.c.h.b16 %v199
    %v1344 = vunpack.c.l.b16 %v200
    %v1345 = vunpack.c.h.b16 %v200
    %v1346 = vunpack.c.l.b16 %v201
    %v1347 = vunpack.c.h.b16 %v201
    %v1348 = vunpack.c.l.b16 %v202
    %v1349 = vunpack.c.h.b16 %v202
    %v1350 = vunpack.c.l.b16 %v203
    %v1351 = vunpack.c.h.b16 %v203
    %v1352 = vunpack.c.l.b16 %v204
    %v1353 = vunpack.c.h.b16 %v204
    %v1354 = vunpack.c.l.b16 %v205
    %v1355 = vunpack.c.h.b16 %v205
    %v1356 = vunpack.c.l.b16 %v206
    %v1357 = vunpack.c.h.b16 %v206
    %v1358 = vunpack.c.l.b16 %v207
    %v1359 = vunpack.c.h.b16 %v207
    %v1360 = vunpack.c.l.b16 %v208
    %v1361 = vunpack.c.h.b16 %v208
    %v1362 = vunpack.c.l.b16 %v209
    %v1363 = vunpack.c.h.b16 %v209
    %v1364 = vunpack.c.l.b16 %v210
    %v1365 = vunpack.c.h.b16 %v210
    %v1366 = vunpack.c.l.b16 %v211
    %v1367 = vunpack.c.h.b16 %v211
    %v1368 = vunpack.c.l.b16 %v212
    %v1369 = vunpack.c.h.b16 %v212
    %v1370 = vunpack.c.l.b16 %v213
    %v1371 = vunpack.c.h.b16 %v213
    %v1372 = vunpack.c.l.b16 %v214
    %v1373 = vunpack.c.h.b16 %v214
    %v1374 = vunpack.c.l.b16 %v215
    %v1375 = vunpack.c.h.b16 %v215
    %v1376 = vunpack.c.l.b16 %v216
    %v1377 = vunpack.c.h.b16 %v216
    %v1378 = vunpack.c.l.b16 %v217
    %v1379 = vunpack.c.h.b16 %v217
    %v1380 = vunpack.c.l.b16 %v218
    %v1381 = vunpack.c.h.b16 %v218
    %v1382 = vunpack.c.l.b16 %v219
    %v1383 = vunpack.c.h.b16 %v219
    %v1384 = vunpack.c.l.b16 %v220
    %v1385 = vunpack.c.h.b16 %v220
    %v1386 = vunpack.c.l.b16 %v221
    %v1387 = vunpack.c.h.b16 %v221
    %v1388 = vunpack.c.l.b16 %v222
    %v1389 = vunpack.c.h.b16 %v222
    %v1390 = vunpack.c.l.b16 %v223
    %v1391 = vunpack.c.h.b16 %v223
    %v1392 = vunpack.c.l.b16 %v224
    %v1393 = vunpack.c.h.b16 %v224
    %v1394 = vunpack.c.l.b16 %v225
    %v1395 = vunpack.c.h.b16 %v225
    %v1396 = vunpack.c.l.b16 %v226
    %v1397 = vunpack.c.h.b16 %v226
    %v1398 = vunpack.c.l.b16 %v227
    %v1399 = vunpack.c.h.b16 %v227
    %v1400 = vunpack.c.l.b16 %v228
    %v1401 = vunpack.c.h.b16 %v228
    %v1402 = vunpack.c.l.b16 %v229
    %v1403 = vunpack.c.h.b16 %v229
    %v1404 = vunpack.c.l.b16 %v230
    %v1405 = vunpack.c.h.b16 %v230
    %v1406 = vunpack.c.l.b16 %v231
    %v1407 = vunpack.c.h.b16 %v231
    %v1408 = vunpack.c.l.b16 %v232
    %v1409 = vunpack.c.h.b16 %v232
    %v1410 = vunpack.c.l.b16 %v233
    %v1411 = vunpack.c.h.b16 %v233
    %v1412 = vunpack.c.l.b16 %v234
    %v1413 = vunpack.c.h.b16 %v234
    %v1414 = vunpack.c.l.b16 %v235
    %v1415 = vunpack.c.h.b16 %v235
    %v1416 = vunpack.c.l.b16 %v236
    %v1417 = vunpack.c.h.b16 %v236
    %v1418 = vunpack.c.l.b16 %v237
    %v1419 = vunpack.c.h.b16 %v237
    %v1420 = vunpack.c.l.b16 %v238
    %v1421 = vunpack.c.h.b16 %v238
    %v1422 = vunpack.c.l.b16 %v239
    %v1423 = vunpack.c.h.b16 %v239
    %v1424 = vunpack.c.l.b16 %v240
    %v1425 = vunpack.c.h.b16 %v240
    %v1426 = vunpack.c.l.b16 %v241
    %v1427 = vunpack.c.h.b16 %v241
    %v1428 = vunpack.c.l.b16 %v242
    %v1429 = vunpack.c.h.b16 %v242
    %v1430 = vunpack.c.l.b16 %v243
    %v1431 = vunpack.c.h.b16 %v243
    %v1432 = vunpack.c.l.b16 %v244
    %v1433 = vunpack.c.h.b16 %v244
    %v1434 = vunpack.c.l.b16 %v245
    %v1435 = vunpack.c.h.b16 %v245
    %v1436 = vunpack.c.l.b16 %v246
    %v1437 = vunpack.c.h.b16 %v246
    %v1438 = vunpack.c.l.b16 %v247
    %v1439 = vunpack.c.h.b16 %v247
    %v1440 = vunpack.c.l.b16 %v248
    %v1441 = vunpack.c.h.b16 %v248
    %v1442 = vunpack.c.l.b16 %v249
    %v1443 = vunpack.c.h.b16 %v249
    %v1444 = vunpack.c.l.b16 %v250
    %v1445 = vunpack.c.h.b16 %v250
    %v1446 = vunpack.c.l.b16 %v251
    %v1447 = vunpack.c.h.b16 %v251
    %v1448 = vunpack.c.l.b16 %v252
    %v1449 = vunpack.c.h.b16 %v252
    %v1450 = vunpack.c.l.b16 %v253
    %v1451 = vunpack.c.h.b16 %v253
    %v1452 = vunpack.c.l.b16 %v254
    %v1453 = vunpack.c.h.b16 %v254
    %v1454 = vunpack.c.l.b16 %v255
    %v1455 = vunpack.c.h.b16 %v255
    %v1456 = vunpack.c.l.b16 %v256
    %v1457 = vunpack.c.h.b16 %v256
    %v1458 = vunpack.c.l.b16 %v257
    %v1459 = vunpack.c.h.b16 %v257
    %v1460 = vunpack.c.l.b16 %v258
    %v1461 = vunpack.c.h.b16 %v258
    %v1462 = vunpack.c.l.b16 %v259
    %v1463 = vunpack.c.h.b16 %v259
    %v1464 = vunpack.c.l.b16 %v260
    %v1465 = vunpack.c.h.b16 %v260
    %v1466 = vunpack.c.l.b16 %v261
    %v1467 = vunpack.c.h.b16 %v261
    %v1468 = vunpack.c.l.b16 %v262
    %v1469 = vunpack.c.h.b16 %v262
    %v1470 = vunpack.c.l.b16 %v263
    %v1471 = vunpack.c.h.b16 %v263
    %v1472 = vunpack.c.l.b16 %v264
    %v1473 = vunpack.c.h.b16 %v264
    %v1474 = vunpack.c.l.b16 %v265
    %v1475 = vunpack.c.h.b16 %v265
    %v1476 = vunpack.c.l.b16 %v266
    %v1477 = vunpack.c.h.b16 %v266
    %v1478 = vunpack.c.l.b16 %v267
    %v1479 = vunpack.c.h.b16 %v267
    %v1480 = vunpack.c.l.b16 %v268
    %v1481 = vunpack.c.h.b16 %v268
    %v1482 = vunpack.c.l.b16 %v269
    %v1483 = vunpack.c.h.b16 %v269
    %v1484 = vunpack.c.l.b16 %v270
    %v1485 = vunpack.c.h.b16 %v270
    %v1486 = vunpack.c.l.b16 %v271
    %v1487 = vunpack.c.h.b16 %v271
    %v1488 = vunpack.c.l.b16 %v272
    %v1489 = vunpack.c.h.b16 %v272
    %v1490 = vunpack.c.l.b16 %v273
    %v1491 = vunpack.c.h.b16 %v273
    %v1492 = vunpack.c.l.b16 %v274
    %v1493 = vunpack.c.h.b16 %v274
    %v1494 = vunpack.c.l.b16 %v275
    %v1495 = vunpack.c.h.b16 %v275
    %v1496 = vunpack.c.l.b16 %v276
    %v1497 = vunpack.c.h.b16 %v276
    %v1498 = vunpack.c.l.b16 %v277
    %v1499 = vunpack.c.h.b16 %v277
    %v1500 = vunpack.c.l.b16 %v278
    %v1501 = vunpack.c.h.b16 %v278
    %v1502 = vunpack.c.l.b16 %v279
    %v1503 = vunpack.c.h.b16 %v279
    %v1504 = vunpack.c.l.b16 %v280
    %v1505 = vunpack.c.h.b16 %v280
    %v1506 = vunpack.c.l.b16 %v281
    %v1507 = vunpack.c.h.b16 %v281
    %v1508 = vunpack.c.l.b16 %v282
    %v1509 = vunpack.c.h.b16 %v282
    %v1510 = vunpack.c.l.b16 %v283
    %v1511 = vunpack.c.h.b16 %v283
    %v1512 = vunpack.c.l.b16 %v284
    %v1513 = vunpack.c.h.b16 %v284
    %v1514 = vunpack.c.l.b16 %v285
    %v1515 = vunpack.c.h.b16 %v285
    %v1516 = vunpack.c.l.b16 %v286
    %v1517 = vunpack.c.h.b16 %v286
    %v1518 = vunpack.c.l.b16 %v287
    %v1519 = vunpack.c.h.b16 %v287
    %v1520 = vunpack.c.l.b16 %v288
    %v1521 = vunpack.c.h.b16 %v288
    %v1522 = vunpack.c.l.b16 %v289
    %v1523 = vunpack.c.h.b16 %v289
    %v1524 = vunpack.c.l.b16 %v290
    %v1525 = vunpack.c.h.b16 %v290
    %v1526 = vunpack.c.l.b16 %v291
    %v1527 = vunpack.c.h.b16 %v291
    %v1528 = vunpack.c.l.b16 %v292
    %v1529 = vunpack.c.h.b16 %v292
    %v1530 = vunpack.c.l.b16 %v293
    %v1531 = vunpack.c.h.b16 %v293
    %v1532 = vunpack.c.l.b16 %v294
    %v1533 = vunpack.c.h.b16 %v294
    %v1534 = vunpack.c.l.b16 %v295
    %v1535 = vunpack.c.h.b16 %v295
    %v1536 = vunpack.c.l.b16 %v296
    %v1537 = vunpack.c.h.b16 %v296
    %v1538 = vunpack.c.l.b16 %v297
    %v1539 = vunpack.c.h.b16 %v297
    %v1540 = vunpack.c.l.b16 %v298
    %v1541 = vunpack.c.h.b16 %v298
    %v1542 = vunpack.c.l.b16 %v299
    %v1543 = vunpack.c.h.b16 %v299
    %v1544 = vunpack.c.l.b16 %v300
    %v1545 = vunpack.c.h.b16 %v300
    %v1546 = vunpack.c.l.b16 %v301
    %v1547 = vunpack.c.h.b16 %v301
    %v1548 = vunpack.c.l.b16 %v302
    %v1549 = vunpack.c.h.b16 %v302
    %v1550 = vunpack.c.l.b16 %v303
    %v1551 = vunpack.c.h.b16 %v303
    %v1552 = vunpack.c.l.b16 %v304
    %v1553 = vunpack.c.h.b16 %v304
    %v1554 = vunpack.c.l.b16 %v305
    %v1555 = vunpack.c.h.b16 %v305
    %v1556 = vunpack.c.l.b16 %v306
    %v1557 = vunpack.c.h.b16 %v306
    %v1558 = vunpack.c.l.b16 %v307
    %v1559 = vunpack.c.h.b16 %v307
    %v1560 = vunpack.c.l.b16 %v308
    %v1561 = vunpack.c.h.b16 %v308
    %v1562 = vunpack.c.l.b16 %v309
    %v1563 = vunpack.c.h.b16 %v309
    %v1564 = vunpack.c.l.b16 %v310
    %v1565 = vunpack.c.h.b16 %v310
    %v1566 = vunpack.c.l.b16 %v311
    %v1567 = vunpack.c.h.b16 %v311
    %v1568 = vunpack.c.l.b16 %v312
    %v1569 = vunpack.c.h.b16 %v312
    %v1570 = vunpack.c.l.b16 %v313
    %v1571 = vunpack.c.h.b16 %v313
    %v1572 = vunpack.c.l.b16 %v314
    %v1573 = vunpack.c.h.b16 %v314
    %v1574 = vunpack.c.l.b16 %v315
    %v1575 = vunpack.c.h.b16 %v315
    %v1576 = vunpack.c.l.b16 %v316
    %v1577 = vunpack.c.h.b16 %v316
    %v1578 = vunpack.c.l.b16 %v317
    %v1579 = vunpack.c.h.b16 %v317
    %v1580 = vunpack.c.l.b16 %v318
    %v1581 = vunpack.c.h.b16 %v318
    %v1582 = vunpack.c.l.b16 %v319
    %v1583 = vunpack.c.h.b16 %v319
    %v1584 = vunpack.c.l.b16 %v320
    %v1585 = vunpack.c.h.b16 %v320
    %v1586 = vunpack.c.l.b16 %v321
    %v1587 = vunpack.c.h.b16 %v321
    %v1588 = vunpack.c.l.b16 %v322
    %v1589 = vunpack.c.h.b16 %v322
    %v1590 = vunpack.c.l.b16 %v323
    %v1591 = vunpack.c.h.b16 %v323
    %v1592 = vunpack.c.l.b16 %v324
    %v1593 = vunpack.c.h.b16 %v324
    %v1594 = vunpack.c.l.b16 %v325
    %v1595 = vunpack.c.h.b16 %v325
    %v1596 = vunpack.c.l.b16 %v326
    %v1597 = vunpack.c.h.b16 %v326
    %v1598 = vunpack.c.l.b16 %v327
    %v1599 = vunpack.c.h.b16 %v327
    %v1600 = vunpack.c.l.b16 %v328
    %v1601 = vunpack.c.h.b16 %v328
    %v1602 = vunpack.c.l.b16 %v329
    %v1603 = vunpack.c.h.b16 %v329
    %v1604 = vunpack.c.l.b16 %v330
    %v1605 = vunpack.c.h.b16 %v330
    %v1606 = vunpack.c.l.b16 %v331
    %v1607 = vunpack.c.h.b16 %v331
    %v1608 = vunpack.c.l.b16 %v332
    %v1609 = vunpack.c.h.b16 %v332
    %v1610 = vunpack.c.l.b16 %v333
    %v1611 = vunpack.c.h.b16 %v333
    %v1612 = vunpack.c.l.b16 %v334
    %v1613 = vunpack.c.h.b16 %v334
    %v1614 = vunpack.c.l.b16 %v335
    %v1615 = vunpack.c.h.b16 %v335
    %v1616 = vunpack.c.l.b16 %v336
    %v1617 = vunpack.c.h.b16 %v336
    %v1618 = vunpack.c.l.b16 %v337
    %v1619 = vunpack.c.h.b16 %v337
    %v1620 = vunpack.c.l.b16 %v338
    %v1621 = vunpack.c.h.b16 %v338
    %v1622 = vunpack.c.l.b16 %v339
    %v1623 = vunpack.c.h.b16 %v339
    %v1624 = vunpack.c.l.b16 %v340
    %v1625 = vunpack.c.h.b16 %v340
    %v1626 = vunpack.c.l.b16 %v341
    %v1627 = vunpack.c.h.b16 %v341
    %v1628 = vunpack.c.l.b16 %v342
    %v1629 = vunpack.c.h.b16 %v342
    %v1630 = vunpack.c.l.b16 %v343
    %v1631 = vunpack.c.h.b16 %v343
    %v1632 = vunpack.c.l.b16 %v344
    %v1633 = vunpack.c.h.b16 %v344
    %v1634 = vunpack.c.l.b16 %v345
    %v1635 = vunpack.c.h.b16 %v345
    %v1636 = vunpack.c.l.b16 %v346
    %v1637 = vunpack.c.h.b16 %v346
    %v1638 = vunpack.c.l.b16 %v347
    %v1639 = vunpack.c.h.b16 %v347
    %v1640 = vunpack.c.l.b16 %v348
    %v1641 = vunpack.c.h.b16 %v348
    %v1642 = vunpack.c.l.b16 %v349
    %v1643 = vunpack.c.h.b16 %v349
    %v1644 = vunpack.c.l.b16 %v350
    %v1645 = vunpack.c.h.b16 %v350
    %v1646 = vunpack.c.l.b16 %v351
    %v1647 = vunpack.c.h.b16 %v351
    %v1648 = vunpack.c.l.b16 %v352
    %v1649 = vunpack.c.h.b16 %v352
    %v1650 = vunpack.c.l.b16 %v353
    %v1651 = vunpack.c.h.b16 %v353
    %v1652 = vunpack.c.l.b16 %v354
    %v1653 = vunpack.c.h.b16 %v354
    %v1654 = vunpack.c.l.b16 %v355
    %v1655 = vunpack.c.h.b16 %v355
    %v1656 = vunpack.c.l.b16 %v356
    %v1657 = vunpack.c.h.b16 %v356
    %v1658 = vunpack.c.l.b16 %v357
    %v1659 = vunpack.c.h.b16 %v357
    %v1660 = vunpack.c.l.b16 %v358
    %v1661 = vunpack.c.h.b16 %v358
    %v1662 = vunpack.c.l.b16 %v359
    %v1663 = vunpack.c.h.b16 %v359
    %v1664 = vunpack.c.l.b16 %v360
    %v1665 = vunpack.c.h.b16 %v360
    %v1666 = vunpack.c.l.b16 %v361
    %v1667 = vunpack.c.h.b16 %v361
    %v1668 = vunpack.c.l.b16 %v362
    %v1669 = vunpack.c.h.b16 %v362
    %v1670 = vunpack.c.l.b16 %v363
    %v1671 = vunpack.c.h.b16 %v363
    %v1672 = vunpack.c.l.b16 %v364
    %v1673 = vunpack.c.h.b16 %v364
    %v1674 = vunpack.c.l.b16 %v365
    %v1675 = vunpack.c.h.b16 %v365
    %v1676 = vunpack.c.l.b16 %v366
    %v1677 = vunpack.c.h.b16 %v366
    %v1678 = vunpack.c.l.b16 %v367
    %v1679 = vunpack.c.h.b16 %v367
    %v1680 = vunpack.c.l.b16 %v368
    %v1681 = vunpack.c.h.b16 %v368
    %v1682 = vunpack.c.l.b16 %v369
    %v1683 = vunpack.c.h.b16 %v369
    %v1684 = vunpack.c.l.b16 %v370
    %v1685 = vunpack.c.h.b16 %v370
    %v1686 = vunpack.c.l.b16 %v371
    %v1687 = vunpack.c.h.b16 %v371
    %v1688 = vunpack.c.l.b16 %v372
    %v1689 = vunpack.c.h.b16 %v372
    %v1690 = vunpack.c.l.b16 %v373
    %v1691 = vunpack.c.h.b16 %v373
    %v1692 = vunpack.c.l.b16 %v374
    %v1693 = vunpack.c.h.b16 %v374
    %v1694 = vunpack.c.l.b16 %v375
    %v1695 = vunpack.c.h.b16 %v375
    %v1696 = vunpack.c.l.b16 %v376
    %v1697 = vunpack.c.h.b16 %v376
    %v1698 = vunpack.c.l.b16 %v377
    %v1699 = vunpack.c.h.b16 %v377
    %v1700 = vunpack.c.l.b16 %v378
    %v1701 = vunpack.c.h.b16 %v378
    %v1702 = vunpack.c.l.b16 %v379
    %v1703 = vunpack.c.h.b16 %v379
    %v1704 = vunpack.c.l.b16 %v380
    %v1705 = vunpack.c.h.b16 %v380
    %v1706 = vunpack.c.l.b16 %v381
    %v1707 = vunpack.c.h.b16 %v381
    %v1708 = vunpack.c.l.b16 %v382
    %v1709 = vunpack.c.h.b16 %v382
    %v1710 = vunpack.c.l.b16 %v383
    %v1711 = vunpack.c.h.b16 %v383
    %v1712 = vunpack.c.l.b16 %v384
    %v1713 = vunpack.c.h.b16 %v384
    %v1714 = vunpack.c.l.b16 %v385
    %v1715 = vunpack.c.h.b16 %v385
    %v1716 = vunpack.c.l.b16 %v386
    %v1717 = vunpack.c.h.b16 %v386
    %v1718 = vunpack.c.l.b16 %v387
    %v1719 = vunpack.c.h.b16 %v387
    %v1720 = vunpack.c.l.b16 %v388
    %v1721 = vunpack.c.h.b16 %v388
    %v1722 = vunpack.c.l.b16 %v389
    %v1723 = vunpack.c.h.b16 %v389
    %v1724 = vunpack.c.l.b16 %v390
    %v1725 = vunpack.c.h.b16 %v390
    %v1726 = vunpack.c.l.b16 %v391
    %v1727 = vunpack.c.h.b16 %v391
    %v1728 = vunpack.c.l.b16 %v392
    %v1729 = vunpack.c.h.b16 %v392
    %v1730 = vunpack.c.l.b16 %v393
    %v1731 = vunpack.c.h.b16 %v393
    %v1732 = vunpack.c.l.b16 %v394
    %v1733 = vunpack.c.h.b16 %v394
    %v1734 = vunpack.c.l.b16 %v395
    %v1735 = vunpack.c.h.b16 %v395
    %v1736 = vunpack.c.l.b16 %v396
    %v1737 = vunpack.c.h.b16 %v396
    %v1738 = vunpack.c.l.b16 %v397
    %v1739 = vunpack.c.h.b16 %v397
    %v1740 = vunpack.c.l.b16 %v398
    %v1741 = vunpack.c.h.b16 %v398
    %v1742 = vunpack.c.l.b16 %v399
    %v1743 = vunpack.c.h.b16 %v399
    %v1744 = vunpack.c.l.b16 %v400
    %v1745 = vunpack.c.h.b16 %v400
    %v1746 = vunpack.c.l.b16 %v401
    %v1747 = vunpack.c.h.b16 %v401
    %v1748 = vunpack.c.l.b16 %v402
    %v1749 = vunpack.c.h.b16 %v402
    %v1750 = vunpack.c.l.b16 %v403
    %v1751 = vunpack.c.h.b16 %v403
    %v1752 = vunpack.c.l.b16 %v404
    %v1753 = vunpack.c.h.b16 %v404
    %v1754 = vunpack.c.l.b16 %v405
    %v1755 = vunpack.c.h.b16 %v405
    %v1756 = vunpack.c.l.b16 %v406
    %v1757 = vunpack.c.h.b16 %v406
    %v1758 = vunpack.c.l.b16 %v407
    %v1759 = vunpack.c.h.b16 %v407
    %v1760 = vunpack.c.l.b16 %v408
    %v1761 = vunpack.c.h.b16 %v408
    %v1762 = vunpack.c.l.b16 %v409
    %v1763 = vunpack.c.h.b16 %v409
    %v1764 = vunpack.c.l.b16 %v410
    %v1765 = vunpack.c.h.b16 %v410
    %v1766 = vunpack.c.l.b16 %v411
    %v1767 = vunpack.c.h.b16 %v411
    %v1768 = vunpack.c.l.b16 %v412
    %v1769 = vunpack.c.h.b16 %v412
    %v1770 = vunpack.c.l.b16 %v413
    %v1771 = vunpack.c.h.b16 %v413
    %v1772 = vunpack.c.l.b16 %v414
    %v1773 = vunpack.c.h.b16 %v414
    %v1774 = vunpack.c.l.b16 %v415
    %v1775 = vunpack.c.h.b16 %v415
    %v1776 = vunpack.c.l.b16 %v416
    %v1777 = vunpack.c.h.b16 %v416
    %v1778 = vunpack.c.l.b16 %v417
    %v1779 = vunpack.c.h.b16 %v417
    %v1780 = vunpack.c.l.b16 %v418
    %v1781 = vunpack.c.h.b16 %v418
    %v1782 = vunpack.c.l.b16 %v419
    %v1783 = vunpack.c.h.b16 %v419
    %v1784 = vunpack.c.l.b16 %v420
    %v1785 = vunpack.c.h.b16 %v420
    %v1786 = vunpack.c.l.b16 %v421
    %v1787 = vunpack.c.h.b16 %v421
    %v1788 = vunpack.c.l.b16 %v422
    %v1789 = vunpack.c.h.b16 %v422
    %v1790 = vunpack.c.l.b16 %v423
    %v1791 = vunpack.c.h.b16 %v423
    %v1792 = vunpack.c.l.b16 %v424
    %v1793 = vunpack.c.h.b16 %v424
    %v1794 = vunpack.c.l.b16 %v425
    %v1795 = vunpack.c.h.b16 %v425
    %v1796 = vunpack.c.l.b16 %v426
    %v1797 = vunpack.c.h.b16 %v426
    %v1798 = vunpack.c.l.b16 %v427
    %v1799 = vunpack.c.h.b16 %v427
    %v1800 = vunpack.c.l.b16 %v428
    %v1801 = vunpack.c.h.b16 %v428
    %v1802 = vunpack.c.l.b16 %v429
    %v1803 = vunpack.c.h.b16 %v429
    %v1804 = vunpack.c.l.b16 %v430
    %v1805 = vunpack.c.h.b16 %v430
    %v1806 = vunpack.c.l.b16 %v431
    %v1807 = vunpack.c.h.b16 %v431
    %v1808 = vunpack.c.l.b16 %v432
    %v1809 = vunpack.c.h.b16 %v432
    %v1810 = vunpack.c.l.b16 %v433
    %v1811 = vunpack.c.h.b16 %v433
    %v1812 = vunpack.c.l.b16 %v434
    %v1813 = vunpack.c.h.b16 %v434
    %v1814 = vunpack.c.l.b16 %v435
    %v1815 = vunpack.c.h.b16 %v435
    %v1816 = vunpack.c.l.b16 %v436
    %v1817 = vunpack.c.h.b16 %v436
    %v1818 = vunpack.c.l.b16 %v437
    %v1819 = vunpack.c.h.b16 %v437
    %v1820 = vunpack.c.l.b16 %v438
    %v1821 = vunpack.c.h.b16 %v438
    %v1822 = vunpack.c.l.b16 %v439
    %v1823 = vunpack.c.h.b16 %v439
    %v1824 = vunpack.c.l.b16 %v440
    %v1825 = vunpack.c.h.b16 %v440
    %v1826 = vunpack.c.l.b16 %v441
    %v1827 = vunpack.c.h.b16 %v441
    %v1828 = vunpack.c.l.b16 %v442
    %v1829 = vunpack.c.h.b16 %v442
    %v1830 = vunpack.c.l.b16 %v443
    %v1831 = vunpack.c.h.b16 %v443
    %v1832 = vunpack.c.l.b16 %v444
    %v1833 = vunpack.c.h.b16 %v444
    %v1834 = vunpack.c.l.b16 %v445
    %v1835 = vunpack.c.h.b16 %v445
    %v1836 = vunpack.c.l.b16 %v446
    %v1837 = vunpack.c.h.b16 %v446
    %v1838 = vunpack.c.l.b16 %v447
    %v1839 = vunpack.c.h.b16 %v447
    %v1840 = vunpack.c.l.b16 %v448
    %v1841 = vunpack.c.h.b16 %v448
    %v1842 = vunpack.c.l.b16 %v449
    %v1843 = vunpack.c.h.b16 %v449
    %v1844 = vunpack.c.l.b16 %v450
    %v1845 = vunpack.c.h.b16 %v450
    %v1846 = vunpack.c.l.b16 %v451
    %v1847 = vunpack.c.h.b16 %v451
    %v1848 = vunpack.c.l.b16 %v452
    %v1849 = vunpack.c.h.b16 %v452
    %v1850 = vunpack.c.l.b16 %v453
    %v1851 = vunpack.c.h.b16 %v453
    %v1852 = vunpack.c.l.b16 %v454
    %v1853 = vunpack.c.h.b16 %v454
    %v1854 = vunpack.c.l.b16 %v455
    %v1855 = vunpack.c.h.b16 %v455
    %v1856 = vunpack.c.l.b16 %v456
    %v1857 = vunpack.c.h.b16 %v456
    %v1858 = vunpack.c.l.b16 %v457
    %v1859 = vunpack.c.h.b16 %v457
    %v1860 = vunpack.c.l.b16 %v458
    %v1861 = vunpack.c.h.b16 %v458
    %v1862 = vunpack.c.l.b16 %v459
    %v1863 = vunpack.c.h.b16 %v459
    %v1864 = vunpack.c.l.b16 %v460
    %v1865 = vunpack.c.h.b16 %v460
    %v1866 = vunpack.c.l.b16 %v461
    %v1867 = vunpack.c.h.b16 %v461
    %v1868 = vunpack.c.l.b16 %v462
    %v1869 = vunpack.c.h.b16 %v462
    %v1870 = vunpack.c.l.b16 %v463
    %v1871 = vunpack.c.h.b16 %v463
    %v1872 = vunpack.c.l.b16 %v464
    %v1873 = vunpack.c.h.b16 %v464
    %v1874 = vunpack.c.l.b16 %v465
    %v1875 = vunpack.c.h.b16 %v465
    %v1876 = vunpack.c.l.b16 %v466
    %v1877 = vunpack.c.h.b16 %v466
    %v1878 = vunpack.c.l.b16 %v467
    %v1879 = vunpack.c.h.b16 %v467
    %v1880 = vunpack.c.l.b16 %v468
    %v1881 = vunpack.c.h.b16 %v468
    %v1882 = vunpack.c.l.b16 %v469
    %v1883 = vunpack.c.h.b16 %v469
    %v1884 = vunpack.c.l.b16 %v470
    %v1885 = vunpack.c.h.b16 %v470
    %v1886 = vunpack.c.l.b16 %v471
    %v1887 = vunpack.c.h.b16 %v471
    %v1888 = vunpack.c.l.b16 %v472
    %v1889 = vunpack.c.h.b16 %v472
    %v1890 = vunpack.c.l.b16 %v473
    %v1891 = vunpack.c.h.b16 %v473
    %v1892 = vunpack.c.l.b16 %v474
    %v1893 = vunpack.c.h.b16 %v474
    %v1894 = vunpack.c.l.b16 %v475
    %v1895 = vunpack.c.h.b16 %v475
    %v1896 = vunpack.c.l.b16 %v476
    %v1897 = vunpack.c.h.b16 %v476
    %v1898 = vunpack.c.l.b16 %v477
    %v1899 = vunpack.c.h.b16 %v477
    %v1900 = vunpack.c.l.b16 %v478
    %v1901 = vunpack.c.h.b16 %v478
    %v1902 = vunpack.c.l.b16 %v479
    %v1903 = vunpack.c.h.b16 %v479
    %v1904 = vunpack.c.l.b16 %v480
    %v1905 = vunpack.c.h.b16 %v480
    %v1906 = vunpack.c.l.b16 %v481
    %v1907 = vunpack.c.h.b16 %v481
    %v1908 = vunpack.c.l.b16 %v482
    %v1909 = vunpack.c.h.b16 %v482
    %v1910 = vunpack.c.l.b16 %v483
    %v1911 = vunpack.c.h.b16 %v483
    %v1912 = vunpack.c.l.b16 %v484
    %v1913 = vunpack.c.h.b16 %v484
    %v1914 = vunpack.c.l.b16 %v485
    %v1915 = vunpack.c.h.b16 %v485
    %v1916 = vunpack.c.l.b16 %v486
    %v1917 = vunpack.c.h.b16 %v486
    %v1918 = vunpack.c.l.b16 %v487
    %v1919 = vunpack.c.h.b16 %v487
    %v1920 = vunpack.c.l.b16 %v488
    %v1921 = vunpack.c.h.b16 %v488
    %v1922 = vunpack.c.l.b16 %v489
    %v1923 = vunpack.c.h.b16 %v489
    %v1924 = vunpack.c.l.b16 %v490
    %v1925 = vunpack.c.h.b16 %v490
    %v1926 = vunpack.c.l.b16 %v491
    %v1927 = vunpack.c.h.b16 %v491
    %v1928 = vunpack.c.l.b16 %v492
    %v1929 = vunpack.c.h.b16 %v492
    %v1930 = vunpack.c.l.b16 %v493
    %v1931 = vunpack.c.h.b16 %v493
    %v1932 = vunpack.c.l.b16 %v494
    %v1933 = vunpack.c.h.b16 %v494
    %v1934 = vunpack.c.l.b16 %v495
    %v1935 = vunpack.c.h.b16 %v495
    %v1936 = vunpack.c.l.b16 %v496
    %v1937 = vunpack.c.h.b16 %v496
    %v1938 = vunpack.c.l.b16 %v497
    %v1939 = vunpack.c.h.b16 %v497
    %v1940 = vunpack.c.l.b16 %v498
    %v1941 = vunpack.c.h.b16 %v498
    %v1942 = vunpack.c.l.b16 %v499
    %v1943 = vunpack.c.h.b16 %v499
    %v1944 = vunpack.c.l.b16 %v500
    %v1945 = vunpack.c.h.b16 %v500
    %v1946 = vunpack.c.l.b16 %v501
    %v1947 = vunpack.c.h.b16 %v501
    %v1948 = vunpack.c.l.b16 %v502
    %v1949 = vunpack.c.h.b16 %v502
    %v1950 = vunpack.c.l.b16 %v503
    %v1951 = vunpack.c.h.b16 %v503
    %v1952 = vunpack.c.l.b16 %v504
    %v1953 = vunpack.c.h.b16 %v504
    %v1954 = vunpack.c.l.b16 %v505
    %v1955 = vunpack.c.h.b16 %v505
    %v1956 = vunpack.c.l.b16 %v506
    %v1957 = vunpack.c.h.b16 %v506
    %v1958 = vunpack.c.l.b16 %v507
    %v1959 = vunpack.c.h.b16 %v507
    %v1960 = vunpack.c.l.b16 %v508
    %v1961 = vunpack.c.h.b16 %v508
    %v1962 = vunpack.c.l.b16 %v509
    %v1963 = vunpack.c.h.b16 %v509
    %v1964 = vunpack.c.l.b16 %v510
    %v1965 = vunpack.c.h.b16 %v510
    %v1966 = vunpack.c.l.b16 %v511
    %v1967 = vunpack.c.h.b16 %v511
    %v1968 = vunpack.c.l.b16 %v512
    %v1969 = vunpack.c.h.b16 %v512
    %v1970 = vunpack.c.l.b16 %v513
    %v1971 = vunpack.c.h.b16 %v513
    %v1972 = vunpack.c.l.b16 %v514
    %v1973 = vunpack.c.h.b16 %v514
    %v1974 = vunpack.c.l.b16 %v515
    %v1975 = vunpack.c.h.b16 %v515
    %v1976 = vunpack.c.l.b16 %v516
    %v1977 = vunpack.c.h.b16 %v516
    %v1978 = vunpack.c.l.b16 %v517
    %v1979 = vunpack.c.h.b16 %v517
    %v1980 = vunpack.c.l.b16 %v518
    %v1981 = vunpack.c.h.b16 %v518
    %v1982 = vunpack.c.l.b16 %v519
    %v1983 = vunpack.c.h.b16 %v519
    %v1984 = vunpack.c.l.b16 %v520
    %v1985 = vunpack.c.h.b16 %v520
    %v1986 = vunpack.c.l.b16 %v521
    %v1987 = vunpack.c.h.b16 %v521
    %v1988 = vunpack.c.l.b16 %v522
    %v1989 = vunpack.c.h.b16 %v522
    %v1990 = vunpack.c.l.b16 %v523
    %v1991 = vunpack.c.h.b16 %v523
    %v1992 = vunpack.c.l.b16 %v524
    %v1993 = vunpack.c.h.b16 %v524
    %v1994 = vunpack.c.l.b16 %v525
    %v1995 = vunpack.c.h.b16 %v525
    %v1996 = vunpack.c.l.b16 %v526
    %v1997 = vunpack.c.h.b16 %v526
    %v1998 = vunpack.c.l.b16 %v527
    %v1999 = vunpack.c.h.b16 %v527
    %v2000 = vunpack.c.l.b16 %v528
    %v2001 = vunpack.c.h.b16 %v528
    %v2002 = vunpack.c.l.b16 %v529
    %v2003 = vunpack.c.h.b16 %v529
    %v2004 = vunpack.c.l.b16 %v530
    %v2005 = vunpack.c.h.b16 %v530
    %v2006 = vunpack.c.l.b16 %v531
    %v2007 = vunpack.c.h.b16 %v531
    %v2008 = vunpack.c.l.b16 %v532
    %v2009 = vunpack.c.h.b16 %v532
    %v2010 = vunpack.c.l.b16 %v533
    %v2011 = vunpack.c.h.b16 %v533
    %v2012 = vunpack.c.l.b16 %v534
    %v2013 = vunpack.c.h.b16 %v534
    %v2014 = vunpack.c.l.b16 %v535
    %v2015 = vunpack.c.h.b16 %v535
    %v2016 = vunpack.c.l.b16 %v536
    %v2017 = vunpack.c.h.b16 %v536
    %v2018 = vunpack.c.l.b16 %v537
    %v2019 = vunpack.c.h.b16 %v537
    %v2020 = vunpack.c.l.b16 %v538
    %v2021 = vunpack.c.h.b16 %v538
    %v2022 = vunpack.c.l.b16 %v539
    %v2023 = vunpack.c.h.b16 %v539
    %v2024 = vunpack.c.l.b16 %v540
    %v2025 = vunpack.c.h.b16 %v540
    %v2026 = vunpack.c.l.b16 %v541
    %v2027 = vunpack.c.h.b16 %v541
    %v2028 = vunpack.c.l.b16 %v542
    %v2029 = vunpack.c.h.b16 %v542
    %v2030 = vunpack.c.l.b16 %v543
    %v2031 = vunpack.c.h.b16 %v543
    %v2032 = vunpack.c.l.b16 %v544
    %v2033 = vunpack.c.h.b16 %v544
    %v2034 = vunpack.c.l.b16 %v545
    %v2035 = vunpack.c.h.b16 %v545
    %v2036 = vunpack.c.l.b16 %v546
    %v2037 = vunpack.c.h.b16 %v546
    %v2038 = vunpack.c.l.b16 %v547
    %v2039 = vunpack.c.h.b16 %v547
    %v2040 = vunpack.c.l.b16 %v548
    %v2041 = vunpack.c.h.b16 %v548
    %v2042 = vunpack.c.l.b16 %v549
    %v2043 = vunpack.c.h.b16 %v549
    %v2044 = vunpack.c.l.b16 %v550
    %v2045 = vunpack.c.h.b16 %v550
    %v2046 = vunpack.c.l.b16 %v551
    %v2047 = vunpack.c.h.b16 %v551
    %v2048 = vunpack.c.l.b16 %v552
    %v2049 = vunpack.c.h.b16 %v552
    %v2050 = vunpack.c.l.b16 %v553
    %v2051 = vunpack.c.h.b16 %v553
    %v2052 = vunpack.c.l.b16 %v554
    %v2053 = vunpack.c.h.b16 %v554
    %v2054 = vunpack.c.l.b16 %v555
    %v2055 = vunpack.c.h.b16 %v555
    %v2056 = vunpack.c.l.b16 %v556
    %v2057 = vunpack.c.h.b16 %v556
    %v2058 = vunpack.c.l.b16 %v557
    %v2059 = vunpack.c.h.b16 %v557
    %v2060 = vunpack.c.l.b16 %v558
    %v2061 = vunpack.c.h.b16 %v558
    %v2062 = vunpack.c.l.b16 %v559
    %v2063 = vunpack.c.h.b16 %v559
    %v2064 = vunpack.c.l.b16 %v560
    %v2065 = vunpack.c.h.b16 %v560
    %v2066 = vunpack.c.l.b16 %v561
    %v2067 = vunpack.c.h.b16 %v561
    %v2068 = vunpack.c.l.b16 %v562
    %v2069 = vunpack.c.h.b16 %v562
    %v2070 = vunpack.c.l.b16 %v563
    %v2071 = vunpack.c.h.b16 %v563
    %v2072 = vunpack.c.l.b16 %v564
    %v2073 = vunpack.c.h.b16 %v564
    %v2074 = vunpack.c.l.b16 %v565
    %v2075 = vunpack.c.h.b16 %v565
    %v2076 = vunpack.c.l.b16 %v566
    %v2077 = vunpack.c.h.b16 %v566
    %v2078 = vunpack.c.l.b16 %v567
    %v2079 = vunpack.c.h.b16 %v567
    %v2080 = vunpack.c.l.b16 %v568
    %v2081 = vunpack.c.h.b16 %v568
    %v2082 = vunpack.c.l.b16 %v569
    %v2083 = vunpack.c.h.b16 %v569
    %v2084 = vunpack.c.l.b16 %v570
    %v2085 = vunpack.c.h.b16 %v570
    %v2086 = vunpack.c.l.b16 %v571
    %v2087 = vunpack.c.h.b16 %v571
    %v2088 = vunpack.c.l.b16 %v572
    %v2089 = vunpack.c.h.b16 %v572
    %v2090 = vunpack.c.l.b16 %v573
    %v2091 = vunpack.c.h.b16 %v573
    %v2092 = vunpack.c.l.b16 %v574
    %v2093 = vunpack.c.h.b16 %v574
    %v2094 = vunpack.c.l.b16 %v575
    %v2095 = vunpack.c.h.b16 %v575
    %v2096 = vunpack.c.l.b16 %v576
    %v2097 = vunpack.c.h.b16 %v576
    %v2098 = vunpack.c.l.b16 %v577
    %v2099 = vunpack.c.h.b16 %v577
    %v2100 = vunpack.c.l.b16 %v578
    %v2101 = vunpack.c.h.b16 %v578
    %v2102 = vunpack.c.l.b16 %v579
    %v2103 = vunpack.c.h.b16 %v579
    %v2104 = vunpack.c.l.b16 %v580
    %v2105 = vunpack.c.h.b16 %v580
    %v2106 = vunpack.c.l.b16 %v581
    %v2107 = vunpack.c.h.b16 %v581
    %v2108 = vunpack.c.l.b16 %v582
    %v2109 = vunpack.c.h.b16 %v582
    %v2110 = vunpack.c.l.b16 %v583
    %v2111 = vunpack.c.h.b16 %v583
    %v2112 = vunpack.c.l.b16 %v584
    %v2113 = vunpack.c.h.b16 %v584
    %v2114 = vunpack.c.l.b16 %v585
    %v2115 = vunpack.c.h.b16 %v585
    %v2116 = vunpack.c.l.b16 %v586
    %v2117 = vunpack.c.h.b16 %v586
    %v2118 = vunpack.c.l.b16 %v587
    %v2119 = vunpack.c.h.b16 %v587
    %v2120 = vunpack.c.l.b16 %v588
    %v2121 = vunpack.c.h.b16 %v588
    %v2122 = vunpack.c.l.b16 %v589
    %v2123 = vunpack.c.h.b16 %v589
    %v2124 = vunpack.c.l.b16 %v590
    %v2125 = vunpack.c.h.b16 %v590
    %v2126 = vunpack.c.l.b16 %v591
    %v2127 = vunpack.c.h.b16 %v591
    %v2128 = vunpack.c.l.b16 %v592
    %v2129 = vunpack.c.h.b16 %v592
    %v2130 = vunpack.c.l.b16 %v593
    %v2131 = vunpack.c.h.b16 %v593
    %v2132 = vunpack.c.l.b16 %v594
    %v2133 = vunpack.c.h.b16 %v594
    %v2134 = vunpack.c.l.b16 %v595
    %v2135 = vunpack.c.h.b16 %v595
    %v2136 = vunpack.c.l.b16 %v596
    %v2137 = vunpack.c.h.b16 %v596
    %v2138 = vunpack.c.l.b16 %v597
    %v2139 = vunpack.c.h.b16 %v597
    %v2140 = vunpack.c.l.b16 %v598
    %v2141 = vunpack.c.h.b16 %v598
    %v2142 = vunpack.c.l.b16 %v599
    %v2143 = vunpack.c.h.b16 %v599
    %v2144 = vunpack.c.l.b16 %v600
    %v2145 = vunpack.c.h.b16 %v600
    %v2146 = vunpack.c.l.b16 %v601
    %v2147 = vunpack.c.h.b16 %v601
    %v2148 = vunpack.c.l.b16 %v602
    %v2149 = vunpack.c.h.b16 %v602
    %v2150 = vunpack.c.l.b16 %v603
    %v2151 = vunpack.c.h.b16 %v603
    %v2152 = vunpack.c.l.b16 %v604
    %v2153 = vunpack.c.h.b16 %v604
    %v2154 = vunpack.c.l.b16 %v605
    %v2155 = vunpack.c.h.b16 %v605
    %v2156 = vunpack.c.l.b16 %v606
    %v2157 = vunpack.c.h.b16 %v606
    %v2158 = vunpack.c.l.b16 %v607
    %v2159 = vunpack.c.h.b16 %v607
    %v2160 = vunpack.c.l.b16 %v608
    %v2161 = vunpack.c.h.b16 %v608
    %v2162 = vunpack.c.l.b16 %v609
    %v2163 = vunpack.c.h.b16 %v609
    %v2164 = vunpack.c.l.b16 %v610
    %v2165 = vunpack.c.h.b16 %v610
    %v2166 = vunpack.c.l.b16 %v611
    %v2167 = vunpack.c.h.b16 %v611
    %v2168 = vunpack.c.l.b16 %v612
    %v2169 = vunpack.c.h.b16 %v612
    %v2170 = vunpack.c.l.b16 %v613
    %v2171 = vunpack.c.h.b16 %v613
    %v2172 = vunpack.c.l.b16 %v614
    %v2173 = vunpack.c.h.b16 %v614
    %v2174 = vunpack.c.l.b16 %v615
    %v2175 = vunpack.c.h.b16 %v615
    %v2176 = vunpack.c.l.b16 %v616
    %v2177 = vunpack.c.h.b16 %v616
    %v2178 = vunpack.c.l.b16 %v617
    %v2179 = vunpack.c.h.b16 %v617
    %v2180 = vunpack.c.l.b16 %v618
    %v2181 = vunpack.c.h.b16 %v618
    %v2182 = vunpack.c.l.b16 %v619
    %v2183 = vunpack.c.h.b16 %v619
    %v2184 = vunpack.c.l.b16 %v620
    %v2185 = vunpack.c.h.b16 %v620
    %v2186 = vunpack.c.l.b16 %v621
    %v2187 = vunpack.c.h.b16 %v621
    %v2188 = vunpack.c.l.b16 %v622
    %v2189 = vunpack.c.h.b16 %v622
    %v2190 = vunpack.c.l.b16 %v623
    %v2191 = vunpack.c.h.b16 %v623
    %v2192 = vunpack.c.l.b16 %v624
    %v2193 = vunpack.c.h.b16 %v624
    %v2194 = vunpack.c.l.b16 %v625
    %v2195 = vunpack.c.h.b16 %v625
    %v2196 = vunpack.c.l.b16 %v626
    %v2197 = vunpack.c.h.b16 %v626
    %v2198 = vunpack.c.l.b16 %v627
    %v2199 = vunpack.c.h.b16 %v627
    %v2200 = vunpack.c.l.b16 %v628
    %v2201 = vunpack.c.h.b16 %v628
    %v2202 = vunpack.c.l.b16 %v629
    %v2203 = vunpack.c.h.b16 %v629
    %v2204 = vunpack.c.l.b16 %v630
    %v2205 = vunpack.c.h.b16 %v630
    %v2206 = vunpack.c.l.b16 %v631
    %v2207 = vunpack.c.h.b16 %v631
    %v2208 = vunpack.c.l.b16 %v632
    %v2209 = vunpack.c.h.b16 %v632
    %v2210 = vunpack.c.l.b16 %v633
    %v2211 = vunpack.c.h.b16 %v633
    %v2212 = vunpack.c.l.b16 %v634
    %v2213 = vunpack.c.h.b16 %v634
    %v2214 = vunpack.c.l.b16 %v635
    %v2215 = vunpack.c.h.b16 %v635
    %v2216 = vunpack.c.l.b16 %v636
    %v2217 = vunpack.c.h.b16 %v636
    %v2218 = vunpack.c.l.b16 %v637
    %v2219 = vunpack.c.h.b16 %v637
    %v2220 = vunpack.c.l.b16 %v638
    %v2221 = vunpack.c.h.b16 %v638
    %v2222 = vunpack.c.l.b16 %v639
    %v2223 = vunpack.c.h.b16 %v639
    %v2224 = vunpack.c.l.b16 %v640
    %v2225 = vunpack.c.h.b16 %v640
    %v2226 = vunpack.c.l.b16 %v641
    %v2227 = vunpack.c.h.b16 %v641
    %v2228 = vpack.c.b16 %v1220, %v1204
    %v2229 = vpack.c.b16 %v1221, %v1205
    %v2230 = vpack.c.b16 %v1222, %v1206
    %v2231 = vpack.c.b16 %v1223, %v1207
    %v2232 = vpack.c.b16 %v1224, %v1208
    %v2233 = vpack.c.b16 %v1225, %v1209
    %v2234 = vpack.c.b16 %v1226, %v1210
    %v2235 = vpack.c.b16 %v1227, %v1211
    %v2236 = vpack.c.b16 %v1228, %v1212
    %v2237 = vpack.c.b16 %v1229, %v1213
    %v2238 = vpack.c.b16 %v1230, %v1214
    %v2239 = vpack.c.b16 %v1231, %v1215
    %v2240 = vpack.c.b16 %v1232, %v1216
    %v2241 = vpack.c.b16 %v1233, %v1217
    %v2242 = vpack.c.b16 %v1234, %v1218
    %v2243 = vpack.c.b16 %v1235, %v1219
    %v2244 = vpack.c.b16 %v1252, %v1236
    %v2245 = vpack.c.b16 %v1253, %v1237
    %v2246 = vpack.c.b16 %v1254, %v1238
    %v2247 = vpack.c.b16 %v1255, %v1239
    %v2248 = vpack.c.b16 %v1256, %v1240
    %v2249 = vpack.c.b16 %v1257, %v1241
    %v2250 = vpack.c.b16 %v1258, %v1242
    %v2251 = vpack.c.b16 %v1259, %v1243
    %v2252 = vpack.c.b16 %v1260, %v1244
    %v2253 = vpack.c.b16 %v1261, %v1245
    %v2254 = vpack.c.b16 %v1262, %v1246
    %v2255 = vpack.c.b16 %v1263, %v1247
    %v2256 = vpack.c.b16 %v1264, %v1248
    %v2257 = vpack.c.b16 %v1265, %v1249
    %v2258 = vpack.c.b16 %v1266, %v1250
    %v2259 = vpack.c.b16 %v1267, %v1251
    %v2260 = vpack.c.b16 %v1284, %v1268
    %v2261 = vpack.c.b16 %v1285, %v1269
    %v2262 = vpack.c.b16 %v1286, %v1270
    %v2263 = vpack.c.b16 %v1287, %v1271
    %v2264 = vpack.c.b16 %v1288, %v1272
    %v2265 = vpack.c.b16 %v1289, %v1273
    %v2266 = vpack.c.b16 %v1290, %v1274
    %v2267 = vpack.c.b16 %v1291, %v1275
    %v2268 = vpack.c.b16 %v1292, %v1276
    %v2269 = vpack.c.b16 %v1293, %v1277
    %v2270 = vpack.c.b16 %v1294, %v1278
    %v2271 = vpack.c.b16 %v1295, %v1279
    %v2272 = vpack.c.b16 %v1296, %v1280
    %v2273 = vpack.c.b16 %v1297, %v1281
    %v2274 = vpack.c.b16 %v1298, %v1282
    %v2275 = vpack.c.b16 %v1299, %v1283
    %v2276 = vpack.c.b16 %v1316, %v1300
    %v2277 = vpack.c.b16 %v1317, %v1301
    %v2278 = vpack.c.b16 %v1318, %v1302
    %v2279 = vpack.c.b16 %v1319, %v1303
    %v2280 = vpack.c.b16 %v1320, %v1304
    %v2281 = vpack.c.b16 %v1321, %v1305
    %v2282 = vpack.c.b16 %v1322, %v1306
    %v2283 = vpack.c.b16 %v1323, %v1307
    %v2284 = vpack.c.b16 %v1324, %v1308
    %v2285 = vpack.c.b16 %v1325, %v1309
    %v2286 = vpack.c.b16 %v1326, %v1310
    %v2287 = vpack.c.b16 %v1327, %v1311
    %v2288 = vpack.c.b16 %v1328, %v1312
    %v2289 = vpack.c.b16 %v1329, %v1313
    %v2290 = vpack.c.b16 %v1330, %v1314
    %v2291 = vpack.c.b16 %v1331, %v1315
    %v2292 = vpack.c.b16 %v1348, %v1332
    %v2293 = vpack.c.b16 %v1349, %v1333
    %v2294 = vpack.c.b16 %v1350, %v1334
    %v2295 = vpack.c.b16 %v1351, %v1335
    %v2296 = vpack.c.b16 %v1352, %v1336
    %v2297 = vpack.c.b16 %v1353, %v1337
    %v2298 = vpack.c.b16 %v1354, %v1338
    %v2299 = vpack.c.b16 %v1355, %v1339
    %v2300 = vpack.c.b16 %v1356, %v1340
    %v2301 = vpack.c.b16 %v1357, %v1341
    %v2302 = vpack.c.b16 %v1358, %v1342
    %v2303 = vpack.c.b16 %v1359, %v1343
    %v2304 = vpack.c.b16 %v1360, %v1344
    %v2305 = vpack.c.b16 %v1361, %v1345
    %v2306 = vpack.c.b16 %v1362, %v1346
    %v2307 = vpack.c.b16 %v1363, %v1347
    %v2308 = vpack.c.b16 %v1380, %v1364
    %v2309 = vpack.c.b16 %v1381, %v1365
    %v2310 = vpack.c.b16 %v1382, %v1366
    %v2311 = vpack.c.b16 %v1383, %v1367
    %v2312 = vpack.c.b16 %v1384, %v1368
    %v2313 = vpack.c.b16 %v1385, %v1369
    %v2314 = vpack.c.b16 %v1386, %v1370
    %v2315 = vpack.c.b16 %v1387, %v1371
    %v2316 = vpack.c.b16 %v1388, %v1372
    %v2317 = vpack.c.b16 %v1389, %v1373
    %v2318 = vpack.c.b16 %v1390, %v1374
    %v2319 = vpack.c.b16 %v1391, %v1375
    %v2320 = vpack.c.b16 %v1392, %v1376
    %v2321 = vpack.c.b16 %v1393, %v1377
    %v2322 = vpack.c.b16 %v1394, %v1378
    %v2323 = vpack.c.b16 %v1395, %v1379
    %v2324 = vpack.c.b16 %v1412, %v1396
    %v2325 = vpack.c.b16 %v1413, %v1397
    %v2326 = vpack.c.b16 %v1414, %v1398
    %v2327 = vpack.c.b16 %v1415, %v1399
    %v2328 = vpack.c.b16 %v1416, %v1400
    %v2329 = vpack.c.b16 %v1417, %v1401
    %v2330 = vpack.c.b16 %v1418, %v1402
    %v2331 = vpack.c.b16 %v1419, %v1403
    %v2332 = vpack.c.b16 %v1420, %v1404
    %v2333 = vpack.c.b16 %v1421, %v1405
    %v2334 = vpack.c.b16 %v1422, %v1406
    %v2335 = vpack.c.b16 %v1423, %v1407
    %v2336 = vpack.c.b16 %v1424, %v1408
    %v2337 = vpack.c.b16 %v1425, %v1409
    %v2338 = vpack.c.b16 %v1426, %v1410
    %v2339 = vpack.c.b16 %v1427, %v1411
    %v2340 = vpack.c.b16 %v1444, %v1428
    %v2341 = vpack.c.b16 %v1445, %v1429
    %v2342 = vpack.c.b16 %v1446, %v1430
    %v2343 = vpack.c.b16 %v1447, %v1431
    %v2344 = vpack.c.b16 %v1448, %v1432
    %v2345 = vpack.c.b16 %v1449, %v1433
    %v2346 = vpack.c.b16 %v1450, %v1434
    %v2347 = vpack.c.b16 %v1451, %v1435
    %v2348 = vpack.c.b16 %v1452, %v1436
    %v2349 = vpack.c.b16 %v1453, %v1437
    %v2350 = vpack.c.b16 %v1454, %v1438
    %v2351 = vpack.c.b16 %v1455, %v1439
    %v2352 = vpack.c.b16 %v1456, %v1440
    %v2353 = vpack.c.b16 %v1457, %v1441
    %v2354 = vpack.c.b16 %v1458, %v1442
    %v2355 = vpack.c.b16 %v1459, %v1443
    %v2356 = vpack.c.b16 %v1476, %v1460
    %v2357 = vpack.c.b16 %v1477, %v1461
    %v2358 = vpack.c.b16 %v1478, %v1462
    %v2359 = vpack.c.b16 %v1479, %v1463
    %v2360 = vpack.c.b16 %v1480, %v1464
    %v2361 = vpack.c.b16 %v1481, %v1465
    %v2362 = vpack.c.b16 %v1482, %v1466
    %v2363 = vpack.c.b16 %v1483, %v1467
    %v2364 = vpack.c.b16 %v1484, %v1468
    %v2365 = vpack.c.b16 %v1485, %v1469
    %v2366 = vpack.c.b16 %v1486, %v1470
    %v2367 = vpack.c.b16 %v1487, %v1471
    %v2368 = vpack.c.b16 %v1488, %v1472
    %v2369 = vpack.c.b16 %v1489, %v1473
    %v2370 = vpack.c.b16 %v1490, %v1474
    %v2371 = vpack.c.b16 %v1491, %v1475
    %v2372 = vpack.c.b16 %v1508, %v1492
    %v2373 = vpack.c.b16 %v1509, %v1493
    %v2374 = vpack.c.b16 %v1510, %v1494
    %v2375 = vpack.c.b16 %v1511, %v1495
    %v2376 = vpack.c.b16 %v1512, %v1496
    %v2377 = vpack.c.b16 %v1513, %v1497
    %v2378 = vpack.c.b16 %v1514, %v1498
    %v2379 = vpack.c.b16 %v1515, %v1499
    %v2380 = vpack.c.b16 %v1516, %v1500
    %v2381 = vpack.c.b16 %v1517, %v1501
    %v2382 = vpack.c.b16 %v1518, %v1502
    %v2383 = vpack.c.b16 %v1519, %v1503
    %v2384 = vpack.c.b16 %v1520, %v1504
    %v2385 = vpack.c.b16 %v1521, %v1505
    %v2386 = vpack.c.b16 %v1522, %v1506
    %v2387 = vpack.c.b16 %v1523, %v1507
    %v2388 = vpack.c.b16 %v1540, %v1524
    %v2389 = vpack.c.b16 %v1541, %v1525
    %v2390 = vpack.c.b16 %v1542, %v1526
    %v2391 = vpack.c.b16 %v1543, %v1527
    %v2392 = vpack.c.b16 %v1544, %v1528
    %v2393 = vpack.c.b16 %v1545, %v1529
    %v2394 = vpack.c.b16 %v1546, %v1530
    %v2395 = vpack.c.b16 %v1547, %v1531
    %v2396 = vpack.c.b16 %v1548, %v1532
    %v2397 = vpack.c.b16 %v1549, %v1533
    %v2398 = vpack.c.b16 %v1550, %v1534
    %v2399 = vpack.c.b16 %v1551, %v1535
    %v2400 = vpack.c.b16 %v1552, %v1536
    %v2401 = vpack.c.b16 %v1553, %v1537
    %v2402 = vpack.c.b16 %v1554, %v1538
    %v2403 = vpack.c.b16 %v1555, %v1539
    %v2404 = vpack.c.b16 %v1572, %v1556
    %v2405 = vpack.c.b16 %v1573, %v1557
    %v2406 = vpack.c.b16 %v1574, %v1558
    %v2407 = vpack.c.b16 %v1575, %v1559
    %v2408 = vpack.c.b16 %v1576, %v1560
    %v2409 = vpack.c.b16 %v1577, %v1561
    %v2410 = vpack.c.b16 %v1578, %v1562
    %v2411 = vpack.c.b16 %v1579, %v1563
    %v2412 = vpack.c.b16 %v1580, %v1564
    %v2413 = vpack.c.b16 %v1581, %v1565
    %v2414 = vpack.c.b16 %v1582, %v1566
    %v2415 = vpack.c.b16 %v1583, %v1567
    %v2416 = vpack.c.b16 %v1584, %v1568
    %v2417 = vpack.c.b16 %v1585, %v1569
    %v2418 = vpack.c.b16 %v1586, %v1570
    %v2419 = vpack.c.b16 %v1587, %v1571
    %v2420 = vpack.c.b16 %v1604, %v1588
    %v2421 = vpack.c.b16 %v1605, %v1589
    %v2422 = vpack.c.b16 %v1606, %v1590
    %v2423 = vpack.c.b16 %v1607, %v1591
    %v2424 = vpack.c.b16 %v1608, %v1592
    %v2425 = vpack.c.b16 %v1609, %v1593
    %v2426 = vpack.c.b16 %v1610, %v1594
    %v2427 = vpack.c.b16 %v1611, %v1595
    %v2428 = vpack.c.b16 %v1612, %v1596
    %v2429 = vpack.c.b16 %v1613, %v1597
    %v2430 = vpack.c.b16 %v1614, %v1598
    %v2431 = vpack.c.b16 %v1615, %v1599
    %v2432 = vpack.c.b16 %v1616, %v1600
    %v2433 = vpack.c.b16 %v1617, %v1601
    %v2434 = vpack.c.b16 %v1618, %v1602
    %v2435 = vpack.c.b16 %v1619, %v1603
    %v2436 = vpack.c.b16 %v1636, %v1620
    %v2437 = vpack.c.b16 %v1637, %v1621
    %v2438 = vpack.c.b16 %v1638, %v1622
    %v2439 = vpack.c.b16 %v1639, %v1623
    %v2440 = vpack.c.b16 %v1640, %v1624
    %v2441 = vpack.c.b16 %v1641, %v1625
    %v2442 = vpack.c.b16 %v1642, %v1626
    %v2443 = vpack.c.b16 %v1643, %v1627
    %v2444 = vpack.c.b16 %v1644, %v1628
    %v2445 = vpack.c.b16 %v1645, %v1629
    %v2446 = vpack.c.b16 %v1646, %v1630
    %v2447 = vpack.c.b16 %v1647, %v1631
    %v2448 = vpack.c.b16 %v1648, %v1632
    %v2449 = vpack.c.b16 %v1649, %v1633
    %v2450 = vpack.c.b16 %v1650, %v1634
    %v2451 = vpack.c.b16 %v1651, %v1635
    %v2452 = vpack.c.b16 %v1668, %v1652
    %v2453 = vpack.c.b16 %v1669, %v1653
    %v2454 = vpack.c.b16 %v1670, %v1654
    %v2455 = vpack.c.b16 %v1671, %v1655
    %v2456 = vpack.c.b16 %v1672, %v1656
    %v2457 = vpack.c.b16 %v1673, %v1657
    %v2458 = vpack.c.b16 %v1674, %v1658
    %v2459 = vpack.c.b16 %v1675, %v1659
    %v2460 = vpack.c.b16 %v1676, %v1660
    %v2461 = vpack.c.b16 %v1677, %v1661
    %v2462 = vpack.c.b16 %v1678, %v1662
    %v2463 = vpack.c.b16 %v1679, %v1663
    %v2464 = vpack.c.b16 %v1680, %v1664
    %v2465 = vpack.c.b16 %v1681, %v1665
    %v2466 = vpack.c.b16 %v1682, %v1666
    %v2467 = vpack.c.b16 %v1683, %v1667
    %v2468 = vpack.c.b16 %v1700, %v1684
    %v2469 = vpack.c.b16 %v1701, %v1685
    %v2470 = vpack.c.b16 %v1702, %v1686
    %v2471 = vpack.c.b16 %v1703, %v1687
    %v2472 = vpack.c.b16 %v1704, %v1688
    %v2473 = vpack.c.b16 %v1705, %v1689
    %v2474 = vpack.c.b16 %v1706, %v1690
    %v2475 = vpack.c.b16 %v1707, %v1691
    %v2476 = vpack.c.b16 %v1708, %v1692
    %v2477 = vpack.c.b16 %v1709, %v1693
    %v2478 = vpack.c.b16 %v1710, %v1694
    %v2479 = vpack.c.b16 %v1711, %v1695
    %v2480 = vpack.c.b16 %v1712, %v1696
    %v2481 = vpack.c.b16 %v1713, %v1697
    %v2482 = vpack.c.b16 %v1714, %v1698
    %v2483 = vpack.c.b16 %v1715, %v1699
    %v2484 = vpack.c.b16 %v1732, %v1716
    %v2485 = vpack.c.b16 %v1733, %v1717
    %v2486 = vpack.c.b16 %v1734, %v1718
    %v2487 = vpack.c.b16 %v1735, %v1719
    %v2488 = vpack.c.b16 %v1736, %v1720
    %v2489 = vpack.c.b16 %v1737, %v1721
    %v2490 = vpack.c.b16 %v1738, %v1722
    %v2491 = vpack.c.b16 %v1739, %v1723
    %v2492 = vpack.c.b16 %v1740, %v1724
    %v2493 = vpack.c.b16 %v1741, %v1725
    %v2494 = vpack.c.b16 %v1742, %v1726
    %v2495 = vpack.c.b16 %v1743, %v1727
    %v2496 = vpack.c.b16 %v1744, %v1728
    %v2497 = vpack.c.b16 %v1745, %v1729
    %v2498 = vpack.c.b16 %v1746, %v1730
    %v2499 = vpack.c.b16 %v1747, %v1731
    %v2500 = vpack.c.b16 %v1764, %v1748
    %v2501 = vpack.c.b16 %v1765, %v1749
    %v2502 = vpack.c.b16 %v1766, %v1750
    %v2503 = vpack.c.b16 %v1767, %v1751
    %v2504 = vpack.c.b16 %v1768, %v1752
    %v2505 = vpack.c.b16 %v1769, %v1753
    %v2506 = vpack.c.b16 %v1770, %v1754
    %v2507 = vpack.c.b16 %v1771, %v1755
    %v2508 = vpack.c.b16 %v1772, %v1756
    %v2509 = vpack.c.b16 %v1773, %v1757
    %v2510 = vpack.c.b16 %v1774, %v1758
    %v2511 = vpack.c.b16 %v1775, %v1759
    %v2512 = vpack.c.b16 %v1776, %v1760
    %v2513 = vpack.c.b16 %v1777, %v1761
    %v2514 = vpack.c.b16 %v1778, %v1762
    %v2515 = vpack.c.b16 %v1779, %v1763
    %v2516 = vpack.c.b16 %v1796, %v1780
    %v2517 = vpack.c.b16 %v1797, %v1781
    %v2518 = vpack.c.b16 %v1798, %v1782
    %v2519 = vpack.c.b16 %v1799, %v1783
    %v2520 = vpack.c.b16 %v1800, %v1784
    %v2521 = vpack.c.b16 %v1801, %v1785
    %v2522 = vpack.c.b16 %v1802, %v1786
    %v2523 = vpack.c.b16 %v1803, %v1787
    %v2524 = vpack.c.b16 %v1804, %v1788
    %v2525 = vpack.c.b16 %v1805, %v1789
    %v2526 = vpack.c.b16 %v1806, %v1790
    %v2527 = vpack.c.b16 %v1807, %v1791
    %v2528 = vpack.c.b16 %v1808, %v1792
    %v2529 = vpack.c.b16 %v1809, %v1793
    %v2530 = vpack.c.b16 %v1810, %v1794
    %v2531 = vpack.c.b16 %v1811, %v1795
    %v2532 = vpack.c.b16 %v1828, %v1812
    %v2533 = vpack.c.b16 %v1829, %v1813
    %v2534 = vpack.c.b16 %v1830, %v1814
    %v2535 = vpack.c.b16 %v1831, %v1815
    %v2536 = vpack.c.b16 %v1832, %v1816
    %v2537 = vpack.c.b16 %v1833, %v1817
    %v2538 = vpack.c.b16 %v1834, %v1818
    %v2539 = vpack.c.b16 %v1835, %v1819
    %v2540 = vpack.c.b16 %v1836, %v1820
    %v2541 = vpack.c.b16 %v1837, %v1821
    %v2542 = vpack.c.b16 %v1838, %v1822
    %v2543 = vpack.c.b16 %v1839, %v1823
    %v2544 = vpack.c.b16 %v1840, %v1824
    %v2545 = vpack.c.b16 %v1841, %v1825
    %v2546 = vpack.c.b16 %v1842, %v1826
    %v2547 = vpack.c.b16 %v1843, %v1827
    %v2548 = vpack.c.b16 %v1860, %v1844
    %v2549 = vpack.c.b16 %v1861, %v1845
    %v2550 = vpack.c.b16 %v1862, %v1846
    %v2551 = vpack.c.b16 %v1863, %v1847
    %v2552 = vpack.c.b16 %v1864, %v1848
    %v2553 = vpack.c.b16 %v1865, %v1849
    %v2554 = vpack.c.b16 %v1866, %v1850
    %v2555 = vpack.c.b16 %v1867, %v1851
    %v2556 = vpack.c.b16 %v1868, %v1852
    %v2557 = vpack.c.b16 %v1869, %v1853
    %v2558 = vpack.c.b16 %v1870, %v1854
    %v2559 = vpack.c.b16 %v1871, %v1855
    %v2560 = vpack.c.b16 %v1872, %v1856
    %v2561 = vpack.c.b16 %v1873, %v1857
    %v2562 = vpack.c.b16 %v1874, %v1858
    %v2563 = vpack.c.b16 %v1875, %v1859
    %v2564 = vpack.c.b16 %v1892, %v1876
    %v2565 = vpack.c.b16 %v1893, %v1877
    %v2566 = vpack.c.b16 %v1894, %v1878
    %v2567 = vpack.c.b16 %v1895, %v1879
    %v2568 = vpack.c.b16 %v1896, %v1880
    %v2569 = vpack.c.b16 %v1897, %v1881
    %v2570 = vpack.c.b16 %v1898, %v1882
    %v2571 = vpack.c.b16 %v1899, %v1883
    %v2572 = vpack.c.b16 %v1900, %v1884
    %v2573 = vpack.c.b16 %v1901, %v1885
    %v2574 = vpack.c.b16 %v1902, %v1886
    %v2575 = vpack.c.b16 %v1903, %v1887
    %v2576 = vpack.c.b16 %v1904, %v1888
    %v2577 = vpack.c.b16 %v1905, %v1889
    %v2578 = vpack.c.b16 %v1906, %v1890
    %v2579 = vpack.c.b16 %v1907, %v1891
    %v2580 = vpack.c.b16 %v1924, %v1908
    %v2581 = vpack.c.b16 %v1925, %v1909
    %v2582 = vpack.c.b16 %v1926, %v1910
    %v2583 = vpack.c.b16 %v1927, %v1911
    %v2584 = vpack.c.b16 %v1928, %v1912
    %v2585 = vpack.c.b16 %v1929, %v1913
    %v2586 = vpack.c.b16 %v1930, %v1914
    %v2587 = vpack.c.b16 %v1931, %v1915
    %v2588 = vpack.c.b16 %v1932, %v1916
    %v2589 = vpack.c.b16 %v1933, %v1917
    %v2590 = vpack.c.b16 %v1934, %v1918
    %v2591 = vpack.c.b16 %v1935, %v1919
    %v2592 = vpack.c.b16 %v1936, %v1920
    %v2593 = vpack.c.b16 %v1937, %v1921
    %v2594 = vpack.c.b16 %v1938, %v1922
    %v2595 = vpack.c.b16 %v1939, %v1923
    %v2596 = vpack.c.b16 %v1956, %v1940
    %v2597 = vpack.c.b16 %v1957, %v1941
    %v2598 = vpack.c.b16 %v1958, %v1942
    %v2599 = vpack.c.b16 %v1959, %v1943
    %v2600 = vpack.c.b16 %v1960, %v1944
    %v2601 = vpack.c.b16 %v1961, %v1945
    %v2602 = vpack.c.b16 %v1962, %v1946
    %v2603 = vpack.c.b16 %v1963, %v1947
    %v2604 = vpack.c.b16 %v1964, %v1948
    %v2605 = vpack.c.b16 %v1965, %v1949
    %v2606 = vpack.c.b16 %v1966, %v1950
    %v2607 = vpack.c.b16 %v1967, %v1951
    %v2608 = vpack.c.b16 %v1968, %v1952
    %v2609 = vpack.c.b16 %v1969, %v1953
    %v2610 = vpack.c.b16 %v1970, %v1954
    %v2611 = vpack.c.b16 %v1971, %v1955
    %v2612 = vpack.c.b16 %v1988, %v1972
    %v2613 = vpack.c.b16 %v1989, %v1973
    %v2614 = vpack.c.b16 %v1990, %v1974
    %v2615 = vpack.c.b16 %v1991, %v1975
    %v2616 = vpack.c.b16 %v1992, %v1976
    %v2617 = vpack.c.b16 %v1993, %v1977
    %v2618 = vpack.c.b16 %v1994, %v1978
    %v2619 = vpack.c.b16 %v1995, %v1979
    %v2620 = vpack.c.b16 %v1996, %v1980
    %v2621 = vpack.c.b16 %v1997, %v1981
    %v2622 = vpack.c.b16 %v1998, %v1982
    %v2623 = vpack.c.b16 %v1999, %v1983
    %v2624 = vpack.c.b16 %v2000, %v1984
    %v2625 = vpack.c.b16 %v2001, %v1985
    %v2626 = vpack.c.b16 %v2002, %v1986
    %v2627 = vpack.c.b16 %v2003, %v1987
    %v2628 = vpack.c.b16 %v2020, %v2004
    %v2629 = vpack.c.b16 %v2021, %v2005
    %v2630 = vpack.c.b16 %v2022, %v2006
    %v2631 = vpack.c.b16 %v2023, %v2007
    %v2632 = vpack.c.b16 %v2024, %v2008
    %v2633 = vpack.c.b16 %v2025, %v2009
    %v2634 = vpack.c.b16 %v2026, %v2010
    %v2635 = vpack.c.b16 %v2027, %v2011
    %v2636 = vpack.c.b16 %v2028, %v2012
    %v2637 = vpack.c.b16 %v2029, %v2013
    %v2638 = vpack.c.b16 %v2030, %v2014
    %v2639 = vpack.c.b16 %v2031, %v2015
    %v2640 = vpack.c.b16 %v2032, %v2016
    %v2641 = vpack.c.b16 %v2033, %v2017
    %v2642 = vpack.c.b16 %v2034, %v2018
    %v2643 = vpack.c.b16 %v2035, %v2019
    %v2644 = vpack.c.b16 %v2052, %v2036
    %v2645 = vpack.c.b16 %v2053, %v2037
    %v2646 = vpack.c.b16 %v2054, %v2038
    %v2647 = vpack.c.b16 %v2055, %v2039
    %v2648 = vpack.c.b16 %v2056, %v2040
    %v2649 = vpack.c.b16 %v2057, %v2041
    %v2650 = vpack.c.b16 %v2058, %v2042
    %v2651 = vpack.c.b16 %v2059, %v2043
    %v2652 = vpack.c.b16 %v2060, %v2044
    %v2653 = vpack.c.b16 %v2061, %v2045
    %v2654 = vpack.c.b16 %v2062, %v2046
    %v2655 = vpack.c.b16 %v2063, %v2047
    %v2656 = vpack.c.b16 %v2064, %v2048
    %v2657 = vpack.c.b16 %v2065, %v2049
    %v2658 = vpack.c.b16 %v2066, %v2050
    %v2659 = vpack.c.b16 %v2067, %v2051
    %v2660 = vpack.c.b16 %v2084, %v2068
    %v2661 = vpack.c.b16 %v2085, %v2069
    %v2662 = vpack.c.b16 %v2086, %v2070
    %v2663 = vpack.c.b16 %v2087, %v2071
    %v2664 = vpack.c.b16 %v2088, %v2072
    %v2665 = vpack.c.b16 %v2089, %v2073
    %v2666 = vpack.c.b16 %v2090, %v2074
    %v2667 = vpack.c.b16 %v2091, %v2075
    %v2668 = vpack.c.b16 %v2092, %v2076
    %v2669 = vpack.c.b16 %v2093, %v2077
    %v2670 = vpack.c.b16 %v2094, %v2078
    %v2671 = vpack.c.b16 %v2095, %v2079
    %v2672 = vpack.c.b16 %v2096, %v2080
    %v2673 = vpack.c.b16 %v2097, %v2081
    %v2674 = vpack.c.b16 %v2098, %v2082
    %v2675 = vpack.c.b16 %v2099, %v2083
    %v2676 = vpack.c.b16 %v2116, %v2100
    %v2677 = vpack.c.b16 %v2117, %v2101
    %v2678 = vpack.c.b16 %v2118, %v2102
    %v2679 = vpack.c.b16 %v2119, %v2103
    %v2680 = vpack.c.b16 %v2120, %v2104
    %v2681 = vpack.c.b16 %v2121, %v2105
    %v2682 = vpack.c.b16 %v2122, %v2106
    %v2683 = vpack.c.b16 %v2123, %v2107
    %v2684 = vpack.c.b16 %v2124, %v2108
    %v2685 = vpack.c.b16 %v2125, %v2109
    %v2686 = vpack.c.b16 %v2126, %v2110
    %v2687 = vpack.c.b16 %v2127, %v2111
    %v2688 = vpack.c.b16 %v2128, %v2112
    %v2689 = vpack.c.b16 %v2129, %v2113
    %v2690 = vpack.c.b16 %v2130, %v2114
    %v2691 = vpack.c.b16 %v2131, %v2115
    %v2692 = vpack.c.b16 %v2148, %v2132
    %v2693 = vpack.c.b16 %v2149, %v2133
    %v2694 = vpack.c.b16 %v2150, %v2134
    %v2695 = vpack.c.b16 %v2151, %v2135
    %v2696 = vpack.c.b16 %v2152, %v2136
    %v2697 = vpack.c.b16 %v2153, %v2137
    %v2698 = vpack.c.b16 %v2154, %v2138
    %v2699 = vpack.c.b16 %v2155, %v2139
    %v2700 = vpack.c.b16 %v2156, %v2140
    %v2701 = vpack.c.b16 %v2157, %v2141
    %v2702 = vpack.c.b16 %v2158, %v2142
    %v2703 = vpack.c.b16 %v2159, %v2143
    %v2704 = vpack.c.b16 %v2160, %v2144
    %v2705 = vpack.c.b16 %v2161, %v2145
    %v2706 = vpack.c.b16 %v2162, %v2146
    %v2707 = vpack.c.b16 %v2163, %v2147
    %v2708 = vpack.c.b16 %v2180, %v2164
    %v2709 = vpack.c.b16 %v2181, %v2165
    %v2710 = vpack.c.b16 %v2182, %v2166
    %v2711 = vpack.c.b16 %v2183, %v2167
    %v2712 = vpack.c.b16 %v2184, %v2168
    %v2713 = vpack.c.b16 %v2185, %v2169
    %v2714 = vpack.c.b16 %v2186, %v2170
    %v2715 = vpack.c.b16 %v2187, %v2171
    %v2716 = vpack.c.b16 %v2188, %v2172
    %v2717 = vpack.c.b16 %v2189, %v2173
    %v2718 = vpack.c.b16 %v2190, %v2174
    %v2719 = vpack.c.b16 %v2191, %v2175
    %v2720 = vpack.c.b16 %v2192, %v2176
    %v2721 = vpack.c.b16 %v2193, %v2177
    %v2722 = vpack.c.b16 %v2194, %v2178
    %v2723 = vpack.c.b16 %v2195, %v2179
    %v2724 = vpack.c.b16 %v2212, %v2196
    %v2725 = vpack.c.b16 %v2213, %v2197
    %v2726 = vpack.c.b16 %v2214, %v2198
    %v2727 = vpack.c.b16 %v2215, %v2199
    %v2728 = vpack.c.b16 %v2216, %v2200
    %v2729 = vpack.c.b16 %v2217, %v2201
    %v2730 = vpack.c.b16 %v2218, %v2202
    %v2731 = vpack.c.b16 %v2219, %v2203
    %v2732 = vpack.c.b16 %v2220, %v2204
    %v2733 = vpack.c.b16 %v2221, %v2205
    %v2734 = vpack.c.b16 %v2222, %v2206
    %v2735 = vpack.c.b16 %v2223, %v2207
    %v2736 = vpack.c.b16 %v2224, %v2208
    %v2737 = vpack.c.b16 %v2225, %v2209
    %v2738 = vpack.c.b16 %v2226, %v2210
    %v2739 = vpack.c.b16 %v2227, %v2211
    %3252 = vmatpush.bf16.msra.mxu0 %v2340
    %3253 = vmatpush.bf16.msra.mxu0 %v2324
    %3254 = vmatpush.bf16.msra.mxu0 %v2308
    %3255 = vmatpush.bf16.msra.mxu0 %v2292
    %3256 = vmatpush.bf16.msra.mxu0 %v2276
    %3257 = vmatpush.bf16.msra.mxu0 %v2260
    %3258 = vmatpush.bf16.msra.mxu0 %v2244
    %3259 = vmatpush.bf16.msra.mxu0 %v2228
    %3260 = vmatmul.bf16.gmra.mxu0 %v684
    %v3261 = vpop.f32.mrf.mxu0
    %v3262 = vadd.f32 %v646, %v3261
    %v3263 = vpop.f32.mrf.mxu0
    %3264 = vdwg.mxu0
    %3265 = vmatpush.bf16.msra.mxu0 %v2468
    %3266 = vmatpush.bf16.msra.mxu0 %v2452
    %3267 = vmatpush.bf16.msra.mxu0 %v2436
    %3268 = vmatpush.bf16.msra.mxu0 %v2420
    %3269 = vmatpush.bf16.msra.mxu0 %v2404
    %3270 = vmatpush.bf16.msra.mxu0 %v2388
    %3271 = vmatpush.bf16.msra.mxu0 %v2372
    %3272 = vmatpush.bf16.msra.mxu0 %v2356
    %3273 = vmatmul.bf16.gmra.mxu0 %v685
    %v3274 = vpop.f32.mrf.mxu0
    %v3275 = vadd.f32 %v3262, %v3274
    %v3276 = vpop.f32.mrf.mxu0
    %3277 = vdwg.mxu0
    %3278 = vmatpush.bf16.msra.mxu0 %v2596
    %3279 = vmatpush.bf16.msra.mxu0 %v2580
    %3280 = vmatpush.bf16.msra.mxu0 %v2564
    %3281 = vmatpush.bf16.msra.mxu0 %v2548
    %3282 = vmatpush.bf16.msra.mxu0 %v2532
    %3283 = vmatpush.bf16.msra.mxu0 %v2516
    %3284 = vmatpush.bf16.msra.mxu0 %v2500
    %3285 = vmatpush.bf16.msra.mxu0 %v2484
    %3286 = vmatmul.bf16.gmra.mxu0 %v686
    %v3287 = vpop.f32.mrf.mxu0
    %v3288 = vadd.f32 %v3275, %v3287
    %v3289 = vpop.f32.mrf.mxu0
    %3290 = vdwg.mxu0
    %3291 = vmatpush.bf16.msra.mxu0 %v2724
    %3292 = vmatpush.bf16.msra.mxu0 %v2708
    %3293 = vmatpush.bf16.msra.mxu0 %v2692
    %3294 = vmatpush.bf16.msra.mxu0 %v2676
    %3295 = vmatpush.bf16.msra.mxu0 %v2660
    %3296 = vmatpush.bf16.msra.mxu0 %v2644
    %3297 = vmatpush.bf16.msra.mxu0 %v2628
    %3298 = vmatpush.bf16.msra.mxu0 %v2612
    %3299 = vmatmul.bf16.gmra.mxu0 %v687
    %v3300 = vpop.f32.mrf.mxu0
    %v3301 = vadd.f32 %v3288, %v3300
    %v3302 = vpop.f32.mrf.mxu0
    %3303 = vdwg.mxu0
    %3304 = vmatpush.bf16.msra.mxu0 %v2341
    %3305 = vmatpush.bf16.msra.mxu0 %v2325
    %3306 = vmatpush.bf16.msra.mxu0 %v2309
    %3307 = vmatpush.bf16.msra.mxu0 %v2293
    %3308 = vmatpush.bf16.msra.mxu0 %v2277
    %3309 = vmatpush.bf16.msra.mxu0 %v2261
    %3310 = vmatpush.bf16.msra.mxu0 %v2245
    %3311 = vmatpush.bf16.msra.mxu0 %v2229
    %3312 = vmatmul.bf16.gmra.mxu0 %v684
    %v3313 = vpop.f32.mrf.mxu0
    %v3314 = vadd.f32 %v647, %v3313
    %v3315 = vpop.f32.mrf.mxu0
    %3316 = vdwg.mxu0
    %3317 = vmatpush.bf16.msra.mxu0 %v2469
    %3318 = vmatpush.bf16.msra.mxu0 %v2453
    %3319 = vmatpush.bf16.msra.mxu0 %v2437
    %3320 = vmatpush.bf16.msra.mxu0 %v2421
    %3321 = vmatpush.bf16.msra.mxu0 %v2405
    %3322 = vmatpush.bf16.msra.mxu0 %v2389
    %3323 = vmatpush.bf16.msra.mxu0 %v2373
    %3324 = vmatpush.bf16.msra.mxu0 %v2357
    %3325 = vmatmul.bf16.gmra.mxu0 %v685
    %v3326 = vpop.f32.mrf.mxu0
    %v3327 = vadd.f32 %v3314, %v3326
    %v3328 = vpop.f32.mrf.mxu0
    %3329 = vdwg.mxu0
    %3330 = vmatpush.bf16.msra.mxu0 %v2597
    %3331 = vmatpush.bf16.msra.mxu0 %v2581
    %3332 = vmatpush.bf16.msra.mxu0 %v2565
    %3333 = vmatpush.bf16.msra.mxu0 %v2549
    %3334 = vmatpush.bf16.msra.mxu0 %v2533
    %3335 = vmatpush.bf16.msra.mxu0 %v2517
    %3336 = vmatpush.bf16.msra.mxu0 %v2501
    %3337 = vmatpush.bf16.msra.mxu0 %v2485
    %3338 = vmatmul.bf16.gmra.mxu0 %v686
    %v3339 = vpop.f32.mrf.mxu0
    %v3340 = vadd.f32 %v3327, %v3339
    %v3341 = vpop.f32.mrf.mxu0
    %3342 = vdwg.mxu0
    %3343 = vmatpush.bf16.msra.mxu0 %v2725
    %3344 = vmatpush.bf16.msra.mxu0 %v2709
    %3345 = vmatpush.bf16.msra.mxu0 %v2693
    %3346 = vmatpush.bf16.msra.mxu0 %v2677
    %3347 = vmatpush.bf16.msra.mxu0 %v2661
    %3348 = vmatpush.bf16.msra.mxu0 %v2645
    %3349 = vmatpush.bf16.msra.mxu0 %v2629
    %3350 = vmatpush.bf16.msra.mxu0 %v2613
    %3351 = vmatmul.bf16.gmra.mxu0 %v687
    %v3352 = vpop.f32.mrf.mxu0
    %v3353 = vadd.f32 %v3340, %v3352
    %v3354 = vpop.f32.mrf.mxu0
    %3355 = vdwg.mxu0
    %3356 = vmatpush.bf16.msra.mxu0 %v2342
    %3357 = vmatpush.bf16.msra.mxu0 %v2326
    %3358 = vmatpush.bf16.msra.mxu0 %v2310
    %3359 = vmatpush.bf16.msra.mxu0 %v2294
    %3360 = vmatpush.bf16.msra.mxu0 %v2278
    %3361 = vmatpush.bf16.msra.mxu0 %v2262
    %3362 = vmatpush.bf16.msra.mxu0 %v2246
    %3363 = vmatpush.bf16.msra.mxu0 %v2230
    %3364 = vmatmul.bf16.gmra.mxu0 %v684
    %v3365 = vpop.f32.mrf.mxu0
    %v3366 = vadd.f32 %v648, %v3365
    %v3367 = vpop.f32.mrf.mxu0
    %3368 = vdwg.mxu0
    %3369 = vmatpush.bf16.msra.mxu0 %v2470
    %3370 = vmatpush.bf16.msra.mxu0 %v2454
    %3371 = vmatpush.bf16.msra.mxu0 %v2438
    %3372 = vmatpush.bf16.msra.mxu0 %v2422
    %3373 = vmatpush.bf16.msra.mxu0 %v2406
    %3374 = vmatpush.bf16.msra.mxu0 %v2390
    %3375 = vmatpush.bf16.msra.mxu0 %v2374
    %3376 = vmatpush.bf16.msra.mxu0 %v2358
    %3377 = vmatmul.bf16.gmra.mxu0 %v685
    %v3378 = vpop.f32.mrf.mxu0
    %v3379 = vadd.f32 %v3366, %v3378
    %v3380 = vpop.f32.mrf.mxu0
    %3381 = vdwg.mxu0
    %3382 = vmatpush.bf16.msra.mxu0 %v2598
    %3383 = vmatpush.bf16.msra.mxu0 %v2582
    %3384 = vmatpush.bf16.msra.mxu0 %v2566
    %3385 = vmatpush.bf16.msra.mxu0 %v2550
    %3386 = vmatpush.bf16.msra.mxu0 %v2534
    %3387 = vmatpush.bf16.msra.mxu0 %v2518
    %3388 = vmatpush.bf16.msra.mxu0 %v2502
    %3389 = vmatpush.bf16.msra.mxu0 %v2486
    %3390 = vmatmul.bf16.gmra.mxu0 %v686
    %v3391 = vpop.f32.mrf.mxu0
    %v3392 = vadd.f32 %v3379, %v3391
    %v3393 = vpop.f32.mrf.mxu0
    %3394 = vdwg.mxu0
    %3395 = vmatpush.bf16.msra.mxu0 %v2726
    %3396 = vmatpush.bf16.msra.mxu0 %v2710
    %3397 = vmatpush.bf16.msra.mxu0 %v2694
    %3398 = vmatpush.bf16.msra.mxu0 %v2678
    %3399 = vmatpush.bf16.msra.mxu0 %v2662
    %3400 = vmatpush.bf16.msra.mxu0 %v2646
    %3401 = vmatpush.bf16.msra.mxu0 %v2630
    %3402 = vmatpush.bf16.msra.mxu0 %v2614
    %3403 = vmatmul.bf16.gmra.mxu0 %v687
    %v3404 = vpop.f32.mrf.mxu0
    %v3405 = vadd.f32 %v3392, %v3404
    %v3406 = vpop.f32.mrf.mxu0
    %3407 = vdwg.mxu0
    %3408 = vmatpush.bf16.msra.mxu0 %v2343
    %3409 = vmatpush.bf16.msra.mxu0 %v2327
    %3410 = vmatpush.bf16.msra.mxu0 %v2311
    %3411 = vmatpush.bf16.msra.mxu0 %v2295
    %3412 = vmatpush.bf16.msra.mxu0 %v2279
    %3413 = vmatpush.bf16.msra.mxu0 %v2263
    %3414 = vmatpush.bf16.msra.mxu0 %v2247
    %3415 = vmatpush.bf16.msra.mxu0 %v2231
    %3416 = vmatmul.bf16.gmra.mxu0 %v684
    %v3417 = vpop.f32.mrf.mxu0
    %v3418 = vadd.f32 %v649, %v3417
    %v3419 = vpop.f32.mrf.mxu0
    %3420 = vdwg.mxu0
    %3421 = vmatpush.bf16.msra.mxu0 %v2471
    %3422 = vmatpush.bf16.msra.mxu0 %v2455
    %3423 = vmatpush.bf16.msra.mxu0 %v2439
    %3424 = vmatpush.bf16.msra.mxu0 %v2423
    %3425 = vmatpush.bf16.msra.mxu0 %v2407
    %3426 = vmatpush.bf16.msra.mxu0 %v2391
    %3427 = vmatpush.bf16.msra.mxu0 %v2375
    %3428 = vmatpush.bf16.msra.mxu0 %v2359
    %3429 = vmatmul.bf16.gmra.mxu0 %v685
    %v3430 = vpop.f32.mrf.mxu0
    %v3431 = vadd.f32 %v3418, %v3430
    %v3432 = vpop.f32.mrf.mxu0
    %3433 = vdwg.mxu0
    %3434 = vmatpush.bf16.msra.mxu0 %v2599
    %3435 = vmatpush.bf16.msra.mxu0 %v2583
    %3436 = vmatpush.bf16.msra.mxu0 %v2567
    %3437 = vmatpush.bf16.msra.mxu0 %v2551
    %3438 = vmatpush.bf16.msra.mxu0 %v2535
    %3439 = vmatpush.bf16.msra.mxu0 %v2519
    %3440 = vmatpush.bf16.msra.mxu0 %v2503
    %3441 = vmatpush.bf16.msra.mxu0 %v2487
    %3442 = vmatmul.bf16.gmra.mxu0 %v686
    %v3443 = vpop.f32.mrf.mxu0
    %v3444 = vadd.f32 %v3431, %v3443
    %v3445 = vpop.f32.mrf.mxu0
    %3446 = vdwg.mxu0
    %3447 = vmatpush.bf16.msra.mxu0 %v2727
    %3448 = vmatpush.bf16.msra.mxu0 %v2711
    %3449 = vmatpush.bf16.msra.mxu0 %v2695
    %3450 = vmatpush.bf16.msra.mxu0 %v2679
    %3451 = vmatpush.bf16.msra.mxu0 %v2663
    %3452 = vmatpush.bf16.msra.mxu0 %v2647
    %3453 = vmatpush.bf16.msra.mxu0 %v2631
    %3454 = vmatpush.bf16.msra.mxu0 %v2615
    %3455 = vmatmul.bf16.gmra.mxu0 %v687
    %v3456 = vpop.f32.mrf.mxu0
    %v3457 = vadd.f32 %v3444, %v3456
    %v3458 = vpop.f32.mrf.mxu0
    %3459 = vdwg.mxu0
    %3460 = vmatpush.bf16.msra.mxu0 %v2344
    %3461 = vmatpush.bf16.msra.mxu0 %v2328
    %3462 = vmatpush.bf16.msra.mxu0 %v2312
    %3463 = vmatpush.bf16.msra.mxu0 %v2296
    %3464 = vmatpush.bf16.msra.mxu0 %v2280
    %3465 = vmatpush.bf16.msra.mxu0 %v2264
    %3466 = vmatpush.bf16.msra.mxu0 %v2248
    %3467 = vmatpush.bf16.msra.mxu0 %v2232
    %3468 = vmatmul.bf16.gmra.mxu0 %v684
    %v3469 = vpop.f32.mrf.mxu0
    %v3470 = vadd.f32 %v650, %v3469
    %v3471 = vpop.f32.mrf.mxu0
    %3472 = vdwg.mxu0
    %3473 = vmatpush.bf16.msra.mxu0 %v2472
    %3474 = vmatpush.bf16.msra.mxu0 %v2456
    %3475 = vmatpush.bf16.msra.mxu0 %v2440
    %3476 = vmatpush.bf16.msra.mxu0 %v2424
    %3477 = vmatpush.bf16.msra.mxu0 %v2408
    %3478 = vmatpush.bf16.msra.mxu0 %v2392
    %3479 = vmatpush.bf16.msra.mxu0 %v2376
    %3480 = vmatpush.bf16.msra.mxu0 %v2360
    %3481 = vmatmul.bf16.gmra.mxu0 %v685
    %v3482 = vpop.f32.mrf.mxu0
    %v3483 = vadd.f32 %v3470, %v3482
    %v3484 = vpop.f32.mrf.mxu0
    %3485 = vdwg.mxu0
    %3486 = vmatpush.bf16.msra.mxu0 %v2600
    %3487 = vmatpush.bf16.msra.mxu0 %v2584
    %3488 = vmatpush.bf16.msra.mxu0 %v2568
    %3489 = vmatpush.bf16.msra.mxu0 %v2552
    %3490 = vmatpush.bf16.msra.mxu0 %v2536
    %3491 = vmatpush.bf16.msra.mxu0 %v2520
    %3492 = vmatpush.bf16.msra.mxu0 %v2504
    %3493 = vmatpush.bf16.msra.mxu0 %v2488
    %3494 = vmatmul.bf16.gmra.mxu0 %v686
    %v3495 = vpop.f32.mrf.mxu0
    %v3496 = vadd.f32 %v3483, %v3495
    %v3497 = vpop.f32.mrf.mxu0
    %3498 = vdwg.mxu0
    %3499 = vmatpush.bf16.msra.mxu0 %v2728
    %3500 = vmatpush.bf16.msra.mxu0 %v2712
    %3501 = vmatpush.bf16.msra.mxu0 %v2696
    %3502 = vmatpush.bf16.msra.mxu0 %v2680
    %3503 = vmatpush.bf16.msra.mxu0 %v2664
    %3504 = vmatpush.bf16.msra.mxu0 %v2648
    %3505 = vmatpush.bf16.msra.mxu0 %v2632
    %3506 = vmatpush.bf16.msra.mxu0 %v2616
    %3507 = vmatmul.bf16.gmra.mxu0 %v687
    %v3508 = vpop.f32.mrf.mxu0
    %v3509 = vadd.f32 %v3496, %v3508
    %v3510 = vpop.f32.mrf.mxu0
    %3511 = vdwg.mxu0
    %3512 = vmatpush.bf16.msra.mxu0 %v2345
    %3513 = vmatpush.bf16.msra.mxu0 %v2329
    %3514 = vmatpush.bf16.msra.mxu0 %v2313
    %3515 = vmatpush.bf16.msra.mxu0 %v2297
    %3516 = vmatpush.bf16.msra.mxu0 %v2281
    %3517 = vmatpush.bf16.msra.mxu0 %v2265
    %3518 = vmatpush.bf16.msra.mxu0 %v2249
    %3519 = vmatpush.bf16.msra.mxu0 %v2233
    %3520 = vmatmul.bf16.gmra.mxu0 %v684
    %v3521 = vpop.f32.mrf.mxu0
    %v3522 = vadd.f32 %v651, %v3521
    %v3523 = vpop.f32.mrf.mxu0
    %3524 = vdwg.mxu0
    %3525 = vmatpush.bf16.msra.mxu0 %v2473
    %3526 = vmatpush.bf16.msra.mxu0 %v2457
    %3527 = vmatpush.bf16.msra.mxu0 %v2441
    %3528 = vmatpush.bf16.msra.mxu0 %v2425
    %3529 = vmatpush.bf16.msra.mxu0 %v2409
    %3530 = vmatpush.bf16.msra.mxu0 %v2393
    %3531 = vmatpush.bf16.msra.mxu0 %v2377
    %3532 = vmatpush.bf16.msra.mxu0 %v2361
    %3533 = vmatmul.bf16.gmra.mxu0 %v685
    %v3534 = vpop.f32.mrf.mxu0
    %v3535 = vadd.f32 %v3522, %v3534
    %v3536 = vpop.f32.mrf.mxu0
    %3537 = vdwg.mxu0
    %3538 = vmatpush.bf16.msra.mxu0 %v2601
    %3539 = vmatpush.bf16.msra.mxu0 %v2585
    %3540 = vmatpush.bf16.msra.mxu0 %v2569
    %3541 = vmatpush.bf16.msra.mxu0 %v2553
    %3542 = vmatpush.bf16.msra.mxu0 %v2537
    %3543 = vmatpush.bf16.msra.mxu0 %v2521
    %3544 = vmatpush.bf16.msra.mxu0 %v2505
    %3545 = vmatpush.bf16.msra.mxu0 %v2489
    %3546 = vmatmul.bf16.gmra.mxu0 %v686
    %v3547 = vpop.f32.mrf.mxu0
    %v3548 = vadd.f32 %v3535, %v3547
    %v3549 = vpop.f32.mrf.mxu0
    %3550 = vdwg.mxu0
    %3551 = vmatpush.bf16.msra.mxu0 %v2729
    %3552 = vmatpush.bf16.msra.mxu0 %v2713
    %3553 = vmatpush.bf16.msra.mxu0 %v2697
    %3554 = vmatpush.bf16.msra.mxu0 %v2681
    %3555 = vmatpush.bf16.msra.mxu0 %v2665
    %3556 = vmatpush.bf16.msra.mxu0 %v2649
    %3557 = vmatpush.bf16.msra.mxu0 %v2633
    %3558 = vmatpush.bf16.msra.mxu0 %v2617
    %3559 = vmatmul.bf16.gmra.mxu0 %v687
    %v3560 = vpop.f32.mrf.mxu0
    %v3561 = vadd.f32 %v3548, %v3560
    %v3562 = vpop.f32.mrf.mxu0
    %3563 = vdwg.mxu0
    %3564 = vmatpush.bf16.msra.mxu0 %v2346
    %3565 = vmatpush.bf16.msra.mxu0 %v2330
    %3566 = vmatpush.bf16.msra.mxu0 %v2314
    %3567 = vmatpush.bf16.msra.mxu0 %v2298
    %3568 = vmatpush.bf16.msra.mxu0 %v2282
    %3569 = vmatpush.bf16.msra.mxu0 %v2266
    %3570 = vmatpush.bf16.msra.mxu0 %v2250
    %3571 = vmatpush.bf16.msra.mxu0 %v2234
    %3572 = vmatmul.bf16.gmra.mxu0 %v684
    %v3573 = vpop.f32.mrf.mxu0
    %v3574 = vadd.f32 %v652, %v3573
    %v3575 = vpop.f32.mrf.mxu0
    %3576 = vdwg.mxu0
    %3577 = vmatpush.bf16.msra.mxu0 %v2474
    %3578 = vmatpush.bf16.msra.mxu0 %v2458
    %3579 = vmatpush.bf16.msra.mxu0 %v2442
    %3580 = vmatpush.bf16.msra.mxu0 %v2426
    %3581 = vmatpush.bf16.msra.mxu0 %v2410
    %3582 = vmatpush.bf16.msra.mxu0 %v2394
    %3583 = vmatpush.bf16.msra.mxu0 %v2378
    %3584 = vmatpush.bf16.msra.mxu0 %v2362
    %3585 = vmatmul.bf16.gmra.mxu0 %v685
    %v3586 = vpop.f32.mrf.mxu0
    %v3587 = vadd.f32 %v3574, %v3586
    %v3588 = vpop.f32.mrf.mxu0
    %3589 = vdwg.mxu0
    %3590 = vmatpush.bf16.msra.mxu0 %v2602
    %3591 = vmatpush.bf16.msra.mxu0 %v2586
    %3592 = vmatpush.bf16.msra.mxu0 %v2570
    %3593 = vmatpush.bf16.msra.mxu0 %v2554
    %3594 = vmatpush.bf16.msra.mxu0 %v2538
    %3595 = vmatpush.bf16.msra.mxu0 %v2522
    %3596 = vmatpush.bf16.msra.mxu0 %v2506
    %3597 = vmatpush.bf16.msra.mxu0 %v2490
    %3598 = vmatmul.bf16.gmra.mxu0 %v686
    %v3599 = vpop.f32.mrf.mxu0
    %v3600 = vadd.f32 %v3587, %v3599
    %v3601 = vpop.f32.mrf.mxu0
    %3602 = vdwg.mxu0
    %3603 = vmatpush.bf16.msra.mxu0 %v2730
    %3604 = vmatpush.bf16.msra.mxu0 %v2714
    %3605 = vmatpush.bf16.msra.mxu0 %v2698
    %3606 = vmatpush.bf16.msra.mxu0 %v2682
    %3607 = vmatpush.bf16.msra.mxu0 %v2666
    %3608 = vmatpush.bf16.msra.mxu0 %v2650
    %3609 = vmatpush.bf16.msra.mxu0 %v2634
    %3610 = vmatpush.bf16.msra.mxu0 %v2618
    %3611 = vmatmul.bf16.gmra.mxu0 %v687
    %v3612 = vpop.f32.mrf.mxu0
    %v3613 = vadd.f32 %v3600, %v3612
    %v3614 = vpop.f32.mrf.mxu0
    %3615 = vdwg.mxu0
    %3616 = vmatpush.bf16.msra.mxu0 %v2347
    %3617 = vmatpush.bf16.msra.mxu0 %v2331
    %3618 = vmatpush.bf16.msra.mxu0 %v2315
    %3619 = vmatpush.bf16.msra.mxu0 %v2299
    %3620 = vmatpush.bf16.msra.mxu0 %v2283
    %3621 = vmatpush.bf16.msra.mxu0 %v2267
    %3622 = vmatpush.bf16.msra.mxu0 %v2251
    %3623 = vmatpush.bf16.msra.mxu0 %v2235
    %3624 = vmatmul.bf16.gmra.mxu0 %v684
    %v3625 = vpop.f32.mrf.mxu0
    %v3626 = vadd.f32 %v653, %v3625
    %v3627 = vpop.f32.mrf.mxu0
    %3628 = vdwg.mxu0
    %3629 = vmatpush.bf16.msra.mxu0 %v2475
    %3630 = vmatpush.bf16.msra.mxu0 %v2459
    %3631 = vmatpush.bf16.msra.mxu0 %v2443
    %3632 = vmatpush.bf16.msra.mxu0 %v2427
    %3633 = vmatpush.bf16.msra.mxu0 %v2411
    %3634 = vmatpush.bf16.msra.mxu0 %v2395
    %3635 = vmatpush.bf16.msra.mxu0 %v2379
    %3636 = vmatpush.bf16.msra.mxu0 %v2363
    %3637 = vmatmul.bf16.gmra.mxu0 %v685
    %v3638 = vpop.f32.mrf.mxu0
    %v3639 = vadd.f32 %v3626, %v3638
    %v3640 = vpop.f32.mrf.mxu0
    %3641 = vdwg.mxu0
    %3642 = vmatpush.bf16.msra.mxu0 %v2603
    %3643 = vmatpush.bf16.msra.mxu0 %v2587
    %3644 = vmatpush.bf16.msra.mxu0 %v2571
    %3645 = vmatpush.bf16.msra.mxu0 %v2555
    %3646 = vmatpush.bf16.msra.mxu0 %v2539
    %3647 = vmatpush.bf16.msra.mxu0 %v2523
    %3648 = vmatpush.bf16.msra.mxu0 %v2507
    %3649 = vmatpush.bf16.msra.mxu0 %v2491
    %3650 = vmatmul.bf16.gmra.mxu0 %v686
    %v3651 = vpop.f32.mrf.mxu0
    %v3652 = vadd.f32 %v3639, %v3651
    %v3653 = vpop.f32.mrf.mxu0
    %3654 = vdwg.mxu0
    %3655 = vmatpush.bf16.msra.mxu0 %v2731
    %3656 = vmatpush.bf16.msra.mxu0 %v2715
    %3657 = vmatpush.bf16.msra.mxu0 %v2699
    %3658 = vmatpush.bf16.msra.mxu0 %v2683
    %3659 = vmatpush.bf16.msra.mxu0 %v2667
    %3660 = vmatpush.bf16.msra.mxu0 %v2651
    %3661 = vmatpush.bf16.msra.mxu0 %v2635
    %3662 = vmatpush.bf16.msra.mxu0 %v2619
    %3663 = vmatmul.bf16.gmra.mxu0 %v687
    %v3664 = vpop.f32.mrf.mxu0
    %v3665 = vadd.f32 %v3652, %v3664
    %v3666 = vpop.f32.mrf.mxu0
    %3667 = vdwg.mxu0
    %3668 = vmatpush.bf16.msra.mxu0 %v2348
    %3669 = vmatpush.bf16.msra.mxu0 %v2332
    %3670 = vmatpush.bf16.msra.mxu0 %v2316
    %3671 = vmatpush.bf16.msra.mxu0 %v2300
    %3672 = vmatpush.bf16.msra.mxu0 %v2284
    %3673 = vmatpush.bf16.msra.mxu0 %v2268
    %3674 = vmatpush.bf16.msra.mxu0 %v2252
    %3675 = vmatpush.bf16.msra.mxu0 %v2236
    %3676 = vmatmul.bf16.gmra.mxu0 %v684
    %v3677 = vpop.f32.mrf.mxu0
    %v3678 = vadd.f32 %v654, %v3677
    %v3679 = vpop.f32.mrf.mxu0
    %3680 = vdwg.mxu0
    %3681 = vmatpush.bf16.msra.mxu0 %v2476
    %3682 = vmatpush.bf16.msra.mxu0 %v2460
    %3683 = vmatpush.bf16.msra.mxu0 %v2444
    %3684 = vmatpush.bf16.msra.mxu0 %v2428
    %3685 = vmatpush.bf16.msra.mxu0 %v2412
    %3686 = vmatpush.bf16.msra.mxu0 %v2396
    %3687 = vmatpush.bf16.msra.mxu0 %v2380
    %3688 = vmatpush.bf16.msra.mxu0 %v2364
    %3689 = vmatmul.bf16.gmra.mxu0 %v685
    %v3690 = vpop.f32.mrf.mxu0
    %v3691 = vadd.f32 %v3678, %v3690
    %v3692 = vpop.f32.mrf.mxu0
    %3693 = vdwg.mxu0
    %3694 = vmatpush.bf16.msra.mxu0 %v2604
    %3695 = vmatpush.bf16.msra.mxu0 %v2588
    %3696 = vmatpush.bf16.msra.mxu0 %v2572
    %3697 = vmatpush.bf16.msra.mxu0 %v2556
    %3698 = vmatpush.bf16.msra.mxu0 %v2540
    %3699 = vmatpush.bf16.msra.mxu0 %v2524
    %3700 = vmatpush.bf16.msra.mxu0 %v2508
    %3701 = vmatpush.bf16.msra.mxu0 %v2492
    %3702 = vmatmul.bf16.gmra.mxu0 %v686
    %v3703 = vpop.f32.mrf.mxu0
    %v3704 = vadd.f32 %v3691, %v3703
    %v3705 = vpop.f32.mrf.mxu0
    %3706 = vdwg.mxu0
    %3707 = vmatpush.bf16.msra.mxu0 %v2732
    %3708 = vmatpush.bf16.msra.mxu0 %v2716
    %3709 = vmatpush.bf16.msra.mxu0 %v2700
    %3710 = vmatpush.bf16.msra.mxu0 %v2684
    %3711 = vmatpush.bf16.msra.mxu0 %v2668
    %3712 = vmatpush.bf16.msra.mxu0 %v2652
    %3713 = vmatpush.bf16.msra.mxu0 %v2636
    %3714 = vmatpush.bf16.msra.mxu0 %v2620
    %3715 = vmatmul.bf16.gmra.mxu0 %v687
    %v3716 = vpop.f32.mrf.mxu0
    %v3717 = vadd.f32 %v3704, %v3716
    %v3718 = vpop.f32.mrf.mxu0
    %3719 = vdwg.mxu0
    %3720 = vmatpush.bf16.msra.mxu0 %v2349
    %3721 = vmatpush.bf16.msra.mxu0 %v2333
    %3722 = vmatpush.bf16.msra.mxu0 %v2317
    %3723 = vmatpush.bf16.msra.mxu0 %v2301
    %3724 = vmatpush.bf16.msra.mxu0 %v2285
    %3725 = vmatpush.bf16.msra.mxu0 %v2269
    %3726 = vmatpush.bf16.msra.mxu0 %v2253
    %3727 = vmatpush.bf16.msra.mxu0 %v2237
    %3728 = vmatmul.bf16.gmra.mxu0 %v684
    %v3729 = vpop.f32.mrf.mxu0
    %v3730 = vadd.f32 %v655, %v3729
    %v3731 = vpop.f32.mrf.mxu0
    %3732 = vdwg.mxu0
    %3733 = vmatpush.bf16.msra.mxu0 %v2477
    %3734 = vmatpush.bf16.msra.mxu0 %v2461
    %3735 = vmatpush.bf16.msra.mxu0 %v2445
    %3736 = vmatpush.bf16.msra.mxu0 %v2429
    %3737 = vmatpush.bf16.msra.mxu0 %v2413
    %3738 = vmatpush.bf16.msra.mxu0 %v2397
    %3739 = vmatpush.bf16.msra.mxu0 %v2381
    %3740 = vmatpush.bf16.msra.mxu0 %v2365
    %3741 = vmatmul.bf16.gmra.mxu0 %v685
    %v3742 = vpop.f32.mrf.mxu0
    %v3743 = vadd.f32 %v3730, %v3742
    %v3744 = vpop.f32.mrf.mxu0
    %3745 = vdwg.mxu0
    %3746 = vmatpush.bf16.msra.mxu0 %v2605
    %3747 = vmatpush.bf16.msra.mxu0 %v2589
    %3748 = vmatpush.bf16.msra.mxu0 %v2573
    %3749 = vmatpush.bf16.msra.mxu0 %v2557
    %3750 = vmatpush.bf16.msra.mxu0 %v2541
    %3751 = vmatpush.bf16.msra.mxu0 %v2525
    %3752 = vmatpush.bf16.msra.mxu0 %v2509
    %3753 = vmatpush.bf16.msra.mxu0 %v2493
    %3754 = vmatmul.bf16.gmra.mxu0 %v686
    %v3755 = vpop.f32.mrf.mxu0
    %v3756 = vadd.f32 %v3743, %v3755
    %v3757 = vpop.f32.mrf.mxu0
    %3758 = vdwg.mxu0
    %3759 = vmatpush.bf16.msra.mxu0 %v2733
    %3760 = vmatpush.bf16.msra.mxu0 %v2717
    %3761 = vmatpush.bf16.msra.mxu0 %v2701
    %3762 = vmatpush.bf16.msra.mxu0 %v2685
    %3763 = vmatpush.bf16.msra.mxu0 %v2669
    %3764 = vmatpush.bf16.msra.mxu0 %v2653
    %3765 = vmatpush.bf16.msra.mxu0 %v2637
    %3766 = vmatpush.bf16.msra.mxu0 %v2621
    %3767 = vmatmul.bf16.gmra.mxu0 %v687
    %v3768 = vpop.f32.mrf.mxu0
    %v3769 = vadd.f32 %v3756, %v3768
    %v3770 = vpop.f32.mrf.mxu0
    %3771 = vdwg.mxu0
    %3772 = vmatpush.bf16.msra.mxu0 %v2350
    %3773 = vmatpush.bf16.msra.mxu0 %v2334
    %3774 = vmatpush.bf16.msra.mxu0 %v2318
    %3775 = vmatpush.bf16.msra.mxu0 %v2302
    %3776 = vmatpush.bf16.msra.mxu0 %v2286
    %3777 = vmatpush.bf16.msra.mxu0 %v2270
    %3778 = vmatpush.bf16.msra.mxu0 %v2254
    %3779 = vmatpush.bf16.msra.mxu0 %v2238
    %3780 = vmatmul.bf16.gmra.mxu0 %v684
    %v3781 = vpop.f32.mrf.mxu0
    %v3782 = vadd.f32 %v656, %v3781
    %v3783 = vpop.f32.mrf.mxu0
    %3784 = vdwg.mxu0
    %3785 = vmatpush.bf16.msra.mxu0 %v2478
    %3786 = vmatpush.bf16.msra.mxu0 %v2462
    %3787 = vmatpush.bf16.msra.mxu0 %v2446
    %3788 = vmatpush.bf16.msra.mxu0 %v2430
    %3789 = vmatpush.bf16.msra.mxu0 %v2414
    %3790 = vmatpush.bf16.msra.mxu0 %v2398
    %3791 = vmatpush.bf16.msra.mxu0 %v2382
    %3792 = vmatpush.bf16.msra.mxu0 %v2366
    %3793 = vmatmul.bf16.gmra.mxu0 %v685
    %v3794 = vpop.f32.mrf.mxu0
    %v3795 = vadd.f32 %v3782, %v3794
    %v3796 = vpop.f32.mrf.mxu0
    %3797 = vdwg.mxu0
    %3798 = vmatpush.bf16.msra.mxu0 %v2606
    %3799 = vmatpush.bf16.msra.mxu0 %v2590
    %3800 = vmatpush.bf16.msra.mxu0 %v2574
    %3801 = vmatpush.bf16.msra.mxu0 %v2558
    %3802 = vmatpush.bf16.msra.mxu0 %v2542
    %3803 = vmatpush.bf16.msra.mxu0 %v2526
    %3804 = vmatpush.bf16.msra.mxu0 %v2510
    %3805 = vmatpush.bf16.msra.mxu0 %v2494
    %3806 = vmatmul.bf16.gmra.mxu0 %v686
    %v3807 = vpop.f32.mrf.mxu0
    %v3808 = vadd.f32 %v3795, %v3807
    %v3809 = vpop.f32.mrf.mxu0
    %3810 = vdwg.mxu0
    %3811 = vmatpush.bf16.msra.mxu0 %v2734
    %3812 = vmatpush.bf16.msra.mxu0 %v2718
    %3813 = vmatpush.bf16.msra.mxu0 %v2702
    %3814 = vmatpush.bf16.msra.mxu0 %v2686
    %3815 = vmatpush.bf16.msra.mxu0 %v2670
    %3816 = vmatpush.bf16.msra.mxu0 %v2654
    %3817 = vmatpush.bf16.msra.mxu0 %v2638
    %3818 = vmatpush.bf16.msra.mxu0 %v2622
    %3819 = vmatmul.bf16.gmra.mxu0 %v687
    %v3820 = vpop.f32.mrf.mxu0
    %v3821 = vadd.f32 %v3808, %v3820
    %v3822 = vpop.f32.mrf.mxu0
    %3823 = vdwg.mxu0
    %3824 = vmatpush.bf16.msra.mxu0 %v2351
    %3825 = vmatpush.bf16.msra.mxu0 %v2335
    %3826 = vmatpush.bf16.msra.mxu0 %v2319
    %3827 = vmatpush.bf16.msra.mxu0 %v2303
    %3828 = vmatpush.bf16.msra.mxu0 %v2287
    %3829 = vmatpush.bf16.msra.mxu0 %v2271
    %3830 = vmatpush.bf16.msra.mxu0 %v2255
    %3831 = vmatpush.bf16.msra.mxu0 %v2239
    %3832 = vmatmul.bf16.gmra.mxu0 %v684
    %v3833 = vpop.f32.mrf.mxu0
    %v3834 = vadd.f32 %v657, %v3833
    %v3835 = vpop.f32.mrf.mxu0
    %3836 = vdwg.mxu0
    %3837 = vmatpush.bf16.msra.mxu0 %v2479
    %3838 = vmatpush.bf16.msra.mxu0 %v2463
    %3839 = vmatpush.bf16.msra.mxu0 %v2447
    %3840 = vmatpush.bf16.msra.mxu0 %v2431
    %3841 = vmatpush.bf16.msra.mxu0 %v2415
    %3842 = vmatpush.bf16.msra.mxu0 %v2399
    %3843 = vmatpush.bf16.msra.mxu0 %v2383
    %3844 = vmatpush.bf16.msra.mxu0 %v2367
    %3845 = vmatmul.bf16.gmra.mxu0 %v685
    %v3846 = vpop.f32.mrf.mxu0
    %v3847 = vadd.f32 %v3834, %v3846
    %v3848 = vpop.f32.mrf.mxu0
    %3849 = vdwg.mxu0
    %3850 = vmatpush.bf16.msra.mxu0 %v2607
    %3851 = vmatpush.bf16.msra.mxu0 %v2591
    %3852 = vmatpush.bf16.msra.mxu0 %v2575
    %3853 = vmatpush.bf16.msra.mxu0 %v2559
    %3854 = vmatpush.bf16.msra.mxu0 %v2543
    %3855 = vmatpush.bf16.msra.mxu0 %v2527
    %3856 = vmatpush.bf16.msra.mxu0 %v2511
    %3857 = vmatpush.bf16.msra.mxu0 %v2495
    %3858 = vmatmul.bf16.gmra.mxu0 %v686
    %v3859 = vpop.f32.mrf.mxu0
    %v3860 = vadd.f32 %v3847, %v3859
    %v3861 = vpop.f32.mrf.mxu0
    %3862 = vdwg.mxu0
    %3863 = vmatpush.bf16.msra.mxu0 %v2735
    %3864 = vmatpush.bf16.msra.mxu0 %v2719
    %3865 = vmatpush.bf16.msra.mxu0 %v2703
    %3866 = vmatpush.bf16.msra.mxu0 %v2687
    %3867 = vmatpush.bf16.msra.mxu0 %v2671
    %3868 = vmatpush.bf16.msra.mxu0 %v2655
    %3869 = vmatpush.bf16.msra.mxu0 %v2639
    %3870 = vmatpush.bf16.msra.mxu0 %v2623
    %3871 = vmatmul.bf16.gmra.mxu0 %v687
    %v3872 = vpop.f32.mrf.mxu0
    %v3873 = vadd.f32 %v3860, %v3872
    %v3874 = vpop.f32.mrf.mxu0
    %3875 = vdwg.mxu0
    %3876 = vmatpush.bf16.msra.mxu0 %v2352
    %3877 = vmatpush.bf16.msra.mxu0 %v2336
    %3878 = vmatpush.bf16.msra.mxu0 %v2320
    %3879 = vmatpush.bf16.msra.mxu0 %v2304
    %3880 = vmatpush.bf16.msra.mxu0 %v2288
    %3881 = vmatpush.bf16.msra.mxu0 %v2272
    %3882 = vmatpush.bf16.msra.mxu0 %v2256
    %3883 = vmatpush.bf16.msra.mxu0 %v2240
    %3884 = vmatmul.bf16.gmra.mxu0 %v684
    %v3885 = vpop.f32.mrf.mxu0
    %v3886 = vadd.f32 %v658, %v3885
    %v3887 = vpop.f32.mrf.mxu0
    %3888 = vdwg.mxu0
    %3889 = vmatpush.bf16.msra.mxu0 %v2480
    %3890 = vmatpush.bf16.msra.mxu0 %v2464
    %3891 = vmatpush.bf16.msra.mxu0 %v2448
    %3892 = vmatpush.bf16.msra.mxu0 %v2432
    %3893 = vmatpush.bf16.msra.mxu0 %v2416
    %3894 = vmatpush.bf16.msra.mxu0 %v2400
    %3895 = vmatpush.bf16.msra.mxu0 %v2384
    %3896 = vmatpush.bf16.msra.mxu0 %v2368
    %3897 = vmatmul.bf16.gmra.mxu0 %v685
    %v3898 = vpop.f32.mrf.mxu0
    %v3899 = vadd.f32 %v3886, %v3898
    %v3900 = vpop.f32.mrf.mxu0
    %3901 = vdwg.mxu0
    %3902 = vmatpush.bf16.msra.mxu0 %v2608
    %3903 = vmatpush.bf16.msra.mxu0 %v2592
    %3904 = vmatpush.bf16.msra.mxu0 %v2576
    %3905 = vmatpush.bf16.msra.mxu0 %v2560
    %3906 = vmatpush.bf16.msra.mxu0 %v2544
    %3907 = vmatpush.bf16.msra.mxu0 %v2528
    %3908 = vmatpush.bf16.msra.mxu0 %v2512
    %3909 = vmatpush.bf16.msra.mxu0 %v2496
    %3910 = vmatmul.bf16.gmra.mxu0 %v686
    %v3911 = vpop.f32.mrf.mxu0
    %v3912 = vadd.f32 %v3899, %v3911
    %v3913 = vpop.f32.mrf.mxu0
    %3914 = vdwg.mxu0
    %3915 = vmatpush.bf16.msra.mxu0 %v2736
    %3916 = vmatpush.bf16.msra.mxu0 %v2720
    %3917 = vmatpush.bf16.msra.mxu0 %v2704
    %3918 = vmatpush.bf16.msra.mxu0 %v2688
    %3919 = vmatpush.bf16.msra.mxu0 %v2672
    %3920 = vmatpush.bf16.msra.mxu0 %v2656
    %3921 = vmatpush.bf16.msra.mxu0 %v2640
    %3922 = vmatpush.bf16.msra.mxu0 %v2624
    %3923 = vmatmul.bf16.gmra.mxu0 %v687
    %v3924 = vpop.f32.mrf.mxu0
    %v3925 = vadd.f32 %v3912, %v3924
    %v3926 = vpop.f32.mrf.mxu0
    %3927 = vdwg.mxu0
    %3928 = vmatpush.bf16.msra.mxu0 %v2353
    %3929 = vmatpush.bf16.msra.mxu0 %v2337
    %3930 = vmatpush.bf16.msra.mxu0 %v2321
    %3931 = vmatpush.bf16.msra.mxu0 %v2305
    %3932 = vmatpush.bf16.msra.mxu0 %v2289
    %3933 = vmatpush.bf16.msra.mxu0 %v2273
    %3934 = vmatpush.bf16.msra.mxu0 %v2257
    %3935 = vmatpush.bf16.msra.mxu0 %v2241
    %3936 = vmatmul.bf16.gmra.mxu0 %v684
    %v3937 = vpop.f32.mrf.mxu0
    %v3938 = vadd.f32 %v659, %v3937
    %v3939 = vpop.f32.mrf.mxu0
    %3940 = vdwg.mxu0
    %3941 = vmatpush.bf16.msra.mxu0 %v2481
    %3942 = vmatpush.bf16.msra.mxu0 %v2465
    %3943 = vmatpush.bf16.msra.mxu0 %v2449
    %3944 = vmatpush.bf16.msra.mxu0 %v2433
    %3945 = vmatpush.bf16.msra.mxu0 %v2417
    %3946 = vmatpush.bf16.msra.mxu0 %v2401
    %3947 = vmatpush.bf16.msra.mxu0 %v2385
    %3948 = vmatpush.bf16.msra.mxu0 %v2369
    %3949 = vmatmul.bf16.gmra.mxu0 %v685
    %v3950 = vpop.f32.mrf.mxu0
    %v3951 = vadd.f32 %v3938, %v3950
    %v3952 = vpop.f32.mrf.mxu0
    %3953 = vdwg.mxu0
    %3954 = vmatpush.bf16.msra.mxu0 %v2609
    %3955 = vmatpush.bf16.msra.mxu0 %v2593
    %3956 = vmatpush.bf16.msra.mxu0 %v2577
    %3957 = vmatpush.bf16.msra.mxu0 %v2561
    %3958 = vmatpush.bf16.msra.mxu0 %v2545
    %3959 = vmatpush.bf16.msra.mxu0 %v2529
    %3960 = vmatpush.bf16.msra.mxu0 %v2513
    %3961 = vmatpush.bf16.msra.mxu0 %v2497
    %3962 = vmatmul.bf16.gmra.mxu0 %v686
    %v3963 = vpop.f32.mrf.mxu0
    %v3964 = vadd.f32 %v3951, %v3963
    %v3965 = vpop.f32.mrf.mxu0
    %3966 = vdwg.mxu0
    %3967 = vmatpush.bf16.msra.mxu0 %v2737
    %3968 = vmatpush.bf16.msra.mxu0 %v2721
    %3969 = vmatpush.bf16.msra.mxu0 %v2705
    %3970 = vmatpush.bf16.msra.mxu0 %v2689
    %3971 = vmatpush.bf16.msra.mxu0 %v2673
    %3972 = vmatpush.bf16.msra.mxu0 %v2657
    %3973 = vmatpush.bf16.msra.mxu0 %v2641
    %3974 = vmatpush.bf16.msra.mxu0 %v2625
    %3975 = vmatmul.bf16.gmra.mxu0 %v687
    %v3976 = vpop.f32.mrf.mxu0
    %v3977 = vadd.f32 %v3964, %v3976
    %v3978 = vpop.f32.mrf.mxu0
    %3979 = vdwg.mxu0
    %3980 = vmatpush.bf16.msra.mxu0 %v2354
    %3981 = vmatpush.bf16.msra.mxu0 %v2338
    %3982 = vmatpush.bf16.msra.mxu0 %v2322
    %3983 = vmatpush.bf16.msra.mxu0 %v2306
    %3984 = vmatpush.bf16.msra.mxu0 %v2290
    %3985 = vmatpush.bf16.msra.mxu0 %v2274
    %3986 = vmatpush.bf16.msra.mxu0 %v2258
    %3987 = vmatpush.bf16.msra.mxu0 %v2242
    %3988 = vmatmul.bf16.gmra.mxu0 %v684
    %v3989 = vpop.f32.mrf.mxu0
    %v3990 = vadd.f32 %v660, %v3989
    %v3991 = vpop.f32.mrf.mxu0
    %3992 = vdwg.mxu0
    %3993 = vmatpush.bf16.msra.mxu0 %v2482
    %3994 = vmatpush.bf16.msra.mxu0 %v2466
    %3995 = vmatpush.bf16.msra.mxu0 %v2450
    %3996 = vmatpush.bf16.msra.mxu0 %v2434
    %3997 = vmatpush.bf16.msra.mxu0 %v2418
    %3998 = vmatpush.bf16.msra.mxu0 %v2402
    %3999 = vmatpush.bf16.msra.mxu0 %v2386
    %4000 = vmatpush.bf16.msra.mxu0 %v2370
    %4001 = vmatmul.bf16.gmra.mxu0 %v685
    %v4002 = vpop.f32.mrf.mxu0
    %v4003 = vadd.f32 %v3990, %v4002
    %v4004 = vpop.f32.mrf.mxu0
    %4005 = vdwg.mxu0
    %4006 = vmatpush.bf16.msra.mxu0 %v2610
    %4007 = vmatpush.bf16.msra.mxu0 %v2594
    %4008 = vmatpush.bf16.msra.mxu0 %v2578
    %4009 = vmatpush.bf16.msra.mxu0 %v2562
    %4010 = vmatpush.bf16.msra.mxu0 %v2546
    %4011 = vmatpush.bf16.msra.mxu0 %v2530
    %4012 = vmatpush.bf16.msra.mxu0 %v2514
    %4013 = vmatpush.bf16.msra.mxu0 %v2498
    %4014 = vmatmul.bf16.gmra.mxu0 %v686
    %v4015 = vpop.f32.mrf.mxu0
    %v4016 = vadd.f32 %v4003, %v4015
    %v4017 = vpop.f32.mrf.mxu0
    %4018 = vdwg.mxu0
    %4019 = vmatpush.bf16.msra.mxu0 %v2738
    %4020 = vmatpush.bf16.msra.mxu0 %v2722
    %4021 = vmatpush.bf16.msra.mxu0 %v2706
    %4022 = vmatpush.bf16.msra.mxu0 %v2690
    %4023 = vmatpush.bf16.msra.mxu0 %v2674
    %4024 = vmatpush.bf16.msra.mxu0 %v2658
    %4025 = vmatpush.bf16.msra.mxu0 %v2642
    %4026 = vmatpush.bf16.msra.mxu0 %v2626
    %4027 = vmatmul.bf16.gmra.mxu0 %v687
    %v4028 = vpop.f32.mrf.mxu0
    %v4029 = vadd.f32 %v4016, %v4028
    %v4030 = vpop.f32.mrf.mxu0
    %4031 = vdwg.mxu0
    %4032 = vmatpush.bf16.msra.mxu0 %v2355
    %4033 = vmatpush.bf16.msra.mxu0 %v2339
    %4034 = vmatpush.bf16.msra.mxu0 %v2323
    %4035 = vmatpush.bf16.msra.mxu0 %v2307
    %4036 = vmatpush.bf16.msra.mxu0 %v2291
    %4037 = vmatpush.bf16.msra.mxu0 %v2275
    %4038 = vmatpush.bf16.msra.mxu0 %v2259
    %4039 = vmatpush.bf16.msra.mxu0 %v2243
    %4040 = vmatmul.bf16.gmra.mxu0 %v684
    %v4041 = vpop.f32.mrf.mxu0
    %v4042 = vadd.f32 %v661, %v4041
    %v4043 = vpop.f32.mrf.mxu0
    %4044 = vdwg.mxu0
    %4045 = vmatpush.bf16.msra.mxu0 %v2483
    %4046 = vmatpush.bf16.msra.mxu0 %v2467
    %4047 = vmatpush.bf16.msra.mxu0 %v2451
    %4048 = vmatpush.bf16.msra.mxu0 %v2435
    %4049 = vmatpush.bf16.msra.mxu0 %v2419
    %4050 = vmatpush.bf16.msra.mxu0 %v2403
    %4051 = vmatpush.bf16.msra.mxu0 %v2387
    %4052 = vmatpush.bf16.msra.mxu0 %v2371
    %4053 = vmatmul.bf16.gmra.mxu0 %v685
    %v4054 = vpop.f32.mrf.mxu0
    %v4055 = vadd.f32 %v4042, %v4054
    %v4056 = vpop.f32.mrf.mxu0
    %4057 = vdwg.mxu0
    %4058 = vmatpush.bf16.msra.mxu0 %v2611
    %4059 = vmatpush.bf16.msra.mxu0 %v2595
    %4060 = vmatpush.bf16.msra.mxu0 %v2579
    %4061 = vmatpush.bf16.msra.mxu0 %v2563
    %4062 = vmatpush.bf16.msra.mxu0 %v2547
    %4063 = vmatpush.bf16.msra.mxu0 %v2531
    %4064 = vmatpush.bf16.msra.mxu0 %v2515
    %4065 = vmatpush.bf16.msra.mxu0 %v2499
    %4066 = vmatmul.bf16.gmra.mxu0 %v686
    %v4067 = vpop.f32.mrf.mxu0
    %v4068 = vadd.f32 %v4055, %v4067
    %v4069 = vpop.f32.mrf.mxu0
    %4070 = vdwg.mxu0
    %4071 = vmatpush.bf16.msra.mxu0 %v2739
    %4072 = vmatpush.bf16.msra.mxu0 %v2723
    %4073 = vmatpush.bf16.msra.mxu0 %v2707
    %4074 = vmatpush.bf16.msra.mxu0 %v2691
    %4075 = vmatpush.bf16.msra.mxu0 %v2675
    %4076 = vmatpush.bf16.msra.mxu0 %v2659
    %4077 = vmatpush.bf16.msra.mxu0 %v2643
    %4078 = vmatpush.bf16.msra.mxu0 %v2627
    %4079 = vmatmul.bf16.gmra.mxu0 %v687
    %v4080 = vpop.f32.mrf.mxu0
    %v4081 = vadd.f32 %v4068, %v4080
    %v4082 = vpop.f32.mrf.mxu0
    %4083 = vdwg.mxu0
    %v4084 = vmax.f32 %v3301, 0.0
    %v4085 = vmax.f32 %v3353, 0.0
    %v4086 = vmax.f32 %v3405, 0.0
    %v4087 = vmax.f32 %v3457, 0.0
    %v4088 = vmax.f32 %v3509, 0.0
    %v4089 = vmax.f32 %v3561, 0.0
    %v4090 = vmax.f32 %v3613, 0.0
    %v4091 = vmax.f32 %v3665, 0.0
    %v4092 = vmax.f32 %v3717, 0.0
    %v4093 = vmax.f32 %v3769, 0.0
    %v4094 = vmax.f32 %v3821, 0.0
    %v4095 = vmax.f32 %v3873, 0.0
    %v4096 = vmax.f32 %v3925, 0.0
    %v4097 = vmax.f32 %v3977, 0.0
    %v4098 = vmax.f32 %v4029, 0.0
    %v4099 = vmax.f32 %v4081, 0.0
    %v4100 = vpack.c.bf16 %v4085, %v4084
    %v4101 = vpack.c.bf16 %v4087, %v4086
    %v4102 = vpack.c.bf16 %v4089, %v4088
    %v4103 = vpack.c.bf16 %v4091, %v4090
    %v4104 = vpack.c.bf16 %v4093, %v4092
    %v4105 = vpack.c.bf16 %v4095, %v4094
    %v4106 = vpack.c.bf16 %v4097, %v4096
    %v4107 = vpack.c.bf16 %v4099, %v4098
    %v4108 = vld [vmem:[#allocation8] sm:$0xf]
    %v4109 = vld [vmem:[#allocation8 + $0x4] sm:$0xf]
    %v4110 = vld [vmem:[#allocation8 + $0x8] sm:$0xf]
    %v4111 = vld [vmem:[#allocation8 + $0xc] sm:$0xf]
    %v4112 = vld [vmem:[#allocation8 + $0x10] sm:$0xf]
    %v4113 = vld [vmem:[#allocation8 + $0x14] sm:$0xf]
    %v4114 = vld [vmem:[#allocation8 + $0x18] sm:$0xf]
    %v4115 = vld [vmem:[#allocation8 + $0x1c] sm:$0xf]
    %v4116 = vld [vmem:[#allocation8 + $0x20] sm:$0xf]
    %v4117 = vld [vmem:[#allocation8 + $0x24] sm:$0xf]
    %v4118 = vld [vmem:[#allocation8 + $0x28] sm:$0xf]
    %v4119 = vld [vmem:[#allocation8 + $0x2c] sm:$0xf]
    %v4120 = vld [vmem:[#allocation8 + $0x30] sm:$0xf]
    %v4121 = vld [vmem:[#allocation8 + $0x34] sm:$0xf]
    %v4122 = vld [vmem:[#allocation8 + $0x38] sm:$0xf]
    %v4123 = vld [vmem:[#allocation8 + $0x3c] sm:$0xf]
    %v4124 = vld [vmem:[#allocation8 + $0x40] sm:$0xf]
    %v4125 = vld [vmem:[#allocation8 + $0x44] sm:$0xf]
    %v4126 = vld [vmem:[#allocation8 + $0x48] sm:$0xf]
    %v4127 = vld [vmem:[#allocation8 + $0x4c] sm:$0xf]
    %v4128 = vld [vmem:[#allocation8 + $0x50] sm:$0xf]
    %v4129 = vld [vmem:[#allocation8 + $0x54] sm:$0xf]
    %v4130 = vld [vmem:[#allocation8 + $0x58] sm:$0xf]
    %v4131 = vld [vmem:[#allocation8 + $0x5c] sm:$0xf]
    %v4132 = vld [vmem:[#allocation8 + $0x60] sm:$0xf]
    %v4133 = vld [vmem:[#allocation8 + $0x64] sm:$0xf]
    %v4134 = vld [vmem:[#allocation8 + $0x68] sm:$0xf]
    %v4135 = vld [vmem:[#allocation8 + $0x6c] sm:$0xf]
    %v4136 = vld [vmem:[#allocation8 + $0x70] sm:$0xf]
    %v4137 = vld [vmem:[#allocation8 + $0x74] sm:$0xf]
    %v4138 = vld [vmem:[#allocation8 + $0x78] sm:$0xf]
    %v4139 = vld [vmem:[#allocation8 + $0x7c] sm:$0xf]
    %v4140 = vld [vmem:[#allocation8 + $0x80] sm:$0xf]
    %v4141 = vld [vmem:[#allocation8 + $0x84] sm:$0xf]
    %v4142 = vld [vmem:[#allocation8 + $0x88] sm:$0xf]
    %v4143 = vld [vmem:[#allocation8 + $0x8c] sm:$0xf]
    %v4144 = vld [vmem:[#allocation8 + $0x90] sm:$0xf]
    %v4145 = vld [vmem:[#allocation8 + $0x94] sm:$0xf]
    %v4146 = vld [vmem:[#allocation8 + $0x98] sm:$0xf]
    %v4147 = vld [vmem:[#allocation8 + $0x9c] sm:$0xf]
    %v4148 = vld [vmem:[#allocation8 + $0xa0] sm:$0xf]
    %v4149 = vld [vmem:[#allocation8 + $0xa4] sm:$0xf]
    %v4150 = vld [vmem:[#allocation8 + $0xa8] sm:$0xf]
    %v4151 = vld [vmem:[#allocation8 + $0xac] sm:$0xf]
    %v4152 = vld [vmem:[#allocation8 + $0xb0] sm:$0xf]
    %v4153 = vld [vmem:[#allocation8 + $0xb4] sm:$0xf]
    %v4154 = vld [vmem:[#allocation8 + $0xb8] sm:$0xf]
    %v4155 = vld [vmem:[#allocation8 + $0xbc] sm:$0xf]
    %v4156 = vld [vmem:[#allocation8 + $0xc0] sm:$0xf]
    %v4157 = vld [vmem:[#allocation8 + $0xc4] sm:$0xf]
    %v4158 = vld [vmem:[#allocation8 + $0xc8] sm:$0xf]
    %v4159 = vld [vmem:[#allocation8 + $0xcc] sm:$0xf]
    %v4160 = vld [vmem:[#allocation8 + $0xd0] sm:$0xf]
    %v4161 = vld [vmem:[#allocation8 + $0xd4] sm:$0xf]
    %v4162 = vld [vmem:[#allocation8 + $0xd8] sm:$0xf]
    %v4163 = vld [vmem:[#allocation8 + $0xdc] sm:$0xf]
    %v4164 = vld [vmem:[#allocation8 + $0xe0] sm:$0xf]
    %v4165 = vld [vmem:[#allocation8 + $0xe4] sm:$0xf]
    %v4166 = vld [vmem:[#allocation8 + $0xe8] sm:$0xf]
    %v4167 = vld [vmem:[#allocation8 + $0xec] sm:$0xf]
    %v4168 = vld [vmem:[#allocation8 + $0xf0] sm:$0xf]
    %v4169 = vld [vmem:[#allocation8 + $0xf4] sm:$0xf]
    %v4170 = vld [vmem:[#allocation8 + $0xf8] sm:$0xf]
    %v4171 = vld [vmem:[#allocation8 + $0xfc] sm:$0xf]
    %v4172 = vld [vmem:[#allocation8 + $0x100] sm:$0xf]
    %v4173 = vld [vmem:[#allocation8 + $0x104] sm:$0xf]
    %v4174 = vld [vmem:[#allocation8 + $0x108] sm:$0xf]
    %v4175 = vld [vmem:[#allocation8 + $0x10c] sm:$0xf]
    %v4176 = vld [vmem:[#allocation8 + $0x110] sm:$0xf]
    %v4177 = vld [vmem:[#allocation8 + $0x114] sm:$0xf]
    %v4178 = vld [vmem:[#allocation8 + $0x118] sm:$0xf]
    %v4179 = vld [vmem:[#allocation8 + $0x11c] sm:$0xf]
    %v4180 = vld [vmem:[#allocation8 + $0x120] sm:$0xf]
    %v4181 = vld [vmem:[#allocation8 + $0x124] sm:$0xf]
    %v4182 = vld [vmem:[#allocation8 + $0x128] sm:$0xf]
    %v4183 = vld [vmem:[#allocation8 + $0x12c] sm:$0xf]
    %v4184 = vld [vmem:[#allocation8 + $0x130] sm:$0xf]
    %v4185 = vld [vmem:[#allocation8 + $0x134] sm:$0xf]
    %v4186 = vld [vmem:[#allocation8 + $0x138] sm:$0xf]
    %v4187 = vld [vmem:[#allocation8 + $0x13c] sm:$0xf]
    %v4188 = vld [vmem:[#allocation8 + $0x140] sm:$0xf]
    %v4189 = vld [vmem:[#allocation8 + $0x144] sm:$0xf]
    %v4190 = vld [vmem:[#allocation8 + $0x148] sm:$0xf]
    %v4191 = vld [vmem:[#allocation8 + $0x14c] sm:$0xf]
    %v4192 = vld [vmem:[#allocation8 + $0x150] sm:$0xf]
    %v4193 = vld [vmem:[#allocation8 + $0x154] sm:$0xf]
    %v4194 = vld [vmem:[#allocation8 + $0x158] sm:$0xf]
    %v4195 = vld [vmem:[#allocation8 + $0x15c] sm:$0xf]
    %v4196 = vld [vmem:[#allocation8 + $0x160] sm:$0xf]
    %v4197 = vld [vmem:[#allocation8 + $0x164] sm:$0xf]
    %v4198 = vld [vmem:[#allocation8 + $0x168] sm:$0xf]
    %v4199 = vld [vmem:[#allocation8 + $0x16c] sm:$0xf]
    %v4200 = vld [vmem:[#allocation8 + $0x170] sm:$0xf]
    %v4201 = vld [vmem:[#allocation8 + $0x174] sm:$0xf]
    %v4202 = vld [vmem:[#allocation8 + $0x178] sm:$0xf]
    %v4203 = vld [vmem:[#allocation8 + $0x17c] sm:$0xf]
    %v4204 = vld [vmem:[#allocation8 + $0x180] sm:$0xf]
    %v4205 = vld [vmem:[#allocation8 + $0x184] sm:$0xf]
    %v4206 = vld [vmem:[#allocation8 + $0x188] sm:$0xf]
    %v4207 = vld [vmem:[#allocation8 + $0x18c] sm:$0xf]
    %v4208 = vld [vmem:[#allocation8 + $0x190] sm:$0xf]
    %v4209 = vld [vmem:[#allocation8 + $0x194] sm:$0xf]
    %v4210 = vld [vmem:[#allocation8 + $0x198] sm:$0xf]
    %v4211 = vld [vmem:[#allocation8 + $0x19c] sm:$0xf]
    %v4212 = vld [vmem:[#allocation8 + $0x1a0] sm:$0xf]
    %v4213 = vld [vmem:[#allocation8 + $0x1a4] sm:$0xf]
    %v4214 = vld [vmem:[#allocation8 + $0x1a8] sm:$0xf]
    %v4215 = vld [vmem:[#allocation8 + $0x1ac] sm:$0xf]
    %v4216 = vld [vmem:[#allocation8 + $0x1b0] sm:$0xf]
    %v4217 = vld [vmem:[#allocation8 + $0x1b4] sm:$0xf]
    %v4218 = vld [vmem:[#allocation8 + $0x1b8] sm:$0xf]
    %v4219 = vld [vmem:[#allocation8 + $0x1bc] sm:$0xf]
    %v4220 = vld [vmem:[#allocation8 + $0x1c0] sm:$0xf]
    %v4221 = vld [vmem:[#allocation8 + $0x1c4] sm:$0xf]
    %v4222 = vld [vmem:[#allocation8 + $0x1c8] sm:$0xf]
    %v4223 = vld [vmem:[#allocation8 + $0x1cc] sm:$0xf]
    %v4224 = vld [vmem:[#allocation8 + $0x1d0] sm:$0xf]
    %v4225 = vld [vmem:[#allocation8 + $0x1d4] sm:$0xf]
    %v4226 = vld [vmem:[#allocation8 + $0x1d8] sm:$0xf]
    %v4227 = vld [vmem:[#allocation8 + $0x1dc] sm:$0xf]
    %v4228 = vld [vmem:[#allocation8 + $0x1e0] sm:$0xf]
    %v4229 = vld [vmem:[#allocation8 + $0x1e4] sm:$0xf]
    %v4230 = vld [vmem:[#allocation8 + $0x1e8] sm:$0xf]
    %v4231 = vld [vmem:[#allocation8 + $0x1ec] sm:$0xf]
    %v4232 = vld [vmem:[#allocation8 + $0x1f0] sm:$0xf]
    %v4233 = vld [vmem:[#allocation8 + $0x1f4] sm:$0xf]
    %v4234 = vld [vmem:[#allocation8 + $0x1f8] sm:$0xf]
    %v4235 = vld [vmem:[#allocation8 + $0x1fc] sm:$0xf]
    %v4236 = vld [vmem:[#allocation10] sm:$0x1]
    %v4238 = vperm.slane %v4236, 0
    %v4244 = vunpack.c.l.b16 %v4100
    %v4245 = vunpack.c.h.b16 %v4100
    %v4246 = vunpack.c.l.b16 %v4101
    %v4247 = vunpack.c.h.b16 %v4101
    %v4248 = vunpack.c.l.b16 %v4102
    %v4249 = vunpack.c.h.b16 %v4102
    %v4250 = vunpack.c.l.b16 %v4103
    %v4251 = vunpack.c.h.b16 %v4103
    %v4252 = vpack.c.b16 %v4244, %v4244
    %v4253 = vpack.c.b16 %v4245, %v4245
    %v4254 = vpack.c.b16 %v4246, %v4246
    %v4255 = vpack.c.b16 %v4247, %v4247
    %v4256 = vpack.c.b16 %v4248, %v4248
    %v4257 = vpack.c.b16 %v4249, %v4249
    %v4258 = vpack.c.b16 %v4250, %v4250
    %v4259 = vpack.c.b16 %v4251, %v4251
    %v4396 = vunpack.c.l.b16 %v4108
    %v4397 = vunpack.c.l.b16 %v4109
    %v4398 = vunpack.c.l.b16 %v4110
    %v4399 = vunpack.c.l.b16 %v4111
    %v4400 = vunpack.c.l.b16 %v4112
    %v4401 = vunpack.c.l.b16 %v4113
    %v4402 = vunpack.c.l.b16 %v4114
    %v4403 = vunpack.c.l.b16 %v4115
    %v4404 = vunpack.c.l.b16 %v4116
    %v4405 = vunpack.c.l.b16 %v4117
    %v4406 = vunpack.c.l.b16 %v4118
    %v4407 = vunpack.c.l.b16 %v4119
    %v4408 = vunpack.c.l.b16 %v4120
    %v4409 = vunpack.c.l.b16 %v4121
    %v4410 = vunpack.c.l.b16 %v4122
    %v4411 = vunpack.c.l.b16 %v4123
    %v4412 = vunpack.c.l.b16 %v4124
    %v4413 = vunpack.c.l.b16 %v4125
    %v4414 = vunpack.c.l.b16 %v4126
    %v4415 = vunpack.c.l.b16 %v4127
    %v4416 = vunpack.c.l.b16 %v4128
    %v4417 = vunpack.c.l.b16 %v4129
    %v4418 = vunpack.c.l.b16 %v4130
    %v4419 = vunpack.c.l.b16 %v4131
    %v4420 = vunpack.c.l.b16 %v4132
    %v4421 = vunpack.c.l.b16 %v4133
    %v4422 = vunpack.c.l.b16 %v4134
    %v4423 = vunpack.c.l.b16 %v4135
    %v4424 = vunpack.c.l.b16 %v4136
    %v4425 = vunpack.c.l.b16 %v4137
    %v4426 = vunpack.c.l.b16 %v4138
    %v4427 = vunpack.c.l.b16 %v4139
    %v4428 = vunpack.c.l.b16 %v4140
    %v4429 = vunpack.c.l.b16 %v4141
    %v4430 = vunpack.c.l.b16 %v4142
    %v4431 = vunpack.c.l.b16 %v4143
    %v4432 = vunpack.c.l.b16 %v4144
    %v4433 = vunpack.c.l.b16 %v4145
    %v4434 = vunpack.c.l.b16 %v4146
    %v4435 = vunpack.c.l.b16 %v4147
    %v4436 = vunpack.c.l.b16 %v4148
    %v4437 = vunpack.c.l.b16 %v4149
    %v4438 = vunpack.c.l.b16 %v4150
    %v4439 = vunpack.c.l.b16 %v4151
    %v4440 = vunpack.c.l.b16 %v4152
    %v4441 = vunpack.c.l.b16 %v4153
    %v4442 = vunpack.c.l.b16 %v4154
    %v4443 = vunpack.c.l.b16 %v4155
    %v4444 = vunpack.c.l.b16 %v4156
    %v4445 = vunpack.c.l.b16 %v4157
    %v4446 = vunpack.c.l.b16 %v4158
    %v4447 = vunpack.c.l.b16 %v4159
    %v4448 = vunpack.c.l.b16 %v4160
    %v4449 = vunpack.c.l.b16 %v4161
    %v4450 = vunpack.c.l.b16 %v4162
    %v4451 = vunpack.c.l.b16 %v4163
    %v4452 = vunpack.c.l.b16 %v4164
    %v4453 = vunpack.c.l.b16 %v4165
    %v4454 = vunpack.c.l.b16 %v4166
    %v4455 = vunpack.c.l.b16 %v4167
    %v4456 = vunpack.c.l.b16 %v4168
    %v4457 = vunpack.c.l.b16 %v4169
    %v4458 = vunpack.c.l.b16 %v4170
    %v4459 = vunpack.c.l.b16 %v4171
    %v4460 = vunpack.c.l.b16 %v4172
    %v4461 = vunpack.c.l.b16 %v4173
    %v4462 = vunpack.c.l.b16 %v4174
    %v4463 = vunpack.c.l.b16 %v4175
    %v4464 = vunpack.c.l.b16 %v4176
    %v4465 = vunpack.c.l.b16 %v4177
    %v4466 = vunpack.c.l.b16 %v4178
    %v4467 = vunpack.c.l.b16 %v4179
    %v4468 = vunpack.c.l.b16 %v4180
    %v4469 = vunpack.c.l.b16 %v4181
    %v4470 = vunpack.c.l.b16 %v4182
    %v4471 = vunpack.c.l.b16 %v4183
    %v4472 = vunpack.c.l.b16 %v4184
    %v4473 = vunpack.c.l.b16 %v4185
    %v4474 = vunpack.c.l.b16 %v4186
    %v4475 = vunpack.c.l.b16 %v4187
    %v4476 = vunpack.c.l.b16 %v4188
    %v4477 = vunpack.c.l.b16 %v4189
    %v4478 = vunpack.c.l.b16 %v4190
    %v4479 = vunpack.c.l.b16 %v4191
    %v4480 = vunpack.c.l.b16 %v4192
    %v4481 = vunpack.c.l.b16 %v4193
    %v4482 = vunpack.c.l.b16 %v4194
    %v4483 = vunpack.c.l.b16 %v4195
    %v4484 = vunpack.c.l.b16 %v4196
    %v4485 = vunpack.c.l.b16 %v4197
    %v4486 = vunpack.c.l.b16 %v4198
    %v4487 = vunpack.c.l.b16 %v4199
    %v4488 = vunpack.c.l.b16 %v4200
    %v4489 = vunpack.c.l.b16 %v4201
    %v4490 = vunpack.c.l.b16 %v4202
    %v4491 = vunpack.c.l.b16 %v4203
    %v4492 = vunpack.c.l.b16 %v4204
    %v4493 = vunpack.c.l.b16 %v4205
    %v4494 = vunpack.c.l.b16 %v4206
    %v4495 = vunpack.c.l.b16 %v4207
    %v4496 = vunpack.c.l.b16 %v4208
    %v4497 = vunpack.c.l.b16 %v4209
    %v4498 = vunpack.c.l.b16 %v4210
    %v4499 = vunpack.c.l.b16 %v4211
    %v4500 = vunpack.c.l.b16 %v4212
    %v4501 = vunpack.c.l.b16 %v4213
    %v4502 = vunpack.c.l.b16 %v4214
    %v4503 = vunpack.c.l.b16 %v4215
    %v4504 = vunpack.c.l.b16 %v4216
    %v4505 = vunpack.c.l.b16 %v4217
    %v4506 = vunpack.c.l.b16 %v4218
    %v4507 = vunpack.c.l.b16 %v4219
    %v4508 = vunpack.c.l.b16 %v4220
    %v4509 = vunpack.c.l.b16 %v4221
    %v4510 = vunpack.c.l.b16 %v4222
    %v4511 = vunpack.c.l.b16 %v4223
    %v4512 = vunpack.c.l.b16 %v4224
    %v4513 = vunpack.c.l.b16 %v4225
    %v4514 = vunpack.c.l.b16 %v4226
    %v4515 = vunpack.c.l.b16 %v4227
    %v4516 = vunpack.c.l.b16 %v4228
    %v4517 = vunpack.c.l.b16 %v4229
    %v4518 = vunpack.c.l.b16 %v4230
    %v4519 = vunpack.c.l.b16 %v4231
    %v4520 = vunpack.c.l.b16 %v4232
    %v4521 = vunpack.c.l.b16 %v4233
    %v4522 = vunpack.c.l.b16 %v4234
    %v4523 = vunpack.c.l.b16 %v4235
    %v4524 = vpack.c.b16 %v4397, %v4396
    %v4525 = vpack.c.b16 %v4399, %v4398
    %v4526 = vpack.c.b16 %v4401, %v4400
    %v4527 = vpack.c.b16 %v4403, %v4402
    %v4528 = vpack.c.b16 %v4405, %v4404
    %v4529 = vpack.c.b16 %v4407, %v4406
    %v4530 = vpack.c.b16 %v4409, %v4408
    %v4531 = vpack.c.b16 %v4411, %v4410
    %v4532 = vpack.c.b16 %v4413, %v4412
    %v4533 = vpack.c.b16 %v4415, %v4414
    %v4534 = vpack.c.b16 %v4417, %v4416
    %v4535 = vpack.c.b16 %v4419, %v4418
    %v4536 = vpack.c.b16 %v4421, %v4420
    %v4537 = vpack.c.b16 %v4423, %v4422
    %v4538 = vpack.c.b16 %v4425, %v4424
    %v4539 = vpack.c.b16 %v4427, %v4426
    %v4540 = vpack.c.b16 %v4429, %v4428
    %v4541 = vpack.c.b16 %v4431, %v4430
    %v4542 = vpack.c.b16 %v4433, %v4432
    %v4543 = vpack.c.b16 %v4435, %v4434
    %v4544 = vpack.c.b16 %v4437, %v4436
    %v4545 = vpack.c.b16 %v4439, %v4438
    %v4546 = vpack.c.b16 %v4441, %v4440
    %v4547 = vpack.c.b16 %v4443, %v4442
    %v4548 = vpack.c.b16 %v4445, %v4444
    %v4549 = vpack.c.b16 %v4447, %v4446
    %v4550 = vpack.c.b16 %v4449, %v4448
    %v4551 = vpack.c.b16 %v4451, %v4450
    %v4552 = vpack.c.b16 %v4453, %v4452
    %v4553 = vpack.c.b16 %v4455, %v4454
    %v4554 = vpack.c.b16 %v4457, %v4456
    %v4555 = vpack.c.b16 %v4459, %v4458
    %v4556 = vpack.c.b16 %v4461, %v4460
    %v4557 = vpack.c.b16 %v4463, %v4462
    %v4558 = vpack.c.b16 %v4465, %v4464
    %v4559 = vpack.c.b16 %v4467, %v4466
    %v4560 = vpack.c.b16 %v4469, %v4468
    %v4561 = vpack.c.b16 %v4471, %v4470
    %v4562 = vpack.c.b16 %v4473, %v4472
    %v4563 = vpack.c.b16 %v4475, %v4474
    %v4564 = vpack.c.b16 %v4477, %v4476
    %v4565 = vpack.c.b16 %v4479, %v4478
    %v4566 = vpack.c.b16 %v4481, %v4480
    %v4567 = vpack.c.b16 %v4483, %v4482
    %v4568 = vpack.c.b16 %v4485, %v4484
    %v4569 = vpack.c.b16 %v4487, %v4486
    %v4570 = vpack.c.b16 %v4489, %v4488
    %v4571 = vpack.c.b16 %v4491, %v4490
    %v4572 = vpack.c.b16 %v4493, %v4492
    %v4573 = vpack.c.b16 %v4495, %v4494
    %v4574 = vpack.c.b16 %v4497, %v4496
    %v4575 = vpack.c.b16 %v4499, %v4498
    %v4576 = vpack.c.b16 %v4501, %v4500
    %v4577 = vpack.c.b16 %v4503, %v4502
    %v4578 = vpack.c.b16 %v4505, %v4504
    %v4579 = vpack.c.b16 %v4507, %v4506
    %v4580 = vpack.c.b16 %v4509, %v4508
    %v4581 = vpack.c.b16 %v4511, %v4510
    %v4582 = vpack.c.b16 %v4513, %v4512
    %v4583 = vpack.c.b16 %v4515, %v4514
    %v4584 = vpack.c.b16 %v4517, %v4516
    %v4585 = vpack.c.b16 %v4519, %v4518
    %v4586 = vpack.c.b16 %v4521, %v4520
    %v4587 = vpack.c.b16 %v4523, %v4522
    %4652 = vmatpush.bf16.msra.mxu0 %v4531
    %4653 = vmatpush.bf16.msra.mxu0 %v4530
    %4654 = vmatpush.bf16.msra.mxu0 %v4529
    %4655 = vmatpush.bf16.msra.mxu0 %v4528
    %4656 = vmatpush.bf16.msra.mxu0 %v4527
    %4657 = vmatpush.bf16.msra.mxu0 %v4526
    %4658 = vmatpush.bf16.msra.mxu0 %v4525
    %4659 = vmatpush.bf16.msra.mxu0 %v4524
    %4660 = vmatmul.bf16.gmra.mxu0 %v4252
    %v4661 = vpop.f32.mrf.mxu0
    %v4662 = vadd.f32 %v4238, %v4661
    %v4663 = vpop.f32.mrf.mxu0
    %4664 = vdwg.mxu0
    %4665 = vmatpush.bf16.msra.mxu0 %v4539
    %4666 = vmatpush.bf16.msra.mxu0 %v4538
    %4667 = vmatpush.bf16.msra.mxu0 %v4537
    %4668 = vmatpush.bf16.msra.mxu0 %v4536
    %4669 = vmatpush.bf16.msra.mxu0 %v4535
    %4670 = vmatpush.bf16.msra.mxu0 %v4534
    %4671 = vmatpush.bf16.msra.mxu0 %v4533
    %4672 = vmatpush.bf16.msra.mxu0 %v4532
    %4673 = vmatmul.bf16.gmra.mxu0 %v4253
    %v4674 = vpop.f32.mrf.mxu0
    %v4675 = vadd.f32 %v4662, %v4674
    %v4676 = vpop.f32.mrf.mxu0
    %4677 = vdwg.mxu0
    %4678 = vmatpush.bf16.msra.mxu0 %v4547
    %4679 = vmatpush.bf16.msra.mxu0 %v4546
    %4680 = vmatpush.bf16.msra.mxu0 %v4545
    %4681 = vmatpush.bf16.msra.mxu0 %v4544
    %4682 = vmatpush.bf16.msra.mxu0 %v4543
    %4683 = vmatpush.bf16.msra.mxu0 %v4542
    %4684 = vmatpush.bf16.msra.mxu0 %v4541
    %4685 = vmatpush.bf16.msra.mxu0 %v4540
    %4686 = vmatmul.bf16.gmra.mxu0 %v4254
    %v4687 = vpop.f32.mrf.mxu0
    %v4688 = vadd.f32 %v4675, %v4687
    %v4689 = vpop.f32.mrf.mxu0
    %4690 = vdwg.mxu0
    %4691 = vmatpush.bf16.msra.mxu0 %v4555
    %4692 = vmatpush.bf16.msra.mxu0 %v4554
    %4693 = vmatpush.bf16.msra.mxu0 %v4553
    %4694 = vmatpush.bf16.msra.mxu0 %v4552
    %4695 = vmatpush.bf16.msra.mxu0 %v4551
    %4696 = vmatpush.bf16.msra.mxu0 %v4550
    %4697 = vmatpush.bf16.msra.mxu0 %v4549
    %4698 = vmatpush.bf16.msra.mxu0 %v4548
    %4699 = vmatmul.bf16.gmra.mxu0 %v4255
    %v4700 = vpop.f32.mrf.mxu0
    %v4701 = vadd.f32 %v4688, %v4700
    %v4702 = vpop.f32.mrf.mxu0
    %4703 = vdwg.mxu0
    %4704 = vmatpush.bf16.msra.mxu0 %v4563
    %4705 = vmatpush.bf16.msra.mxu0 %v4562
    %4706 = vmatpush.bf16.msra.mxu0 %v4561
    %4707 = vmatpush.bf16.msra.mxu0 %v4560
    %4708 = vmatpush.bf16.msra.mxu0 %v4559
    %4709 = vmatpush.bf16.msra.mxu0 %v4558
    %4710 = vmatpush.bf16.msra.mxu0 %v4557
    %4711 = vmatpush.bf16.msra.mxu0 %v4556
    %4712 = vmatmul.bf16.gmra.mxu0 %v4256
    %v4713 = vpop.f32.mrf.mxu0
    %v4714 = vadd.f32 %v4701, %v4713
    %v4715 = vpop.f32.mrf.mxu0
    %4716 = vdwg.mxu0
    %4717 = vmatpush.bf16.msra.mxu0 %v4571
    %4718 = vmatpush.bf16.msra.mxu0 %v4570
    %4719 = vmatpush.bf16.msra.mxu0 %v4569
    %4720 = vmatpush.bf16.msra.mxu0 %v4568
    %4721 = vmatpush.bf16.msra.mxu0 %v4567
    %4722 = vmatpush.bf16.msra.mxu0 %v4566
    %4723 = vmatpush.bf16.msra.mxu0 %v4565
    %4724 = vmatpush.bf16.msra.mxu0 %v4564
    %4725 = vmatmul.bf16.gmra.mxu0 %v4257
    %v4726 = vpop.f32.mrf.mxu0
    %v4727 = vadd.f32 %v4714, %v4726
    %v4728 = vpop.f32.mrf.mxu0
    %4729 = vdwg.mxu0
    %4730 = vmatpush.bf16.msra.mxu0 %v4579
    %4731 = vmatpush.bf16.msra.mxu0 %v4578
    %4732 = vmatpush.bf16.msra.mxu0 %v4577
    %4733 = vmatpush.bf16.msra.mxu0 %v4576
    %4734 = vmatpush.bf16.msra.mxu0 %v4575
    %4735 = vmatpush.bf16.msra.mxu0 %v4574
    %4736 = vmatpush.bf16.msra.mxu0 %v4573
    %4737 = vmatpush.bf16.msra.mxu0 %v4572
    %4738 = vmatmul.bf16.gmra.mxu0 %v4258
    %v4739 = vpop.f32.mrf.mxu0
    %v4740 = vadd.f32 %v4727, %v4739
    %v4741 = vpop.f32.mrf.mxu0
    %4742 = vdwg.mxu0
    %4743 = vmatpush.bf16.msra.mxu0 %v4587
    %4744 = vmatpush.bf16.msra.mxu0 %v4586
    %4745 = vmatpush.bf16.msra.mxu0 %v4585
    %4746 = vmatpush.bf16.msra.mxu0 %v4584
    %4747 = vmatpush.bf16.msra.mxu0 %v4583
    %4748 = vmatpush.bf16.msra.mxu0 %v4582
    %4749 = vmatpush.bf16.msra.mxu0 %v4581
    %4750 = vmatpush.bf16.msra.mxu0 %v4580
    %4751 = vmatmul.bf16.gmra.mxu0 %v4259
    %v4752 = vpop.f32.mrf.mxu0
    %v4753 = vadd.f32 %v4740, %v4752
    %v4754 = vpop.f32.mrf.mxu0
    %4755 = vdwg.mxu0
    %4756 = vst [vmem:[#allocation14] sm:$0xff] %v4753
    %v4757 = vld [vmem:[#allocation11] sm:$0xf]
    %v4758 = vld [vmem:[#allocation11 + $0x4] sm:$0xf]
    %v4759 = vld [vmem:[#allocation11 + $0x8] sm:$0xf]
    %v4760 = vld [vmem:[#allocation11 + $0xc] sm:$0xf]
    %v4761 = vld [vmem:[#allocation11 + $0x10] sm:$0xf]
    %v4762 = vld [vmem:[#allocation11 + $0x14] sm:$0xf]
    %v4763 = vld [vmem:[#allocation11 + $0x18] sm:$0xf]
    %v4764 = vld [vmem:[#allocation11 + $0x1c] sm:$0xf]
    %v4765 = vld [vmem:[#allocation11 + $0x20] sm:$0xf]
    %v4766 = vld [vmem:[#allocation11 + $0x24] sm:$0xf]
    %v4767 = vld [vmem:[#allocation11 + $0x28] sm:$0xf]
    %v4768 = vld [vmem:[#allocation11 + $0x2c] sm:$0xf]
    %v4769 = vld [vmem:[#allocation11 + $0x30] sm:$0xf]
    %v4770 = vld [vmem:[#allocation11 + $0x34] sm:$0xf]
    %v4771 = vld [vmem:[#allocation11 + $0x38] sm:$0xf]
    %v4772 = vld [vmem:[#allocation11 + $0x3c] sm:$0xf]
    %v4773 = vld [vmem:[#allocation11 + $0x40] sm:$0xf]
    %v4774 = vld [vmem:[#allocation11 + $0x44] sm:$0xf]
    %v4775 = vld [vmem:[#allocation11 + $0x48] sm:$0xf]
    %v4776 = vld [vmem:[#allocation11 + $0x4c] sm:$0xf]
    %v4777 = vld [vmem:[#allocation11 + $0x50] sm:$0xf]
    %v4778 = vld [vmem:[#allocation11 + $0x54] sm:$0xf]
    %v4779 = vld [vmem:[#allocation11 + $0x58] sm:$0xf]
    %v4780 = vld [vmem:[#allocation11 + $0x5c] sm:$0xf]
    %v4781 = vld [vmem:[#allocation11 + $0x60] sm:$0xf]
    %v4782 = vld [vmem:[#allocation11 + $0x64] sm:$0xf]
    %v4783 = vld [vmem:[#allocation11 + $0x68] sm:$0xf]
    %v4784 = vld [vmem:[#allocation11 + $0x6c] sm:$0xf]
    %v4785 = vld [vmem:[#allocation11 + $0x70] sm:$0xf]
    %v4786 = vld [vmem:[#allocation11 + $0x74] sm:$0xf]
    %v4787 = vld [vmem:[#allocation11 + $0x78] sm:$0xf]
    %v4788 = vld [vmem:[#allocation11 + $0x7c] sm:$0xf]
    %v4789 = vld [vmem:[#allocation11 + $0x80] sm:$0xf]
    %v4790 = vld [vmem:[#allocation11 + $0x84] sm:$0xf]
    %v4791 = vld [vmem:[#allocation11 + $0x88] sm:$0xf]
    %v4792 = vld [vmem:[#allocation11 + $0x8c] sm:$0xf]
    %v4793 = vld [vmem:[#allocation11 + $0x90] sm:$0xf]
    %v4794 = vld [vmem:[#allocation11 + $0x94] sm:$0xf]
    %v4795 = vld [vmem:[#allocation11 + $0x98] sm:$0xf]
    %v4796 = vld [vmem:[#allocation11 + $0x9c] sm:$0xf]
    %v4797 = vld [vmem:[#allocation11 + $0xa0] sm:$0xf]
    %v4798 = vld [vmem:[#allocation11 + $0xa4] sm:$0xf]
    %v4799 = vld [vmem:[#allocation11 + $0xa8] sm:$0xf]
    %v4800 = vld [vmem:[#allocation11 + $0xac] sm:$0xf]
    %v4801 = vld [vmem:[#allocation11 + $0xb0] sm:$0xf]
    %v4802 = vld [vmem:[#allocation11 + $0xb4] sm:$0xf]
    %v4803 = vld [vmem:[#allocation11 + $0xb8] sm:$0xf]
    %v4804 = vld [vmem:[#allocation11 + $0xbc] sm:$0xf]
    %v4805 = vld [vmem:[#allocation11 + $0xc0] sm:$0xf]
    %v4806 = vld [vmem:[#allocation11 + $0xc4] sm:$0xf]
    %v4807 = vld [vmem:[#allocation11 + $0xc8] sm:$0xf]
    %v4808 = vld [vmem:[#allocation11 + $0xcc] sm:$0xf]
    %v4809 = vld [vmem:[#allocation11 + $0xd0] sm:$0xf]
    %v4810 = vld [vmem:[#allocation11 + $0xd4] sm:$0xf]
    %v4811 = vld [vmem:[#allocation11 + $0xd8] sm:$0xf]
    %v4812 = vld [vmem:[#allocation11 + $0xdc] sm:$0xf]
    %v4813 = vld [vmem:[#allocation11 + $0xe0] sm:$0xf]
    %v4814 = vld [vmem:[#allocation11 + $0xe4] sm:$0xf]
    %v4815 = vld [vmem:[#allocation11 + $0xe8] sm:$0xf]
    %v4816 = vld [vmem:[#allocation11 + $0xec] sm:$0xf]
    %v4817 = vld [vmem:[#allocation11 + $0xf0] sm:$0xf]
    %v4818 = vld [vmem:[#allocation11 + $0xf4] sm:$0xf]
    %v4819 = vld [vmem:[#allocation11 + $0xf8] sm:$0xf]
    %v4820 = vld [vmem:[#allocation11 + $0xfc] sm:$0xf]
    %v4821 = vld [vmem:[#allocation11 + $0x100] sm:$0xf]
    %v4822 = vld [vmem:[#allocation11 + $0x104] sm:$0xf]
    %v4823 = vld [vmem:[#allocation11 + $0x108] sm:$0xf]
    %v4824 = vld [vmem:[#allocation11 + $0x10c] sm:$0xf]
    %v4825 = vld [vmem:[#allocation11 + $0x110] sm:$0xf]
    %v4826 = vld [vmem:[#allocation11 + $0x114] sm:$0xf]
    %v4827 = vld [vmem:[#allocation11 + $0x118] sm:$0xf]
    %v4828 = vld [vmem:[#allocation11 + $0x11c] sm:$0xf]
    %v4829 = vld [vmem:[#allocation11 + $0x120] sm:$0xf]
    %v4830 = vld [vmem:[#allocation11 + $0x124] sm:$0xf]
    %v4831 = vld [vmem:[#allocation11 + $0x128] sm:$0xf]
    %v4832 = vld [vmem:[#allocation11 + $0x12c] sm:$0xf]
    %v4833 = vld [vmem:[#allocation11 + $0x130] sm:$0xf]
    %v4834 = vld [vmem:[#allocation11 + $0x134] sm:$0xf]
    %v4835 = vld [vmem:[#allocation11 + $0x138] sm:$0xf]
    %v4836 = vld [vmem:[#allocation11 + $0x13c] sm:$0xf]
    %v4837 = vld [vmem:[#allocation11 + $0x140] sm:$0xf]
    %v4838 = vld [vmem:[#allocation11 + $0x144] sm:$0xf]
    %v4839 = vld [vmem:[#allocation11 + $0x148] sm:$0xf]
    %v4840 = vld [vmem:[#allocation11 + $0x14c] sm:$0xf]
    %v4841 = vld [vmem:[#allocation11 + $0x150] sm:$0xf]
    %v4842 = vld [vmem:[#allocation11 + $0x154] sm:$0xf]
    %v4843 = vld [vmem:[#allocation11 + $0x158] sm:$0xf]
    %v4844 = vld [vmem:[#allocation11 + $0x15c] sm:$0xf]
    %v4845 = vld [vmem:[#allocation11 + $0x160] sm:$0xf]
    %v4846 = vld [vmem:[#allocation11 + $0x164] sm:$0xf]
    %v4847 = vld [vmem:[#allocation11 + $0x168] sm:$0xf]
    %v4848 = vld [vmem:[#allocation11 + $0x16c] sm:$0xf]
    %v4849 = vld [vmem:[#allocation11 + $0x170] sm:$0xf]
    %v4850 = vld [vmem:[#allocation11 + $0x174] sm:$0xf]
    %v4851 = vld [vmem:[#allocation11 + $0x178] sm:$0xf]
    %v4852 = vld [vmem:[#allocation11 + $0x17c] sm:$0xf]
    %v4853 = vld [vmem:[#allocation11 + $0x180] sm:$0xf]
    %v4854 = vld [vmem:[#allocation11 + $0x184] sm:$0xf]
    %v4855 = vld [vmem:[#allocation11 + $0x188] sm:$0xf]
    %v4856 = vld [vmem:[#allocation11 + $0x18c] sm:$0xf]
    %v4857 = vld [vmem:[#allocation11 + $0x190] sm:$0xf]
    %v4858 = vld [vmem:[#allocation11 + $0x194] sm:$0xf]
    %v4859 = vld [vmem:[#allocation11 + $0x198] sm:$0xf]
    %v4860 = vld [vmem:[#allocation11 + $0x19c] sm:$0xf]
    %v4861 = vld [vmem:[#allocation11 + $0x1a0] sm:$0xf]
    %v4862 = vld [vmem:[#allocation11 + $0x1a4] sm:$0xf]
    %v4863 = vld [vmem:[#allocation11 + $0x1a8] sm:$0xf]
    %v4864 = vld [vmem:[#allocation11 + $0x1ac] sm:$0xf]
    %v4865 = vld [vmem:[#allocation11 + $0x1b0] sm:$0xf]
    %v4866 = vld [vmem:[#allocation11 + $0x1b4] sm:$0xf]
    %v4867 = vld [vmem:[#allocation11 + $0x1b8] sm:$0xf]
    %v4868 = vld [vmem:[#allocation11 + $0x1bc] sm:$0xf]
    %v4869 = vld [vmem:[#allocation11 + $0x1c0] sm:$0xf]
    %v4870 = vld [vmem:[#allocation11 + $0x1c4] sm:$0xf]
    %v4871 = vld [vmem:[#allocation11 + $0x1c8] sm:$0xf]
    %v4872 = vld [vmem:[#allocation11 + $0x1cc] sm:$0xf]
    %v4873 = vld [vmem:[#allocation11 + $0x1d0] sm:$0xf]
    %v4874 = vld [vmem:[#allocation11 + $0x1d4] sm:$0xf]
    %v4875 = vld [vmem:[#allocation11 + $0x1d8] sm:$0xf]
    %v4876 = vld [vmem:[#allocation11 + $0x1dc] sm:$0xf]
    %v4877 = vld [vmem:[#allocation11 + $0x1e0] sm:$0xf]
    %v4878 = vld [vmem:[#allocation11 + $0x1e4] sm:$0xf]
    %v4879 = vld [vmem:[#allocation11 + $0x1e8] sm:$0xf]
    %v4880 = vld [vmem:[#allocation11 + $0x1ec] sm:$0xf]
    %v4881 = vld [vmem:[#allocation11 + $0x1f0] sm:$0xf]
    %v4882 = vld [vmem:[#allocation11 + $0x1f4] sm:$0xf]
    %v4883 = vld [vmem:[#allocation11 + $0x1f8] sm:$0xf]
    %v4884 = vld [vmem:[#allocation11 + $0x1fc] sm:$0xf]
    %v4885 = vld [vmem:[#allocation13] sm:$0x1]
    %v4887 = vperm.slane %v4885, 0
    %v4893 = vunpack.c.l.b16 %v4104
    %v4894 = vunpack.c.h.b16 %v4104
    %v4895 = vunpack.c.l.b16 %v4105
    %v4896 = vunpack.c.h.b16 %v4105
    %v4897 = vunpack.c.l.b16 %v4106
    %v4898 = vunpack.c.h.b16 %v4106
    %v4899 = vunpack.c.l.b16 %v4107
    %v4900 = vunpack.c.h.b16 %v4107
    %v4901 = vpack.c.b16 %v4893, %v4893
    %v4902 = vpack.c.b16 %v4894, %v4894
    %v4903 = vpack.c.b16 %v4895, %v4895
    %v4904 = vpack.c.b16 %v4896, %v4896
    %v4905 = vpack.c.b16 %v4897, %v4897
    %v4906 = vpack.c.b16 %v4898, %v4898
    %v4907 = vpack.c.b16 %v4899, %v4899
    %v4908 = vpack.c.b16 %v4900, %v4900
    %v5045 = vunpack.c.l.b16 %v4757
    %v5046 = vunpack.c.l.b16 %v4758
    %v5047 = vunpack.c.l.b16 %v4759
    %v5048 = vunpack.c.l.b16 %v4760
    %v5049 = vunpack.c.l.b16 %v4761
    %v5050 = vunpack.c.l.b16 %v4762
    %v5051 = vunpack.c.l.b16 %v4763
    %v5052 = vunpack.c.l.b16 %v4764
    %v5053 = vunpack.c.l.b16 %v4765
    %v5054 = vunpack.c.l.b16 %v4766
    %v5055 = vunpack.c.l.b16 %v4767
    %v5056 = vunpack.c.l.b16 %v4768
    %v5057 = vunpack.c.l.b16 %v4769
    %v5058 = vunpack.c.l.b16 %v4770
    %v5059 = vunpack.c.l.b16 %v4771
    %v5060 = vunpack.c.l.b16 %v4772
    %v5061 = vunpack.c.l.b16 %v4773
    %v5062 = vunpack.c.l.b16 %v4774
    %v5063 = vunpack.c.l.b16 %v4775
    %v5064 = vunpack.c.l.b16 %v4776
    %v5065 = vunpack.c.l.b16 %v4777
    %v5066 = vunpack.c.l.b16 %v4778
    %v5067 = vunpack.c.l.b16 %v4779
    %v5068 = vunpack.c.l.b16 %v4780
    %v5069 = vunpack.c.l.b16 %v4781
    %v5070 = vunpack.c.l.b16 %v4782
    %v5071 = vunpack.c.l.b16 %v4783
    %v5072 = vunpack.c.l.b16 %v4784
    %v5073 = vunpack.c.l.b16 %v4785
    %v5074 = vunpack.c.l.b16 %v4786
    %v5075 = vunpack.c.l.b16 %v4787
    %v5076 = vunpack.c.l.b16 %v4788
    %v5077 = vunpack.c.l.b16 %v4789
    %v5078 = vunpack.c.l.b16 %v4790
    %v5079 = vunpack.c.l.b16 %v4791
    %v5080 = vunpack.c.l.b16 %v4792
    %v5081 = vunpack.c.l.b16 %v4793
    %v5082 = vunpack.c.l.b16 %v4794
    %v5083 = vunpack.c.l.b16 %v4795
    %v5084 = vunpack.c.l.b16 %v4796
    %v5085 = vunpack.c.l.b16 %v4797
    %v5086 = vunpack.c.l.b16 %v4798
    %v5087 = vunpack.c.l.b16 %v4799
    %v5088 = vunpack.c.l.b16 %v4800
    %v5089 = vunpack.c.l.b16 %v4801
    %v5090 = vunpack.c.l.b16 %v4802
    %v5091 = vunpack.c.l.b16 %v4803
    %v5092 = vunpack.c.l.b16 %v4804
    %v5093 = vunpack.c.l.b16 %v4805
    %v5094 = vunpack.c.l.b16 %v4806
    %v5095 = vunpack.c.l.b16 %v4807
    %v5096 = vunpack.c.l.b16 %v4808
    %v5097 = vunpack.c.l.b16 %v4809
    %v5098 = vunpack.c.l.b16 %v4810
    %v5099 = vunpack.c.l.b16 %v4811
    %v5100 = vunpack.c.l.b16 %v4812
    %v5101 = vunpack.c.l.b16 %v4813
    %v5102 = vunpack.c.l.b16 %v4814
    %v5103 = vunpack.c.l.b16 %v4815
    %v5104 = vunpack.c.l.b16 %v4816
    %v5105 = vunpack.c.l.b16 %v4817
    %v5106 = vunpack.c.l.b16 %v4818
    %v5107 = vunpack.c.l.b16 %v4819
    %v5108 = vunpack.c.l.b16 %v4820
    %v5109 = vunpack.c.l.b16 %v4821
    %v5110 = vunpack.c.l.b16 %v4822
    %v5111 = vunpack.c.l.b16 %v4823
    %v5112 = vunpack.c.l.b16 %v4824
    %v5113 = vunpack.c.l.b16 %v4825
    %v5114 = vunpack.c.l.b16 %v4826
    %v5115 = vunpack.c.l.b16 %v4827
    %v5116 = vunpack.c.l.b16 %v4828
    %v5117 = vunpack.c.l.b16 %v4829
    %v5118 = vunpack.c.l.b16 %v4830
    %v5119 = vunpack.c.l.b16 %v4831
    %v5120 = vunpack.c.l.b16 %v4832
    %v5121 = vunpack.c.l.b16 %v4833
    %v5122 = vunpack.c.l.b16 %v4834
    %v5123 = vunpack.c.l.b16 %v4835
    %v5124 = vunpack.c.l.b16 %v4836
    %v5125 = vunpack.c.l.b16 %v4837
    %v5126 = vunpack.c.l.b16 %v4838
    %v5127 = vunpack.c.l.b16 %v4839
    %v5128 = vunpack.c.l.b16 %v4840
    %v5129 = vunpack.c.l.b16 %v4841
    %v5130 = vunpack.c.l.b16 %v4842
    %v5131 = vunpack.c.l.b16 %v4843
    %v5132 = vunpack.c.l.b16 %v4844
    %v5133 = vunpack.c.l.b16 %v4845
    %v5134 = vunpack.c.l.b16 %v4846
    %v5135 = vunpack.c.l.b16 %v4847
    %v5136 = vunpack.c.l.b16 %v4848
    %v5137 = vunpack.c.l.b16 %v4849
    %v5138 = vunpack.c.l.b16 %v4850
    %v5139 = vunpack.c.l.b16 %v4851
    %v5140 = vunpack.c.l.b16 %v4852
    %v5141 = vunpack.c.l.b16 %v4853
    %v5142 = vunpack.c.l.b16 %v4854
    %v5143 = vunpack.c.l.b16 %v4855
    %v5144 = vunpack.c.l.b16 %v4856
    %v5145 = vunpack.c.l.b16 %v4857
    %v5146 = vunpack.c.l.b16 %v4858
    %v5147 = vunpack.c.l.b16 %v4859
    %v5148 = vunpack.c.l.b16 %v4860
    %v5149 = vunpack.c.l.b16 %v4861
    %v5150 = vunpack.c.l.b16 %v4862
    %v5151 = vunpack.c.l.b16 %v4863
    %v5152 = vunpack.c.l.b16 %v4864
    %v5153 = vunpack.c.l.b16 %v4865
    %v5154 = vunpack.c.l.b16 %v4866
    %v5155 = vunpack.c.l.b16 %v4867
    %v5156 = vunpack.c.l.b16 %v4868
    %v5157 = vunpack.c.l.b16 %v4869
    %v5158 = vunpack.c.l.b16 %v4870
    %v5159 = vunpack.c.l.b16 %v4871
    %v5160 = vunpack.c.l.b16 %v4872
    %v5161 = vunpack.c.l.b16 %v4873
    %v5162 = vunpack.c.l.b16 %v4874
    %v5163 = vunpack.c.l.b16 %v4875
    %v5164 = vunpack.c.l.b16 %v4876
    %v5165 = vunpack.c.l.b16 %v4877
    %v5166 = vunpack.c.l.b16 %v4878
    %v5167 = vunpack.c.l.b16 %v4879
    %v5168 = vunpack.c.l.b16 %v4880
    %v5169 = vunpack.c.l.b16 %v4881
    %v5170 = vunpack.c.l.b16 %v4882
    %v5171 = vunpack.c.l.b16 %v4883
    %v5172 = vunpack.c.l.b16 %v4884
    %v5173 = vpack.c.b16 %v5046, %v5045
    %v5174 = vpack.c.b16 %v5048, %v5047
    %v5175 = vpack.c.b16 %v5050, %v5049
    %v5176 = vpack.c.b16 %v5052, %v5051
    %v5177 = vpack.c.b16 %v5054, %v5053
    %v5178 = vpack.c.b16 %v5056, %v5055
    %v5179 = vpack.c.b16 %v5058, %v5057
    %v5180 = vpack.c.b16 %v5060, %v5059
    %v5181 = vpack.c.b16 %v5062, %v5061
    %v5182 = vpack.c.b16 %v5064, %v5063
    %v5183 = vpack.c.b16 %v5066, %v5065
    %v5184 = vpack.c.b16 %v5068, %v5067
    %v5185 = vpack.c.b16 %v5070, %v5069
    %v5186 = vpack.c.b16 %v5072, %v5071
    %v5187 = vpack.c.b16 %v5074, %v5073
    %v5188 = vpack.c.b16 %v5076, %v5075
    %v5189 = vpack.c.b16 %v5078, %v5077
    %v5190 = vpack.c.b16 %v5080, %v5079
    %v5191 = vpack.c.b16 %v5082, %v5081
    %v5192 = vpack.c.b16 %v5084, %v5083
    %v5193 = vpack.c.b16 %v5086, %v5085
    %v5194 = vpack.c.b16 %v5088, %v5087
    %v5195 = vpack.c.b16 %v5090, %v5089
    %v5196 = vpack.c.b16 %v5092, %v5091
    %v5197 = vpack.c.b16 %v5094, %v5093
    %v5198 = vpack.c.b16 %v5096, %v5095
    %v5199 = vpack.c.b16 %v5098, %v5097
    %v5200 = vpack.c.b16 %v5100, %v5099
    %v5201 = vpack.c.b16 %v5102, %v5101
    %v5202 = vpack.c.b16 %v5104, %v5103
    %v5203 = vpack.c.b16 %v5106, %v5105
    %v5204 = vpack.c.b16 %v5108, %v5107
    %v5205 = vpack.c.b16 %v5110, %v5109
    %v5206 = vpack.c.b16 %v5112, %v5111
    %v5207 = vpack.c.b16 %v5114, %v5113
    %v5208 = vpack.c.b16 %v5116, %v5115
    %v5209 = vpack.c.b16 %v5118, %v5117
    %v5210 = vpack.c.b16 %v5120, %v5119
    %v5211 = vpack.c.b16 %v5122, %v5121
    %v5212 = vpack.c.b16 %v5124, %v5123
    %v5213 = vpack.c.b16 %v5126, %v5125
    %v5214 = vpack.c.b16 %v5128, %v5127
    %v5215 = vpack.c.b16 %v5130, %v5129
    %v5216 = vpack.c.b16 %v5132, %v5131
    %v5217 = vpack.c.b16 %v5134, %v5133
    %v5218 = vpack.c.b16 %v5136, %v5135
    %v5219 = vpack.c.b16 %v5138, %v5137
    %v5220 = vpack.c.b16 %v5140, %v5139
    %v5221 = vpack.c.b16 %v5142, %v5141
    %v5222 = vpack.c.b16 %v5144, %v5143
    %v5223 = vpack.c.b16 %v5146, %v5145
    %v5224 = vpack.c.b16 %v5148, %v5147
    %v5225 = vpack.c.b16 %v5150, %v5149
    %v5226 = vpack.c.b16 %v5152, %v5151
    %v5227 = vpack.c.b16 %v5154, %v5153
    %v5228 = vpack.c.b16 %v5156, %v5155
    %v5229 = vpack.c.b16 %v5158, %v5157
    %v5230 = vpack.c.b16 %v5160, %v5159
    %v5231 = vpack.c.b16 %v5162, %v5161
    %v5232 = vpack.c.b16 %v5164, %v5163
    %v5233 = vpack.c.b16 %v5166, %v5165
    %v5234 = vpack.c.b16 %v5168, %v5167
    %v5235 = vpack.c.b16 %v5170, %v5169
    %v5236 = vpack.c.b16 %v5172, %v5171
    %5301 = vmatpush.bf16.msra.mxu0 %v5180
    %5302 = vmatpush.bf16.msra.mxu0 %v5179
    %5303 = vmatpush.bf16.msra.mxu0 %v5178
    %5304 = vmatpush.bf16.msra.mxu0 %v5177
    %5305 = vmatpush.bf16.msra.mxu0 %v5176
    %5306 = vmatpush.bf16.msra.mxu0 %v5175
    %5307 = vmatpush.bf16.msra.mxu0 %v5174
    %5308 = vmatpush.bf16.msra.mxu0 %v5173
    %5309 = vmatmul.bf16.gmra.mxu0 %v4901
    %v5310 = vpop.f32.mrf.mxu0
    %v5311 = vadd.f32 %v4887, %v5310
    %v5312 = vpop.f32.mrf.mxu0
    %5313 = vdwg.mxu0
    %5314 = vmatpush.bf16.msra.mxu0 %v5188
    %5315 = vmatpush.bf16.msra.mxu0 %v5187
    %5316 = vmatpush.bf16.msra.mxu0 %v5186
    %5317 = vmatpush.bf16.msra.mxu0 %v5185
    %5318 = vmatpush.bf16.msra.mxu0 %v5184
    %5319 = vmatpush.bf16.msra.mxu0 %v5183
    %5320 = vmatpush.bf16.msra.mxu0 %v5182
    %5321 = vmatpush.bf16.msra.mxu0 %v5181
    %5322 = vmatmul.bf16.gmra.mxu0 %v4902
    %v5323 = vpop.f32.mrf.mxu0
    %v5324 = vadd.f32 %v5311, %v5323
    %v5325 = vpop.f32.mrf.mxu0
    %5326 = vdwg.mxu0
    %5327 = vmatpush.bf16.msra.mxu0 %v5196
    %5328 = vmatpush.bf16.msra.mxu0 %v5195
    %5329 = vmatpush.bf16.msra.mxu0 %v5194
    %5330 = vmatpush.bf16.msra.mxu0 %v5193
    %5331 = vmatpush.bf16.msra.mxu0 %v5192
    %5332 = vmatpush.bf16.msra.mxu0 %v5191
    %5333 = vmatpush.bf16.msra.mxu0 %v5190
    %5334 = vmatpush.bf16.msra.mxu0 %v5189
    %5335 = vmatmul.bf16.gmra.mxu0 %v4903
    %v5336 = vpop.f32.mrf.mxu0
    %v5337 = vadd.f32 %v5324, %v5336
    %v5338 = vpop.f32.mrf.mxu0
    %5339 = vdwg.mxu0
    %5340 = vmatpush.bf16.msra.mxu0 %v5204
    %5341 = vmatpush.bf16.msra.mxu0 %v5203
    %5342 = vmatpush.bf16.msra.mxu0 %v5202
    %5343 = vmatpush.bf16.msra.mxu0 %v5201
    %5344 = vmatpush.bf16.msra.mxu0 %v5200
    %5345 = vmatpush.bf16.msra.mxu0 %v5199
    %5346 = vmatpush.bf16.msra.mxu0 %v5198
    %5347 = vmatpush.bf16.msra.mxu0 %v5197
    %5348 = vmatmul.bf16.gmra.mxu0 %v4904
    %v5349 = vpop.f32.mrf.mxu0
    %v5350 = vadd.f32 %v5337, %v5349
    %v5351 = vpop.f32.mrf.mxu0
    %5352 = vdwg.mxu0
    %5353 = vmatpush.bf16.msra.mxu0 %v5212
    %5354 = vmatpush.bf16.msra.mxu0 %v5211
    %5355 = vmatpush.bf16.msra.mxu0 %v5210
    %5356 = vmatpush.bf16.msra.mxu0 %v5209
    %5357 = vmatpush.bf16.msra.mxu0 %v5208
    %5358 = vmatpush.bf16.msra.mxu0 %v5207
    %5359 = vmatpush.bf16.msra.mxu0 %v5206
    %5360 = vmatpush.bf16.msra.mxu0 %v5205
    %5361 = vmatmul.bf16.gmra.mxu0 %v4905
    %v5362 = vpop.f32.mrf.mxu0
    %v5363 = vadd.f32 %v5350, %v5362
    %v5364 = vpop.f32.mrf.mxu0
    %5365 = vdwg.mxu0
    %5366 = vmatpush.bf16.msra.mxu0 %v5220
    %5367 = vmatpush.bf16.msra.mxu0 %v5219
    %5368 = vmatpush.bf16.msra.mxu0 %v5218
    %5369 = vmatpush.bf16.msra.mxu0 %v5217
    %5370 = vmatpush.bf16.msra.mxu0 %v5216
    %5371 = vmatpush.bf16.msra.mxu0 %v5215
    %5372 = vmatpush.bf16.msra.mxu0 %v5214
    %5373 = vmatpush.bf16.msra.mxu0 %v5213
    %5374 = vmatmul.bf16.gmra.mxu0 %v4906
    %v5375 = vpop.f32.mrf.mxu0
    %v5376 = vadd.f32 %v5363, %v5375
    %v5377 = vpop.f32.mrf.mxu0
    %5378 = vdwg.mxu0
    %5379 = vmatpush.bf16.msra.mxu0 %v5228
    %5380 = vmatpush.bf16.msra.mxu0 %v5227
    %5381 = vmatpush.bf16.msra.mxu0 %v5226
    %5382 = vmatpush.bf16.msra.mxu0 %v5225
    %5383 = vmatpush.bf16.msra.mxu0 %v5224
    %5384 = vmatpush.bf16.msra.mxu0 %v5223
    %5385 = vmatpush.bf16.msra.mxu0 %v5222
    %5386 = vmatpush.bf16.msra.mxu0 %v5221
    %5387 = vmatmul.bf16.gmra.mxu0 %v4907
    %v5388 = vpop.f32.mrf.mxu0
    %v5389 = vadd.f32 %v5376, %v5388
    %v5390 = vpop.f32.mrf.mxu0
    %5391 = vdwg.mxu0
    %5392 = vmatpush.bf16.msra.mxu0 %v5236
    %5393 = vmatpush.bf16.msra.mxu0 %v5235
    %5394 = vmatpush.bf16.msra.mxu0 %v5234
    %5395 = vmatpush.bf16.msra.mxu0 %v5233
    %5396 = vmatpush.bf16.msra.mxu0 %v5232
    %5397 = vmatpush.bf16.msra.mxu0 %v5231
    %5398 = vmatpush.bf16.msra.mxu0 %v5230
    %5399 = vmatpush.bf16.msra.mxu0 %v5229
    %5400 = vmatmul.bf16.gmra.mxu0 %v4908
    %v5401 = vpop.f32.mrf.mxu0
    %v5402 = vadd.f32 %v5389, %v5401
    %v5403 = vpop.f32.mrf.mxu0
    %5404 = vdwg.mxu0
    %5405 = vst [vmem:[#allocation14 + $0x8] sm:$0xff] %v5402
    // Predicated region
    $region58: #{tpu_custom_call.1} parent=1 // pred_check
      _
    $region59: #{tpu_custom_call.1} parent=1 // pred_check_branch
      %5407 = sbr.rel (0) target = $region61
    $region60: #{tpu_custom_call.1} parent=1 // pred_region
      %5409 = vsyncadd [#allocation4], 0
      %s5411 = sshll.u32 [#allocation14], 4
      %s5412 = int_to_ptr.vmem [resolvable:$true] %s5411
      %s5413 = sshll.u32 %s7, 4
      %s5414 = int_to_ptr.hbm [resolvable:$true] %s5413
      %5416 = dma.vmem_to_hbm [thread:$0]  %s5412, 256, %s5414, [#allocation4]
    $region61: #{tpu_custom_call.1} parent=1 // pred_fallthru
      _
    // Predicated region
    $region62: #{tpu_custom_call.1} parent=1 // pred_check
      _
    $region63: #{tpu_custom_call.1} parent=1 // pred_check_branch
      %5418 = sbr.rel (0) target = $region65
    $region64: #{tpu_custom_call.1} parent=1 // pred_region
      %5420 = dma.done [#allocation4], 256
    $region65: #{tpu_custom_call.1} parent=1 // pred_fallthru
      _
    %5421 = vsyncpa [#allocation3], 1
    %5422 = vsyncpa [#allocation6], 1
    %5423 = vsyncpa [#allocation9], 1
    %5424 = vsyncpa [#allocation12], 1
    %5425 = vsyncpa [#allocation4], 1

</llo_original>
